<compile_context>
chip_gen: v6e
topology: v6e:2x2x1
jax: 0.10.0
libtpu: 0.0.40
codegen_flags: <defaults>
</compile_context>

<pallas_src>
import functools

import numpy as np

import jax
import jax.numpy as jnp
from jax import lax
from jax.experimental import pallas as pl
from jax.experimental.pallas import tpu as pltpu


# --------------------------------- kernel ----------------------------------- #

def _convnext_fused_kernel(xpad_ref, dwB_ref, dwb_ref, dmean_ref,
                           w1_ref, b1_ref, w2_ref, b2_ref, out_ref,
                           *, H, K, BN):
    """One grid step: BN images, fused dwconv + LayerNorm + MLP + layer scale.

    xpad_ref : (BN, Hp, Wp*C)   zero-padded inputs, lane-dense (w, c) layout
    dwB_ref  : (K, Wp*C, W*C)   banded depthwise-conv matrices, one per kh
    dwb_ref  : (1, W*C)   f32   depthwise bias tiled over w
    dmean_ref: (W*C, W*C) f32   block-diag mean matrix (ones(C,C)/C blocks)
    w1_ref   : (W*C, W*hid)     block-diag pwconv1 weights (LN affine folded)
    b1_ref   : (1, W*hid) f32
    w2_ref   : (W*hid, W*out)   block-diag pwconv2 weights (gamma folded)
    b2_ref   : (1, W*out) f32
    out_ref  : (BN, H, W*out) f32  lane-dense output slab
    """
    f32 = jnp.float32

    # Depthwise KxK conv on the MXU: for every kernel row kh, one sublane slice
    # of the padded image hits a banded matrix that applies all K kw taps at
    # once -> K slices + K matmuls per image (no per-tap lane shifts).
    slabs = []
    for n in range(BN):
        xp = xpad_ref[n]                                         # (Hp, Wp*C)
        acc = jnp.dot(xp[0:H, :], dwB_ref[0],
                      preferred_element_type=f32) + dwb_ref[...]
        for kh in range(1, K):
            acc = acc + jnp.dot(xp[kh:kh + H, :], dwB_ref[kh],
                                preferred_element_type=f32)
        slabs.append(acc)                                        # (H, W*C) f32
    acc = slabs[0] if BN == 1 else jnp.concatenate(slabs, axis=0)  # (BN*H, W*C)

    # LayerNorm over the C channels of every (h, w) position via the block-
    # diagonal averaging matrix -- stays lane-dense, no reshape / relayout.
    mean = jnp.dot(acc, dmean_ref[...], preferred_element_type=f32)
    xc = acc - mean
    var = jnp.dot(xc * xc, dmean_ref[...], preferred_element_type=f32)
    xn = xc * lax.rsqrt(var + 1e-6)

    # pwconv1 (LN affine folded) -> exact erf GELU -> pwconv2 (gamma folded).
    # Activations are cast to the weight dtype (bf16 in the perf config) so the
    # MXU runs its native path; accumulation stays f32.
    h = jnp.dot(xn.astype(w1_ref.dtype), w1_ref[...],
                preferred_element_type=f32) + b1_ref[...]
    h = 0.5 * h * (1.0 + lax.erf(h * 0.7071067811865476))
    y = jnp.dot(h.astype(w2_ref.dtype), w2_ref[...],
                preferred_element_type=f32) + b2_ref[...]

    for n in range(BN):
        out_ref[n] = y[n * H:(n + 1) * H, :].astype(out_ref.dtype)


# ------------------------- one-time host-side prep -------------------------- #

def prepare_params(params, W, kernel_size=7, weight_dtype=jnp.bfloat16):
    """One-time folding of module parameters into the kernel operands.

    Built with plain numpy, OFF the per-call path (call once per parameter set /
    spatial width and reuse the returned dict every forward):
      * banded depthwise matrices dwB[kh] (the 7x7 dwconv becomes MXU matmuls),
      * block-diagonal LN-mean / pwconv1 / pwconv2 matrices (kron with I_W),
      * LayerNorm affine folded into pwconv1, layer-scale gamma into pwconv2.
    """
    K = kernel_size
    dw_w = np.asarray(params["dw_w"], np.float32)            # (K, K, C)
    dw_b = np.asarray(params["dw_b"], np.float32)            # (C,)
    ln_w = np.asarray(params["ln_w"], np.float32)            # (C,)
    ln_b = np.asarray(params["ln_b"], np.float32)            # (C,)
    w1 = np.asarray(params["w1"], np.float32)                # (C, hid)
    b1 = np.asarray(params["b1"], np.float32)                # (hid,)
    w2 = np.asarray(params["w2"], np.float32)                # (hid, out)
    b2 = np.asarray(params["b2"], np.float32)                # (out,)
    gamma = np.asarray(params["gamma"], np.float32)          # (out,)

    C = dw_w.shape[-1]
    Wp = W + K - 1

    # Banded matrices: dwB[kh, (w+kw)*C + c, w*C + c] = dw_w[kh, kw, c].
    dwB = np.zeros((K, Wp * C, W * C), np.float32)
    c_idx = np.arange(C)
    for kh in range(K):
        for kw in range(K):
            for w in range(W):
                dwB[kh, (w + kw) * C + c_idx, w * C + c_idx] = dw_w[kh, kw]
    dwb_row = np.tile(dw_b, W)[None, :]                      # (1, W*C)

    # Fold LayerNorm affine into pwconv1 and layer-scale gamma into pwconv2.
    w1f = ln_w[:, None] * w1                                 # (C, hid)
    b1f = (ln_b[:, None] * w1).sum(axis=0) + b1              # (hid,)
    w2f = w2 * gamma[None, :]                                # (hid, out)
    b2f = b2 * gamma                                         # (out,)

    eye_w = np.eye(W, dtype=np.float32)
    dmean = np.kron(eye_w, np.full((C, C), 1.0 / C, np.float32))  # (W*C, W*C)
    w1_blk = np.kron(eye_w, w1f)                             # (W*C, W*hid)
    w2_blk = np.kron(eye_w, w2f)                             # (W*hid, W*out)
    b1_row = np.tile(b1f, W)[None, :]                        # (1, W*hid)
    b2_row = np.tile(b2f, W)[None, :]                        # (1, W*out)

    return {
        "dwB": jnp.asarray(dwB, weight_dtype),
        "dwb": jnp.asarray(dwb_row, jnp.float32),
        "dmean": jnp.asarray(dmean, jnp.float32),   # f32: keep LN stats accurate
        "w1_blk": jnp.asarray(w1_blk, weight_dtype),
        "b1": jnp.asarray(b1_row, jnp.float32),
        "w2_blk": jnp.asarray(w2_blk, weight_dtype),
        "b2": jnp.asarray(b2_row, jnp.float32),
    }


# --------------------------------- wrapper ----------------------------------- #

def convnext_block_with_concat(x, x_cat, prep, batch_block=1,
                               single_buffer_weights=True):
    """x, x_cat: NCHW float32.  prep: cached output of prepare_params.
    Returns NCHW float32 with out_dim channels.

    batch_block = images folded into the sublane dim of one grid step:
      1  -> grid=(N,) "parallel" (both v7x TensorCores get a step),
      N  -> grid=(1,) with M = N*H rows per matmul (best on single-TC v5e/v6e).
    """
    N, _, H, W = x.shape
    K = prep["dwB"].shape[0]
    p = (K - 1) // 2
    C = prep["dmean"].shape[0] // W
    hid = prep["w1_blk"].shape[1] // W
    out_dim = prep["w2_blk"].shape[1] // W
    Hp, Wp = H + 2 * p, W + 2 * p
    BN = batch_block
    assert N % BN == 0, (N, BN)
    assert H % 8 == 0, "sublane-aligned H keeps the batch fold relayout-free"

    # Layout glue (fused by XLA under jit): NCHW -> padded flat (h, (w, c)).
    xh = jnp.concatenate(
        [jnp.transpose(x, (0, 2, 3, 1)), jnp.transpose(x_cat, (0, 2, 3, 1))],
        axis=-1)                                              # (N, H, W, C)
    xpad = jnp.pad(xh, ((0, 0), (p, p), (p, p), (0, 0)))      # (N, Hp, Wp, C)
    xpad_flat = xpad.reshape(N, Hp, Wp * C).astype(prep["dwB"].dtype)

    def _weight_spec(shape):
        # Grid-invariant operand: constant index map; single VMEM buffer so
        # weight VMEM does not double at production widths (v7x has 64 MiB).
        rank = len(shape)
        idx = lambda n: (0,) * rank
        if single_buffer_weights:
            return pl.BlockSpec(shape, idx, pipeline_mode=pl.Buffered(1))
        return pl.BlockSpec(shape, idx)

    kernel = functools.partial(_convnext_fused_kernel, H=H, K=K, BN=BN)

    out_flat = pl.pallas_call(
        kernel,
        out_shape=jax.ShapeDtypeStruct((N, H, W * out_dim), jnp.float32),
        grid=(N // BN,),
        in_specs=[
            pl.BlockSpec((BN, Hp, Wp * C), lambda n: (n, 0, 0)),
            _weight_spec((K, Wp * C, W * C)),
            _weight_spec((1, W * C)),
            _weight_spec((W * C, W * C)),
            _weight_spec((W * C, W * hid)),
            _weight_spec((1, W * hid)),
            _weight_spec((W * hid, W * out_dim)),
            _weight_spec((1, W * out_dim)),
        ],
        out_specs=pl.BlockSpec((BN, H, W * out_dim), lambda n: (n, 0, 0)),
        compiler_params=pltpu.CompilerParams(
            dimension_semantics=("parallel",),
        ),
    )(xpad_flat, prep["dwB"], prep["dwb"], prep["dmean"],
      prep["w1_blk"], prep["b1"], prep["w2_blk"], prep["b2"])

    y = out_flat.reshape(N, H, W, out_dim)                    # un-flatten lanes
    return jnp.transpose(y, (0, 3, 1, 2))                     # back to NCHW


# ----------------------------- pure-JAX reference ---------------------------- #

def reference(x, x_cat, params, kernel_size=7):
    """Direct f32 translation of the PyTorch module (HIGHEST-precision math)."""
    K = kernel_size
    p = (K - 1) // 2
    hi = lax.Precision.HIGHEST
    xc = jnp.concatenate([x, x_cat], axis=1)                  # (N, C, H, W)
    C = xc.shape[1]
    dw_w = jnp.transpose(params["dw_w"], (2, 0, 1))[:, None, :, :]   # (C,1,K,K)
    y = lax.conv_general_dilated(
        xc, dw_w, window_strides=(1, 1), padding=((p, p), (p, p)),
        dimension_numbers=("NCHW", "OIHW", "NCHW"), feature_group_count=C,
        precision=hi)
    y = y + params["dw_b"][None, :, None, None]
    y = jnp.transpose(y, (0, 2, 3, 1))                        # NHWC
    mean = y.mean(-1, keepdims=True)
    var = ((y - mean) ** 2).mean(-1, keepdims=True)
    yn = (y - mean) * lax.rsqrt(var + 1e-6) * params["ln_w"] + params["ln_b"]
    h = jnp.einsum("nhwc,cf->nhwf", yn, params["w1"], precision=hi) + params["b1"]
    h = 0.5 * h * (1.0 + lax.erf(h * 0.7071067811865476))
    o = jnp.einsum("nhwf,fo->nhwo", h, params["w2"], precision=hi) + params["b2"]
    o = o * params["gamma"]
    return jnp.transpose(o, (0, 3, 1, 2))


# ----------------------------------- main ------------------------------------ #

if __name__ == "__main__":
    # Module config: in_dim=4, cat_dim=4 -> cated_dim C=8, out_dim=8,
    # kernel_size=7, mlp_ratio=4 -> hidden=32, layer_scale_init_value=1e-6.
    in_dim, cat_dim, out_dim = 4, 4, 8
    K = 7
    C = in_dim + cat_dim
    hid = int(4.0 * out_dim)
    N, H, W = 2, 16, 16

    key = jax.random.PRNGKey(0)
    ks = jax.random.split(key, 10)
    params = {
        "dw_w": 0.1 * jax.random.normal(ks[0], (K, K, C), jnp.float32),
        "dw_b": 0.1 * jax.random.normal(ks[1], (C,), jnp.float32),
        "ln_w": jnp.ones((C,), jnp.float32)
                + 0.05 * jax.random.normal(ks[2], (C,), jnp.float32),
        "ln_b": 0.05 * jax.random.normal(ks[3], (C,), jnp.float32),
        "w1": 0.1 * jax.random.normal(ks[4], (C, hid), jnp.float32),
        "b1": 0.05 * jax.random.normal(ks[5], (hid,), jnp.float32),
        "w2": 0.1 * jax.random.normal(ks[6], (hid, out_dim), jnp.float32),
        "b2": 0.05 * jax.random.normal(ks[7], (out_dim,), jnp.float32),
        # matches layer_scale_init_value * torch.ones(out_dim)
        "gamma": jnp.full((out_dim,), 1e-6, jnp.float32),
    }
    x = jax.random.normal(ks[8], (N, in_dim, H, W), jnp.float32)
    x_cat = jax.random.normal(ks[9], (N, cat_dim, H, W), jnp.float32)

    fwd = jax.jit(convnext_block_with_concat,
                  static_argnames=("batch_block", "single_buffer_weights"))

    ref = reference(x, x_cat, params, kernel_size=K)
    ref_max = float(jnp.max(jnp.abs(ref))) + 1e-12

    def rel_err(out):
        assert out.shape == (N, out_dim, H, W), out.shape
        return float(jnp.max(jnp.abs(out - ref))) / ref_max

    # --- (1) f32 weights: tight numerical check of the kernel math itself. ---
    prep32 = prepare_params(params, W=W, kernel_size=K,
                            weight_dtype=jnp.float32)
    # pl.Buffered(1) single-buffered weights are a newer Pallas feature; fall
    # back to default double-buffering if this jax build rejects it.
    try:
        out = jax.block_until_ready(
            fwd(x, x_cat, prep32, batch_block=1, single_buffer_weights=True))
        sbw = True
    except Exception:
        sbw = False
        out = jax.block_until_ready(
            fwd(x, x_cat, prep32, batch_block=1, single_buffer_weights=False))
    e = rel_err(out)
    assert e < 1e-3, f"f32 weights, batch_block=1: rel err {e}"

    # --- (2) bf16 weights (perf default): halves the dominant weight DMA. ----
    prep16 = prepare_params(params, W=W, kernel_size=K)       # bf16 default
    out = jax.block_until_ready(
        fwd(x, x_cat, prep16, batch_block=1, single_buffer_weights=sbw))
    e = rel_err(out)
    assert e < 3e-2, f"bf16 weights, batch_block=1: rel err {e}"

    # --- (3) batch folded into sublanes: one grid step (v5e/v6e config). -----
    out = jax.block_until_ready(
        fwd(x, x_cat, prep16, batch_block=N, single_buffer_weights=sbw))
    e = rel_err(out)
    assert e < 3e-2, f"bf16 weights, batch_block={N}: rel err {e}"

    print("KERNEL_OK")
</pallas_src>

<mosaic_0001>
module attributes {stable_mosaic.version = 11 : i64} {
  func.func @_convnext_fused_kernel(%arg0: i32, %arg1: memref<1x22x176xf32, #tpu.memory_space<vmem>>, %arg2: memref<7x176x128xf32, #tpu.memory_space<vmem>>, %arg3: memref<1x128xf32, #tpu.memory_space<vmem>>, %arg4: memref<128x128xf32, #tpu.memory_space<vmem>>, %arg5: memref<128x512xf32, #tpu.memory_space<vmem>>, %arg6: memref<1x512xf32, #tpu.memory_space<vmem>>, %arg7: memref<512x128xf32, #tpu.memory_space<vmem>>, %arg8: memref<1x128xf32, #tpu.memory_space<vmem>>, %arg9: memref<1x16x128xf32, #tpu.memory_space<vmem>>) attributes {dimension_semantics = [#tpu.dimension_semantics<parallel>], iteration_bounds = array<i64: 2>, scalar_prefetch = 0 : i64, scratch_operands = 0 : i64, tpu.core_type = #tpu.core_type<tc>, window_params = [{transform_indices = @transform_0, window_bounds = array<i64: 1, 22, 176>}, {pipeline_mode = #tpu.pipeline_mode<synchronous>, transform_indices = @transform_1, window_bounds = array<i64: 7, 176, 128>}, {pipeline_mode = #tpu.pipeline_mode<synchronous>, transform_indices = @transform_2, window_bounds = array<i64: 1, 128>}, {pipeline_mode = #tpu.pipeline_mode<synchronous>, transform_indices = @transform_3, window_bounds = array<i64: 128, 128>}, {pipeline_mode = #tpu.pipeline_mode<synchronous>, transform_indices = @transform_4, window_bounds = array<i64: 128, 512>}, {pipeline_mode = #tpu.pipeline_mode<synchronous>, transform_indices = @transform_5, window_bounds = array<i64: 1, 512>}, {pipeline_mode = #tpu.pipeline_mode<synchronous>, transform_indices = @transform_6, window_bounds = array<i64: 512, 128>}, {pipeline_mode = #tpu.pipeline_mode<synchronous>, transform_indices = @transform_7, window_bounds = array<i64: 1, 128>}, {transform_indices = @transform_8, window_bounds = array<i64: 1, 16, 128>}]} {
    %c0 = arith.constant 0 : index
    %c0_0 = arith.constant 0 : index
    %c0_1 = arith.constant 0 : index
    %0 = vector.load %arg1[%c0, %c0_0, %c0_1] : memref<1x22x176xf32, #tpu.memory_space<vmem>>, vector<1x22x176xf32>
    %1 = vector.shape_cast %0 : vector<1x22x176xf32> to vector<22x176xf32>
    %2 = vector.extract_strided_slice %1 {offsets = [0, 0], sizes = [16, 176], strides = [1, 1]} : vector<22x176xf32> to vector<16x176xf32>
    %c0_2 = arith.constant 0 : index
    %c0_3 = arith.constant 0 : index
    %c0_4 = arith.constant 0 : index
    %3 = vector.load %arg2[%c0_2, %c0_3, %c0_4] : memref<7x176x128xf32, #tpu.memory_space<vmem>>, vector<1x176x128xf32>
    %4 = vector.shape_cast %3 : vector<1x176x128xf32> to vector<176x128xf32>
    %cst = arith.constant dense<0.000000e+00> : vector<16x128xf32>
    %5 = tpu.matmul %2, %4, %cst {dimension_numbers = #tpu.dot_dimension_numbers<[1], [0], [0], [1], [0, 0, 1, 1], [], []>} : vector<16x176xf32>, vector<176x128xf32>, vector<16x128xf32> -> vector<16x128xf32>
    %c0_5 = arith.constant 0 : index
    %c0_6 = arith.constant 0 : index
    %6 = vector.load %arg3[%c0_5, %c0_6] : memref<1x128xf32, #tpu.memory_space<vmem>>, vector<1x128xf32>
    %7 = vector.broadcast %6 : vector<1x128xf32> to vector<16x128xf32>
    %8 = arith.addf %5, %7 : vector<16x128xf32>
    %9 = vector.extract_strided_slice %1 {offsets = [1, 0], sizes = [16, 176], strides = [1, 1]} : vector<22x176xf32> to vector<16x176xf32>
    %c1 = arith.constant 1 : index
    %c0_7 = arith.constant 0 : index
    %c0_8 = arith.constant 0 : index
    %10 = vector.load %arg2[%c1, %c0_7, %c0_8] : memref<7x176x128xf32, #tpu.memory_space<vmem>>, vector<1x176x128xf32>
    %11 = vector.shape_cast %10 : vector<1x176x128xf32> to vector<176x128xf32>
    %cst_9 = arith.constant dense<0.000000e+00> : vector<16x128xf32>
    %12 = tpu.matmul %9, %11, %cst_9 {dimension_numbers = #tpu.dot_dimension_numbers<[1], [0], [0], [1], [0, 0, 1, 1], [], []>} : vector<16x176xf32>, vector<176x128xf32>, vector<16x128xf32> -> vector<16x128xf32>
    %13 = arith.addf %8, %12 : vector<16x128xf32>
    %14 = vector.extract_strided_slice %1 {offsets = [2, 0], sizes = [16, 176], strides = [1, 1]} : vector<22x176xf32> to vector<16x176xf32>
    %c2 = arith.constant 2 : index
    %c0_10 = arith.constant 0 : index
    %c0_11 = arith.constant 0 : index
    %15 = vector.load %arg2[%c2, %c0_10, %c0_11] : memref<7x176x128xf32, #tpu.memory_space<vmem>>, vector<1x176x128xf32>
    %16 = vector.shape_cast %15 : vector<1x176x128xf32> to vector<176x128xf32>
    %cst_12 = arith.constant dense<0.000000e+00> : vector<16x128xf32>
    %17 = tpu.matmul %14, %16, %cst_12 {dimension_numbers = #tpu.dot_dimension_numbers<[1], [0], [0], [1], [0, 0, 1, 1], [], []>} : vector<16x176xf32>, vector<176x128xf32>, vector<16x128xf32> -> vector<16x128xf32>
    %18 = arith.addf %13, %17 : vector<16x128xf32>
    %19 = vector.extract_strided_slice %1 {offsets = [3, 0], sizes = [16, 176], strides = [1, 1]} : vector<22x176xf32> to vector<16x176xf32>
    %c3 = arith.constant 3 : index
    %c0_13 = arith.constant 0 : index
    %c0_14 = arith.constant 0 : index
    %20 = vector.load %arg2[%c3, %c0_13, %c0_14] : memref<7x176x128xf32, #tpu.memory_space<vmem>>, vector<1x176x128xf32>
    %21 = vector.shape_cast %20 : vector<1x176x128xf32> to vector<176x128xf32>
    %cst_15 = arith.constant dense<0.000000e+00> : vector<16x128xf32>
    %22 = tpu.matmul %19, %21, %cst_15 {dimension_numbers = #tpu.dot_dimension_numbers<[1], [0], [0], [1], [0, 0, 1, 1], [], []>} : vector<16x176xf32>, vector<176x128xf32>, vector<16x128xf32> -> vector<16x128xf32>
    %23 = arith.addf %18, %22 : vector<16x128xf32>
    %24 = vector.extract_strided_slice %1 {offsets = [4, 0], sizes = [16, 176], strides = [1, 1]} : vector<22x176xf32> to vector<16x176xf32>
    %c4 = arith.constant 4 : index
    %c0_16 = arith.constant 0 : index
    %c0_17 = arith.constant 0 : index
    %25 = vector.load %arg2[%c4, %c0_16, %c0_17] : memref<7x176x128xf32, #tpu.memory_space<vmem>>, vector<1x176x128xf32>
    %26 = vector.shape_cast %25 : vector<1x176x128xf32> to vector<176x128xf32>
    %cst_18 = arith.constant dense<0.000000e+00> : vector<16x128xf32>
    %27 = tpu.matmul %24, %26, %cst_18 {dimension_numbers = #tpu.dot_dimension_numbers<[1], [0], [0], [1], [0, 0, 1, 1], [], []>} : vector<16x176xf32>, vector<176x128xf32>, vector<16x128xf32> -> vector<16x128xf32>
    %28 = arith.addf %23, %27 : vector<16x128xf32>
    %29 = vector.extract_strided_slice %1 {offsets = [5, 0], sizes = [16, 176], strides = [1, 1]} : vector<22x176xf32> to vector<16x176xf32>
    %c5 = arith.constant 5 : index
    %c0_19 = arith.constant 0 : index
    %c0_20 = arith.constant 0 : index
    %30 = vector.load %arg2[%c5, %c0_19, %c0_20] : memref<7x176x128xf32, #tpu.memory_space<vmem>>, vector<1x176x128xf32>
    %31 = vector.shape_cast %30 : vector<1x176x128xf32> to vector<176x128xf32>
    %cst_21 = arith.constant dense<0.000000e+00> : vector<16x128xf32>
    %32 = tpu.matmul %29, %31, %cst_21 {dimension_numbers = #tpu.dot_dimension_numbers<[1], [0], [0], [1], [0, 0, 1, 1], [], []>} : vector<16x176xf32>, vector<176x128xf32>, vector<16x128xf32> -> vector<16x128xf32>
    %33 = arith.addf %28, %32 : vector<16x128xf32>
    %34 = vector.extract_strided_slice %1 {offsets = [6, 0], sizes = [16, 176], strides = [1, 1]} : vector<22x176xf32> to vector<16x176xf32>
    %c6 = arith.constant 6 : index
    %c0_22 = arith.constant 0 : index
    %c0_23 = arith.constant 0 : index
    %35 = vector.load %arg2[%c6, %c0_22, %c0_23] : memref<7x176x128xf32, #tpu.memory_space<vmem>>, vector<1x176x128xf32>
    %36 = vector.shape_cast %35 : vector<1x176x128xf32> to vector<176x128xf32>
    %cst_24 = arith.constant dense<0.000000e+00> : vector<16x128xf32>
    %37 = tpu.matmul %34, %36, %cst_24 {dimension_numbers = #tpu.dot_dimension_numbers<[1], [0], [0], [1], [0, 0, 1, 1], [], []>} : vector<16x176xf32>, vector<176x128xf32>, vector<16x128xf32> -> vector<16x128xf32>
    %38 = arith.addf %33, %37 : vector<16x128xf32>
    %c0_25 = arith.constant 0 : index
    %c0_26 = arith.constant 0 : index
    %39 = vector.load %arg4[%c0_25, %c0_26] : memref<128x128xf32, #tpu.memory_space<vmem>>, vector<128x128xf32>
    %cst_27 = arith.constant dense<0.000000e+00> : vector<16x128xf32>
    %40 = tpu.matmul %38, %39, %cst_27 {dimension_numbers = #tpu.dot_dimension_numbers<[1], [0], [0], [1], [0, 0, 1, 1], [], []>} : vector<16x128xf32>, vector<128x128xf32>, vector<16x128xf32> -> vector<16x128xf32>
    %41 = arith.subf %38, %40 : vector<16x128xf32>
    %42 = arith.mulf %41, %41 : vector<16x128xf32>
    %c0_28 = arith.constant 0 : index
    %c0_29 = arith.constant 0 : index
    %43 = vector.load %arg4[%c0_28, %c0_29] : memref<128x128xf32, #tpu.memory_space<vmem>>, vector<128x128xf32>
    %cst_30 = arith.constant dense<0.000000e+00> : vector<16x128xf32>
    %44 = tpu.matmul %42, %43, %cst_30 {dimension_numbers = #tpu.dot_dimension_numbers<[1], [0], [0], [1], [0, 0, 1, 1], [], []>} : vector<16x128xf32>, vector<128x128xf32>, vector<16x128xf32> -> vector<16x128xf32>
    %cst_31 = arith.constant 9.99999997E-7 : f32
    %45 = vector.broadcast %cst_31 : f32 to vector<16x128xf32>
    %46 = arith.addf %44, %45 : vector<16x128xf32>
    %47 = math.rsqrt %46 : vector<16x128xf32>
    %48 = arith.mulf %41, %47 : vector<16x128xf32>
    %c0_32 = arith.constant 0 : index
    %c0_33 = arith.constant 0 : index
    %49 = vector.load %arg5[%c0_32, %c0_33] : memref<128x512xf32, #tpu.memory_space<vmem>>, vector<128x512xf32>
    %cst_34 = arith.constant dense<0.000000e+00> : vector<16x512xf32>
    %50 = tpu.matmul %48, %49, %cst_34 {dimension_numbers = #tpu.dot_dimension_numbers<[1], [0], [0], [1], [0, 0, 1, 1], [], []>} : vector<16x128xf32>, vector<128x512xf32>, vector<16x512xf32> -> vector<16x512xf32>
    %c0_35 = arith.constant 0 : index
    %c0_36 = arith.constant 0 : index
    %51 = vector.load %arg6[%c0_35, %c0_36] : memref<1x512xf32, #tpu.memory_space<vmem>>, vector<1x512xf32>
    %52 = vector.broadcast %51 : vector<1x512xf32> to vector<16x512xf32>
    %53 = arith.addf %50, %52 : vector<16x512xf32>
    %cst_37 = arith.constant 5.000000e-01 : f32
    %54 = vector.broadcast %cst_37 : f32 to vector<16x512xf32>
    %55 = arith.mulf %54, %53 : vector<16x512xf32>
    %cst_38 = arith.constant 0.707106769 : f32
    %56 = vector.broadcast %cst_38 : f32 to vector<16x512xf32>
    %57 = arith.mulf %53, %56 : vector<16x512xf32>
    %58 = math.erf %57 : vector<16x512xf32>
    %cst_39 = arith.constant 1.000000e+00 : f32
    %59 = vector.broadcast %cst_39 : f32 to vector<16x512xf32>
    %60 = arith.addf %59, %58 : vector<16x512xf32>
    %61 = arith.mulf %55, %60 : vector<16x512xf32>
    %c0_40 = arith.constant 0 : index
    %c0_41 = arith.constant 0 : index
    %62 = vector.load %arg7[%c0_40, %c0_41] : memref<512x128xf32, #tpu.memory_space<vmem>>, vector<512x128xf32>
    %cst_42 = arith.constant dense<0.000000e+00> : vector<16x128xf32>
    %63 = tpu.matmul %61, %62, %cst_42 {dimension_numbers = #tpu.dot_dimension_numbers<[1], [0], [0], [1], [0, 0, 1, 1], [], []>} : vector<16x512xf32>, vector<512x128xf32>, vector<16x128xf32> -> vector<16x128xf32>
    %c0_43 = arith.constant 0 : index
    %c0_44 = arith.constant 0 : index
    %64 = vector.load %arg8[%c0_43, %c0_44] : memref<1x128xf32, #tpu.memory_space<vmem>>, vector<1x128xf32>
    %65 = vector.broadcast %64 : vector<1x128xf32> to vector<16x128xf32>
    %66 = arith.addf %63, %65 : vector<16x128xf32>
    %c0_45 = arith.constant 0 : index
    %c0_46 = arith.constant 0 : index
    %c0_47 = arith.constant 0 : index
    %67 = vector.load %arg9[%c0_45, %c0_46, %c0_47] : memref<1x16x128xf32, #tpu.memory_space<vmem>>, vector<1x16x128xf32>
    %68 = vector.shape_cast %67 : vector<1x16x128xf32> to vector<16x128xf32>
    %69 = vector.shape_cast %66 : vector<16x128xf32> to vector<1x16x128xf32>
    tpu.vector_store %arg9[%c0_45, %c0_46, %c0_47], %69 {strides = array<i32>} : memref<1x16x128xf32, #tpu.memory_space<vmem>>, vector<1x16x128xf32>,
    return
  }
  func.func @transform_0(%arg0: i32) -> (i32, i32, i32) {
    %c0_i32 = arith.constant 0 : i32
    %c0_i32_0 = arith.constant 0 : i32
    %c0_i32_1 = arith.constant 0 : i32
    return %arg0, %c0_i32, %c0_i32_0 : i32, i32, i32
  }
  func.func @transform_1(%arg0: i32) -> (i32, i32, i32) {
    %c0_i32 = arith.constant 0 : i32
    %c0_i32_0 = arith.constant 0 : i32
    %c0_i32_1 = arith.constant 0 : i32
    %c0_i32_2 = arith.constant 0 : i32
    return %c0_i32, %c0_i32_0, %c0_i32_1 : i32, i32, i32
  }
  func.func @transform_2(%arg0: i32) -> (i32, i32) {
    %c0_i32 = arith.constant 0 : i32
    %c0_i32_0 = arith.constant 0 : i32
    %c0_i32_1 = arith.constant 0 : i32
    return %c0_i32, %c0_i32_0 : i32, i32
  }
  func.func @transform_3(%arg0: i32) -> (i32, i32) {
    %c0_i32 = arith.constant 0 : i32
    %c0_i32_0 = arith.constant 0 : i32
    %c0_i32_1 = arith.constant 0 : i32
    return %c0_i32, %c0_i32_0 : i32, i32
  }
  func.func @transform_4(%arg0: i32) -> (i32, i32) {
    %c0_i32 = arith.constant 0 : i32
    %c0_i32_0 = arith.constant 0 : i32
    %c0_i32_1 = arith.constant 0 : i32
    return %c0_i32, %c0_i32_0 : i32, i32
  }
  func.func @transform_5(%arg0: i32) -> (i32, i32) {
    %c0_i32 = arith.constant 0 : i32
    %c0_i32_0 = arith.constant 0 : i32
    %c0_i32_1 = arith.constant 0 : i32
    return %c0_i32, %c0_i32_0 : i32, i32
  }
  func.func @transform_6(%arg0: i32) -> (i32, i32) {
    %c0_i32 = arith.constant 0 : i32
    %c0_i32_0 = arith.constant 0 : i32
    %c0_i32_1 = arith.constant 0 : i32
    return %c0_i32, %c0_i32_0 : i32, i32
  }
  func.func @transform_7(%arg0: i32) -> (i32, i32) {
    %c0_i32 = arith.constant 0 : i32
    %c0_i32_0 = arith.constant 0 : i32
    %c0_i32_1 = arith.constant 0 : i32
    return %c0_i32, %c0_i32_0 : i32, i32
  }
  func.func @transform_8(%arg0: i32) -> (i32, i32, i32) {
    %c0_i32 = arith.constant 0 : i32
    %c0_i32_0 = arith.constant 0 : i32
    %c0_i32_1 = arith.constant 0 : i32
    return %arg0, %c0_i32, %c0_i32_0 : i32, i32, i32
  }
}

module attributes {stable_mosaic.version = 11 : i64} {
  func.func @_convnext_fused_kernel(%arg0: i32, %arg1: memref<1x22x176xf32, #tpu.memory_space<vmem>>, %arg2: memref<7x176x128xf32, #tpu.memory_space<vmem>>, %arg3: memref<1x128xf32, #tpu.memory_space<vmem>>, %arg4: memref<128x128xf32, #tpu.memory_space<vmem>>, %arg5: memref<128x512xf32, #tpu.memory_space<vmem>>, %arg6: memref<1x512xf32, #tpu.memory_space<vmem>>, %arg7: memref<512x128xf32, #tpu.memory_space<vmem>>, %arg8: memref<1x128xf32, #tpu.memory_space<vmem>>, %arg9: memref<1x16x128xf32, #tpu.memory_space<vmem>>) attributes {dimension_semantics = [#tpu.dimension_semantics<parallel>], iteration_bounds = array<i64: 2>, scalar_prefetch = 0 : i64, scratch_operands = 0 : i64, tpu.core_type = #tpu.core_type<tc>, window_params = [{transform_indices = @transform_0, window_bounds = array<i64: 1, 22, 176>}, {pipeline_mode = #tpu.pipeline_mode<synchronous>, transform_indices = @transform_1, window_bounds = array<i64: 7, 176, 128>}, {pipeline_mode = #tpu.pipeline_mode<synchronous>, transform_indices = @transform_2, window_bounds = array<i64: 1, 128>}, {pipeline_mode = #tpu.pipeline_mode<synchronous>, transform_indices = @transform_3, window_bounds = array<i64: 128, 128>}, {pipeline_mode = #tpu.pipeline_mode<synchronous>, transform_indices = @transform_4, window_bounds = array<i64: 128, 512>}, {pipeline_mode = #tpu.pipeline_mode<synchronous>, transform_indices = @transform_5, window_bounds = array<i64: 1, 512>}, {pipeline_mode = #tpu.pipeline_mode<synchronous>, transform_indices = @transform_6, window_bounds = array<i64: 512, 128>}, {pipeline_mode = #tpu.pipeline_mode<synchronous>, transform_indices = @transform_7, window_bounds = array<i64: 1, 128>}, {transform_indices = @transform_8, window_bounds = array<i64: 1, 16, 128>}]} {
    %c0 = arith.constant 0 : index
    %c0_0 = arith.constant 0 : index
    %c0_1 = arith.constant 0 : index
    %0 = vector.load %arg1[%c0, %c0_0, %c0_1] : memref<1x22x176xf32, #tpu.memory_space<vmem>>, vector<1x22x176xf32>
    %1 = vector.shape_cast %0 : vector<1x22x176xf32> to vector<22x176xf32>
    %2 = vector.extract_strided_slice %1 {offsets = [0, 0], sizes = [16, 176], strides = [1, 1]} : vector<22x176xf32> to vector<16x176xf32>
    %c0_2 = arith.constant 0 : index
    %c0_3 = arith.constant 0 : index
    %c0_4 = arith.constant 0 : index
    %3 = vector.load %arg2[%c0_2, %c0_3, %c0_4] : memref<7x176x128xf32, #tpu.memory_space<vmem>>, vector<1x176x128xf32>
    %4 = vector.shape_cast %3 : vector<1x176x128xf32> to vector<176x128xf32>
    %cst = arith.constant dense<0.000000e+00> : vector<16x128xf32>
    %5 = tpu.matmul %2, %4, %cst {dimension_numbers = #tpu.dot_dimension_numbers<[1], [0], [0], [1], [0, 0, 1, 1], [], []>} : vector<16x176xf32>, vector<176x128xf32>, vector<16x128xf32> -> vector<16x128xf32>
    %c0_5 = arith.constant 0 : index
    %c0_6 = arith.constant 0 : index
    %6 = vector.load %arg3[%c0_5, %c0_6] : memref<1x128xf32, #tpu.memory_space<vmem>>, vector<1x128xf32>
    %7 = vector.broadcast %6 : vector<1x128xf32> to vector<16x128xf32>
    %8 = arith.addf %5, %7 : vector<16x128xf32>
    %9 = vector.extract_strided_slice %1 {offsets = [1, 0], sizes = [16, 176], strides = [1, 1]} : vector<22x176xf32> to vector<16x176xf32>
    %c1 = arith.constant 1 : index
    %c0_7 = arith.constant 0 : index
    %c0_8 = arith.constant 0 : index
    %10 = vector.load %arg2[%c1, %c0_7, %c0_8] : memref<7x176x128xf32, #tpu.memory_space<vmem>>, vector<1x176x128xf32>
    %11 = vector.shape_cast %10 : vector<1x176x128xf32> to vector<176x128xf32>
    %cst_9 = arith.constant dense<0.000000e+00> : vector<16x128xf32>
    %12 = tpu.matmul %9, %11, %cst_9 {dimension_numbers = #tpu.dot_dimension_numbers<[1], [0], [0], [1], [0, 0, 1, 1], [], []>} : vector<16x176xf32>, vector<176x128xf32>, vector<16x128xf32> -> vector<16x128xf32>
    %13 = arith.addf %8, %12 : vector<16x128xf32>
    %14 = vector.extract_strided_slice %1 {offsets = [2, 0], sizes = [16, 176], strides = [1, 1]} : vector<22x176xf32> to vector<16x176xf32>
    %c2 = arith.constant 2 : index
    %c0_10 = arith.constant 0 : index
    %c0_11 = arith.constant 0 : index
    %15 = vector.load %arg2[%c2, %c0_10, %c0_11] : memref<7x176x128xf32, #tpu.memory_space<vmem>>, vector<1x176x128xf32>
    %16 = vector.shape_cast %15 : vector<1x176x128xf32> to vector<176x128xf32>
    %cst_12 = arith.constant dense<0.000000e+00> : vector<16x128xf32>
    %17 = tpu.matmul %14, %16, %cst_12 {dimension_numbers = #tpu.dot_dimension_numbers<[1], [0], [0], [1], [0, 0, 1, 1], [], []>} : vector<16x176xf32>, vector<176x128xf32>, vector<16x128xf32> -> vector<16x128xf32>
    %18 = arith.addf %13, %17 : vector<16x128xf32>
    %19 = vector.extract_strided_slice %1 {offsets = [3, 0], sizes = [16, 176], strides = [1, 1]} : vector<22x176xf32> to vector<16x176xf32>
    %c3 = arith.constant 3 : index
    %c0_13 = arith.constant 0 : index
    %c0_14 = arith.constant 0 : index
    %20 = vector.load %arg2[%c3, %c0_13, %c0_14] : memref<7x176x128xf32, #tpu.memory_space<vmem>>, vector<1x176x128xf32>
    %21 = vector.shape_cast %20 : vector<1x176x128xf32> to vector<176x128xf32>
    %cst_15 = arith.constant dense<0.000000e+00> : vector<16x128xf32>
    %22 = tpu.matmul %19, %21, %cst_15 {dimension_numbers = #tpu.dot_dimension_numbers<[1], [0], [0], [1], [0, 0, 1, 1], [], []>} : vector<16x176xf32>, vector<176x128xf32>, vector<16x128xf32> -> vector<16x128xf32>
    %23 = arith.addf %18, %22 : vector<16x128xf32>
    %24 = vector.extract_strided_slice %1 {offsets = [4, 0], sizes = [16, 176], strides = [1, 1]} : vector<22x176xf32> to vector<16x176xf32>
    %c4 = arith.constant 4 : index
    %c0_16 = arith.constant 0 : index
    %c0_17 = arith.constant 0 : index
    %25 = vector.load %arg2[%c4, %c0_16, %c0_17] : memref<7x176x128xf32, #tpu.memory_space<vmem>>, vector<1x176x128xf32>
    %26 = vector.shape_cast %25 : vector<1x176x128xf32> to vector<176x128xf32>
    %cst_18 = arith.constant dense<0.000000e+00> : vector<16x128xf32>
    %27 = tpu.matmul %24, %26, %cst_18 {dimension_numbers = #tpu.dot_dimension_numbers<[1], [0], [0], [1], [0, 0, 1, 1], [], []>} : vector<16x176xf32>, vector<176x128xf32>, vector<16x128xf32> -> vector<16x128xf32>
    %28 = arith.addf %23, %27 : vector<16x128xf32>
    %29 = vector.extract_strided_slice %1 {offsets = [5, 0], sizes = [16, 176], strides = [1, 1]} : vector<22x176xf32> to vector<16x176xf32>
    %c5 = arith.constant 5 : index
    %c0_19 = arith.constant 0 : index
    %c0_20 = arith.constant 0 : index
    %30 = vector.load %arg2[%c5, %c0_19, %c0_20] : memref<7x176x128xf32, #tpu.memory_space<vmem>>, vector<1x176x128xf32>
    %31 = vector.shape_cast %30 : vector<1x176x128xf32> to vector<176x128xf32>
    %cst_21 = arith.constant dense<0.000000e+00> : vector<16x128xf32>
    %32 = tpu.matmul %29, %31, %cst_21 {dimension_numbers = #tpu.dot_dimension_numbers<[1], [0], [0], [1], [0, 0, 1, 1], [], []>} : vector<16x176xf32>, vector<176x128xf32>, vector<16x128xf32> -> vector<16x128xf32>
    %33 = arith.addf %28, %32 : vector<16x128xf32>
    %34 = vector.extract_strided_slice %1 {offsets = [6, 0], sizes = [16, 176], strides = [1, 1]} : vector<22x176xf32> to vector<16x176xf32>
    %c6 = arith.constant 6 : index
    %c0_22 = arith.constant 0 : index
    %c0_23 = arith.constant 0 : index
    %35 = vector.load %arg2[%c6, %c0_22, %c0_23] : memref<7x176x128xf32, #tpu.memory_space<vmem>>, vector<1x176x128xf32>
    %36 = vector.shape_cast %35 : vector<1x176x128xf32> to vector<176x128xf32>
    %cst_24 = arith.constant dense<0.000000e+00> : vector<16x128xf32>
    %37 = tpu.matmul %34, %36, %cst_24 {dimension_numbers = #tpu.dot_dimension_numbers<[1], [0], [0], [1], [0, 0, 1, 1], [], []>} : vector<16x176xf32>, vector<176x128xf32>, vector<16x128xf32> -> vector<16x128xf32>
    %38 = arith.addf %33, %37 : vector<16x128xf32>
    %c0_25 = arith.constant 0 : index
    %c0_26 = arith.constant 0 : index
    %39 = vector.load %arg4[%c0_25, %c0_26] : memref<128x128xf32, #tpu.memory_space<vmem>>, vector<128x128xf32>
    %cst_27 = arith.constant dense<0.000000e+00> : vector<16x128xf32>
    %40 = tpu.matmul %38, %39, %cst_27 {dimension_numbers = #tpu.dot_dimension_numbers<[1], [0], [0], [1], [0, 0, 1, 1], [], []>} : vector<16x128xf32>, vector<128x128xf32>, vector<16x128xf32> -> vector<16x128xf32>
    %41 = arith.subf %38, %40 : vector<16x128xf32>
    %42 = arith.mulf %41, %41 : vector<16x128xf32>
    %c0_28 = arith.constant 0 : index
    %c0_29 = arith.constant 0 : index
    %43 = vector.load %arg4[%c0_28, %c0_29] : memref<128x128xf32, #tpu.memory_space<vmem>>, vector<128x128xf32>
    %cst_30 = arith.constant dense<0.000000e+00> : vector<16x128xf32>
    %44 = tpu.matmul %42, %43, %cst_30 {dimension_numbers = #tpu.dot_dimension_numbers<[1], [0], [0], [1], [0, 0, 1, 1], [], []>} : vector<16x128xf32>, vector<128x128xf32>, vector<16x128xf32> -> vector<16x128xf32>
    %cst_31 = arith.constant 9.99999997E-7 : f32
    %45 = vector.broadcast %cst_31 : f32 to vector<16x128xf32>
    %46 = arith.addf %44, %45 : vector<16x128xf32>
    %47 = math.rsqrt %46 : vector<16x128xf32>
    %48 = arith.mulf %41, %47 : vector<16x128xf32>
    %c0_32 = arith.constant 0 : index
    %c0_33 = arith.constant 0 : index
    %49 = vector.load %arg5[%c0_32, %c0_33] : memref<128x512xf32, #tpu.memory_space<vmem>>, vector<128x512xf32>
    %cst_34 = arith.constant dense<0.000000e+00> : vector<16x512xf32>
    %50 = tpu.matmul %48, %49, %cst_34 {dimension_numbers = #tpu.dot_dimension_numbers<[1], [0], [0], [1], [0, 0, 1, 1], [], []>} : vector<16x128xf32>, vector<128x512xf32>, vector<16x512xf32> -> vector<16x512xf32>
    %c0_35 = arith.constant 0 : index
    %c0_36 = arith.constant 0 : index
    %51 = vector.load %arg6[%c0_35, %c0_36] : memref<1x512xf32, #tpu.memory_space<vmem>>, vector<1x512xf32>
    %52 = vector.broadcast %51 : vector<1x512xf32> to vector<16x512xf32>
    %53 = arith.addf %50, %52 : vector<16x512xf32>
    %cst_37 = arith.constant 5.000000e-01 : f32
    %54 = vector.broadcast %cst_37 : f32 to vector<16x512xf32>
    %55 = arith.mulf %54, %53 : vector<16x512xf32>
    %cst_38 = arith.constant 0.707106769 : f32
    %56 = vector.broadcast %cst_38 : f32 to vector<16x512xf32>
    %57 = arith.mulf %53, %56 : vector<16x512xf32>
    %58 = math.erf %57 : vector<16x512xf32>
    %cst_39 = arith.constant 1.000000e+00 : f32
    %59 = vector.broadcast %cst_39 : f32 to vector<16x512xf32>
    %60 = arith.addf %59, %58 : vector<16x512xf32>
    %61 = arith.mulf %55, %60 : vector<16x512xf32>
    %c0_40 = arith.constant 0 : index
    %c0_41 = arith.constant 0 : index
    %62 = vector.load %arg7[%c0_40, %c0_41] : memref<512x128xf32, #tpu.memory_space<vmem>>, vector<512x128xf32>
    %cst_42 = arith.constant dense<0.000000e+00> : vector<16x128xf32>
    %63 = tpu.matmul %61, %62, %cst_42 {dimension_numbers = #tpu.dot_dimension_numbers<[1], [0], [0], [1], [0, 0, 1, 1], [], []>} : vector<16x512xf32>, vector<512x128xf32>, vector<16x128xf32> -> vector<16x128xf32>
    %c0_43 = arith.constant 0 : index
    %c0_44 = arith.constant 0 : index
    %64 = vector.load %arg8[%c0_43, %c0_44] : memref<1x128xf32, #tpu.memory_space<vmem>>, vector<1x128xf32>
    %65 = vector.broadcast %64 : vector<1x128xf32> to vector<16x128xf32>
    %66 = arith.addf %63, %65 : vector<16x128xf32>
    %c0_45 = arith.constant 0 : index
    %c0_46 = arith.constant 0 : index
    %c0_47 = arith.constant 0 : index
    %67 = vector.load %arg9[%c0_45, %c0_46, %c0_47] : memref<1x16x128xf32, #tpu.memory_space<vmem>>, vector<1x16x128xf32>
    %68 = vector.shape_cast %67 : vector<1x16x128xf32> to vector<16x128xf32>
    %69 = vector.shape_cast %66 : vector<16x128xf32> to vector<1x16x128xf32>
    tpu.vector_store %arg9[%c0_45, %c0_46, %c0_47], %69 {strides = array<i32>} : memref<1x16x128xf32, #tpu.memory_space<vmem>>, vector<1x16x128xf32>,
    return
  }
  func.func @transform_0(%arg0: i32) -> (i32, i32, i32) {
    %c0_i32 = arith.constant 0 : i32
    %c0_i32_0 = arith.constant 0 : i32
    %c0_i32_1 = arith.constant 0 : i32
    return %arg0, %c0_i32, %c0_i32_0 : i32, i32, i32
  }
  func.func @transform_1(%arg0: i32) -> (i32, i32, i32) {
    %c0_i32 = arith.constant 0 : i32
    %c0_i32_0 = arith.constant 0 : i32
    %c0_i32_1 = arith.constant 0 : i32
    %c0_i32_2 = arith.constant 0 : i32
    return %c0_i32, %c0_i32_0, %c0_i32_1 : i32, i32, i32
  }
  func.func @transform_2(%arg0: i32) -> (i32, i32) {
    %c0_i32 = arith.constant 0 : i32
    %c0_i32_0 = arith.constant 0 : i32
    %c0_i32_1 = arith.constant 0 : i32
    return %c0_i32, %c0_i32_0 : i32, i32
  }
  func.func @transform_3(%arg0: i32) -> (i32, i32) {
    %c0_i32 = arith.constant 0 : i32
    %c0_i32_0 = arith.constant 0 : i32
    %c0_i32_1 = arith.constant 0 : i32
    return %c0_i32, %c0_i32_0 : i32, i32
  }
  func.func @transform_4(%arg0: i32) -> (i32, i32) {
    %c0_i32 = arith.constant 0 : i32
    %c0_i32_0 = arith.constant 0 : i32
    %c0_i32_1 = arith.constant 0 : i32
    return %c0_i32, %c0_i32_0 : i32, i32
  }
  func.func @transform_5(%arg0: i32) -> (i32, i32) {
    %c0_i32 = arith.constant 0 : i32
    %c0_i32_0 = arith.constant 0 : i32
    %c0_i32_1 = arith.constant 0 : i32
    return %c0_i32, %c0_i32_0 : i32, i32
  }
  func.func @transform_6(%arg0: i32) -> (i32, i32) {
    %c0_i32 = arith.constant 0 : i32
    %c0_i32_0 = arith.constant 0 : i32
    %c0_i32_1 = arith.constant 0 : i32
    return %c0_i32, %c0_i32_0 : i32, i32
  }
  func.func @transform_7(%arg0: i32) -> (i32, i32) {
    %c0_i32 = arith.constant 0 : i32
    %c0_i32_0 = arith.constant 0 : i32
    %c0_i32_1 = arith.constant 0 : i32
    return %c0_i32, %c0_i32_0 : i32, i32
  }
  func.func @transform_8(%arg0: i32) -> (i32, i32, i32) {
    %c0_i32 = arith.constant 0 : i32
    %c0_i32_0 = arith.constant 0 : i32
    %c0_i32_1 = arith.constant 0 : i32
    return %arg0, %c0_i32, %c0_i32_0 : i32, i32, i32
  }
}

</mosaic_0001>

<llo_original>
// kernel: convnext_block_with_concat.1
$region0: #{convnext_block_with_concat.1}
  #allocation0 [shape = 'u32[]', space=smem, size = 0x4, offset = 0x4, fixed_abs, tag = 'smem constant byte address 0x4 - core index']
  #allocation1 [shape = 'u32[144,128]{1,0:T(1,128)}', space=vmem, size = 0x12000, scoped, tag = 'internal scratch']
  %s0 = inlined_call_operand.vmem [shape: f32[2,22,176], index: 0, kind: input, shape index: {}]
  %s1 = inlined_call_operand.vmem [shape: f32[7,176,128], index: 1, kind: input, shape index: {}]
  %s2 = inlined_call_operand.vmem [shape: f32[1,128], index: 2, kind: input, shape index: {}]
  %s3 = inlined_call_operand.vmem [shape: f32[128,128], index: 3, kind: input, shape index: {}]
  %s4 = inlined_call_operand.vmem [shape: f32[128,512], index: 4, kind: input, shape index: {}]
  %s5 = inlined_call_operand.vmem [shape: f32[1,512], index: 5, kind: input, shape index: {}]
  %s6 = inlined_call_operand.hbm [shape: f32[512,128], index: 6, kind: input, shape index: {}]
  %s7 = inlined_call_operand.vmem [shape: f32[1,128], index: 7, kind: input, shape index: {}]
  %s8 = inlined_call_operand.vmem [shape: f32[2,16,128], index: 8, kind: output, shape index: {}]
  %s9 = sld [smem:[#allocation0]]
  $region69: #{convnext_block_with_concat.1} parent=0
    _
  %s11 = ssub.s32 1, %s9
  %s12 = scalar_select 0, %s11, %s9
  $region1: #{convnext_block_with_concat.1} parent=0
    #allocation2 [shape = 'u8[262144]{0}', space=vmem, size = 0x40000, scoped, tag = 'input window, operand 6, single buffered']
    #allocation3 [shape = 's32[2]{0}', space=sflag, size = 0x8, scoped, tag = 'scoped memory for convnext_block_with_concat.1']
    %13 = vsyncpa [#allocation3], 0
    loop: start=0, step=1, limit=4
    $region2: #{convnext_block_with_concat.1} parent=1 // loop_pre_header
      _
    $region3: #{convnext_block_with_concat.1} parent=1 // loop_header
      %s15 = sphi 0, %s19
      %p16 = scmp.ge.s32.totalorder %s15, 4
      %s25 = sphi 0, %s27
      %s28 = sphi 0, %s25
      %s29 = sphi 0, %s28
      %s45 = sphi 0, %s29
      %s49 = sphi 0, %s49
      %s51 = sphi 0, %s49
      %s52 = sphi 0, %s51
      %s66 = sphi 0, %s52
      %s70 = sphi 0, %s70
      %s72 = sphi 0, %s70
      %s73 = sphi 0, %s72
      %s87 = sphi 0, %s73
      %s91 = sphi 0, %s91
      %s93 = sphi 0, %s91
      %s94 = sphi 0, %s93
      %s108 = sphi 0, %s94
      %s112 = sphi 0, %s112
      %s114 = sphi 0, %s112
      %s115 = sphi 0, %s114
      %s129 = sphi 0, %s115
      %s133 = sphi 0, %s133
      %s135 = sphi 0, %s133
      %s136 = sphi 0, %s135
      %s150 = sphi 0, %s136
      %s154 = sphi 0, %s154
      %s156 = sphi 0, %s154
      %s157 = sphi 0, %s156
      %s171 = sphi 0, %s157
      %s175 = sphi 0, %s175
      %s177 = sphi 0, %s175
      %s178 = sphi 0, %s177
      %s192 = sphi 0, %s178
      %s198 = sphi 0, %s200
      %s201 = sphi 0, %s198
      %s202 = sphi 0, %s201
      %s218 = sphi 0, %s202
    $region4: #{convnext_block_with_concat.1} parent=1 // loop_header_branch
      %18 = sbr.rel (%p16) target = $region8
    $region5: #{convnext_block_with_concat.1} parent=1 // loop_body
      %s20 = ssub.s32 %s15, 1
      %s21 = ssub.s32 %s15, 2
      %s22 = sadd.s32 %s15, 1
      %s23 = ssub.s32 %s15, %s22
      %p24 = scmp.eq.s32.totalorder %s23, 0
      %s26 = sadd.s32 %s25, 1
      %s27 = scalar_select %p24, %s25, %s26
      %p30 = pneg %p24
      %p31 = scmp.eq.s32.totalorder %s15, 1
      %p32 = por %p30, %p31
      %p33 = scmp.ne.s32.totalorder %s25, %s28
      %p34 = scmp.eq.s32.totalorder %s15, 0
      %p35 = por %p33, %p34
      %p36 = scmp.ne.s32.totalorder %s25, %s28
      %p37 = scmp.eq.s32.totalorder %s20, 1
      %p38 = por %p36, %p37
      %p39 = scmp.ne.s32.totalorder %s28, %s29
      %p40 = scmp.eq.s32.totalorder %s20, 0
      %p41 = por %p39, %p40
      %p42 = scmp.ne.s32.totalorder %s28, %s29
      %p43 = scmp.eq.s32.totalorder %s21, 1
      %p44 = por %p42, %p43
      %p46 = scmp.ne.s32.totalorder %s29, %s45
      %p47 = scmp.eq.s32.totalorder %s21, 0
      %p48 = por %p46, %p47
      %s50 = sadd.s32 %s49, 1
      %p53 = scmp.eq.s32.totalorder %s15, 1
      %p54 = scmp.ne.s32.totalorder %s49, %s51
      %p55 = scmp.eq.s32.totalorder %s15, 0
      %p56 = por %p54, %p55
      %p57 = scmp.ne.s32.totalorder %s49, %s51
      %p58 = scmp.eq.s32.totalorder %s20, 1
      %p59 = por %p57, %p58
      %p60 = scmp.ne.s32.totalorder %s51, %s52
      %p61 = scmp.eq.s32.totalorder %s20, 0
      %p62 = por %p60, %p61
      %p63 = scmp.ne.s32.totalorder %s51, %s52
      %p64 = scmp.eq.s32.totalorder %s21, 1
      %p65 = por %p63, %p64
      %p67 = scmp.ne.s32.totalorder %s52, %s66
      %p68 = scmp.eq.s32.totalorder %s21, 0
      %p69 = por %p67, %p68
      %s71 = sadd.s32 %s70, 1
      %p74 = scmp.eq.s32.totalorder %s15, 1
      %p75 = scmp.ne.s32.totalorder %s70, %s72
      %p76 = scmp.eq.s32.totalorder %s15, 0
      %p77 = por %p75, %p76
      %p78 = scmp.ne.s32.totalorder %s70, %s72
      %p79 = scmp.eq.s32.totalorder %s20, 1
      %p80 = por %p78, %p79
      %p81 = scmp.ne.s32.totalorder %s72, %s73
      %p82 = scmp.eq.s32.totalorder %s20, 0
      %p83 = por %p81, %p82
      %p84 = scmp.ne.s32.totalorder %s72, %s73
      %p85 = scmp.eq.s32.totalorder %s21, 1
      %p86 = por %p84, %p85
      %p88 = scmp.ne.s32.totalorder %s73, %s87
      %p89 = scmp.eq.s32.totalorder %s21, 0
      %p90 = por %p88, %p89
      %s92 = sadd.s32 %s91, 1
      %p95 = scmp.eq.s32.totalorder %s15, 1
      %p96 = scmp.ne.s32.totalorder %s91, %s93
      %p97 = scmp.eq.s32.totalorder %s15, 0
      %p98 = por %p96, %p97
      %p99 = scmp.ne.s32.totalorder %s91, %s93
      %p100 = scmp.eq.s32.totalorder %s20, 1
      %p101 = por %p99, %p100
      %p102 = scmp.ne.s32.totalorder %s93, %s94
      %p103 = scmp.eq.s32.totalorder %s20, 0
      %p104 = por %p102, %p103
      %p105 = scmp.ne.s32.totalorder %s93, %s94
      %p106 = scmp.eq.s32.totalorder %s21, 1
      %p107 = por %p105, %p106
      %p109 = scmp.ne.s32.totalorder %s94, %s108
      %p110 = scmp.eq.s32.totalorder %s21, 0
      %p111 = por %p109, %p110
      %s113 = sadd.s32 %s112, 1
      %p116 = scmp.eq.s32.totalorder %s15, 1
      %p117 = scmp.ne.s32.totalorder %s112, %s114
      %p118 = scmp.eq.s32.totalorder %s15, 0
      %p119 = por %p117, %p118
      %p120 = scmp.ne.s32.totalorder %s112, %s114
      %p121 = scmp.eq.s32.totalorder %s20, 1
      %p122 = por %p120, %p121
      %p123 = scmp.ne.s32.totalorder %s114, %s115
      %p124 = scmp.eq.s32.totalorder %s20, 0
      %p125 = por %p123, %p124
      %p126 = scmp.ne.s32.totalorder %s114, %s115
      %p127 = scmp.eq.s32.totalorder %s21, 1
      %p128 = por %p126, %p127
      %p130 = scmp.ne.s32.totalorder %s115, %s129
      %p131 = scmp.eq.s32.totalorder %s21, 0
      %p132 = por %p130, %p131
      %s134 = sadd.s32 %s133, 1
      %p137 = scmp.eq.s32.totalorder %s15, 1
      %p138 = scmp.ne.s32.totalorder %s133, %s135
      %p139 = scmp.eq.s32.totalorder %s15, 0
      %p140 = por %p138, %p139
      %p141 = scmp.ne.s32.totalorder %s133, %s135
      %p142 = scmp.eq.s32.totalorder %s20, 1
      %p143 = por %p141, %p142
      %p144 = scmp.ne.s32.totalorder %s135, %s136
      %p145 = scmp.eq.s32.totalorder %s20, 0
      %p146 = por %p144, %p145
      %p147 = scmp.ne.s32.totalorder %s135, %s136
      %p148 = scmp.eq.s32.totalorder %s21, 1
      %p149 = por %p147, %p148
      %p151 = scmp.ne.s32.totalorder %s136, %s150
      %p152 = scmp.eq.s32.totalorder %s21, 0
      %p153 = por %p151, %p152
      %s155 = sadd.s32 %s154, 1
      %p158 = scmp.eq.s32.totalorder %s15, 1
      %p159 = scmp.ne.s32.totalorder %s154, %s156
      %p160 = scmp.eq.s32.totalorder %s15, 0
      %p161 = por %p159, %p160
      %p162 = scmp.ne.s32.totalorder %s154, %s156
      %p163 = scmp.eq.s32.totalorder %s20, 1
      %p164 = por %p162, %p163
      %p165 = scmp.ne.s32.totalorder %s156, %s157
      %p166 = scmp.eq.s32.totalorder %s20, 0
      %p167 = por %p165, %p166
      %p168 = scmp.ne.s32.totalorder %s156, %s157
      %p169 = scmp.eq.s32.totalorder %s21, 1
      %p170 = por %p168, %p169
      %p172 = scmp.ne.s32.totalorder %s157, %s171
      %p173 = scmp.eq.s32.totalorder %s21, 0
      %p174 = por %p172, %p173
      %s176 = sadd.s32 %s175, 1
      %p179 = scmp.eq.s32.totalorder %s15, 1
      %p180 = scmp.ne.s32.totalorder %s175, %s177
      %p181 = scmp.eq.s32.totalorder %s15, 0
      %p182 = por %p180, %p181
      %p183 = scmp.ne.s32.totalorder %s175, %s177
      %p184 = scmp.eq.s32.totalorder %s20, 1
      %p185 = por %p183, %p184
      %p186 = scmp.ne.s32.totalorder %s177, %s178
      %p187 = scmp.eq.s32.totalorder %s20, 0
      %p188 = por %p186, %p187
      %p189 = scmp.ne.s32.totalorder %s177, %s178
      %p190 = scmp.eq.s32.totalorder %s21, 1
      %p191 = por %p189, %p190
      %p193 = scmp.ne.s32.totalorder %s178, %s192
      %p194 = scmp.eq.s32.totalorder %s21, 0
      %p195 = por %p193, %p194
      %s196 = ssub.s32 %s15, %s22
      %p197 = scmp.eq.s32.totalorder %s196, 0
      %s199 = sadd.s32 %s198, 1
      %s200 = scalar_select %p197, %s198, %s199
      %p203 = pneg %p197
      %p204 = scmp.eq.s32.totalorder %s15, 1
      %p205 = por %p203, %p204
      %p206 = scmp.ne.s32.totalorder %s198, %s201
      %p207 = scmp.eq.s32.totalorder %s15, 0
      %p208 = por %p206, %p207
      %p209 = scmp.ne.s32.totalorder %s198, %s201
      %p210 = scmp.eq.s32.totalorder %s20, 1
      %p211 = por %p209, %p210
      %p212 = scmp.ne.s32.totalorder %s201, %s202
      %p213 = scmp.eq.s32.totalorder %s20, 0
      %p214 = por %p212, %p213
      %p215 = scmp.ne.s32.totalorder %s201, %s202
      %p216 = scmp.eq.s32.totalorder %s21, 1
      %p217 = por %p215, %p216
      %p219 = scmp.ne.s32.totalorder %s202, %s218
      %p220 = scmp.eq.s32.totalorder %s21, 0
      %p221 = por %p219, %p220
      %p222 = scmp.le.s32.totalorder 1, %s15
      %p223 = scmp.lt.s32.totalorder %s15, 3
      %p224 = pnand %p222, %p223
      %p225 = pneg %p224
      // Predicated region
      $region9: #{convnext_block_with_concat.1} parent=5 // pred_check
        _
      $region10: #{convnext_block_with_concat.1} parent=5 // pred_check_branch
        %227 = sbr.rel (%p224) target = $region12
      $region11: #{convnext_block_with_concat.1} parent=5 // pred_region
        %s228 = ssub.s32 %s15, 1
        // Predicated region
        $region13: #{convnext_block_with_concat.1} parent=11 // pred_check
          %p229 = pneg %p62
        $region14: #{convnext_block_with_concat.1} parent=11 // pred_check_branch
          %231 = sbr.rel (%p229) target = $region16
        $region15: #{convnext_block_with_concat.1} parent=11 // pred_region
          _
        $region16: #{convnext_block_with_concat.1} parent=11 // pred_fallthru
          _
        // Predicated region
        $region17: #{convnext_block_with_concat.1} parent=11 // pred_check
          %p232 = pneg %p83
        $region18: #{convnext_block_with_concat.1} parent=11 // pred_check_branch
          %234 = sbr.rel (%p232) target = $region20
        $region19: #{convnext_block_with_concat.1} parent=11 // pred_region
          _
        $region20: #{convnext_block_with_concat.1} parent=11 // pred_fallthru
          _
        // Predicated region
        $region21: #{convnext_block_with_concat.1} parent=11 // pred_check
          %p235 = pneg %p104
        $region22: #{convnext_block_with_concat.1} parent=11 // pred_check_branch
          %237 = sbr.rel (%p235) target = $region24
        $region23: #{convnext_block_with_concat.1} parent=11 // pred_region
          _
        $region24: #{convnext_block_with_concat.1} parent=11 // pred_fallthru
          _
        // Predicated region
        $region25: #{convnext_block_with_concat.1} parent=11 // pred_check
          %p238 = pneg %p125
        $region26: #{convnext_block_with_concat.1} parent=11 // pred_check_branch
          %240 = sbr.rel (%p238) target = $region28
        $region27: #{convnext_block_with_concat.1} parent=11 // pred_region
          _
        $region28: #{convnext_block_with_concat.1} parent=11 // pred_fallthru
          _
        // Predicated region
        $region29: #{convnext_block_with_concat.1} parent=11 // pred_check
          %p241 = pneg %p146
        $region30: #{convnext_block_with_concat.1} parent=11 // pred_check_branch
          %243 = sbr.rel (%p241) target = $region32
        $region31: #{convnext_block_with_concat.1} parent=11 // pred_region
          _
        $region32: #{convnext_block_with_concat.1} parent=11 // pred_fallthru
          _
        // Predicated region
        $region33: #{convnext_block_with_concat.1} parent=11 // pred_check
          %p244 = pneg %p167
        $region34: #{convnext_block_with_concat.1} parent=11 // pred_check_branch
          %246 = sbr.rel (%p244) target = $region36
        $region35: #{convnext_block_with_concat.1} parent=11 // pred_region
          %s248 = ssub.s32 8192, 8192
          %249 = vsyncadd [#allocation3], %s248
          %s250 = sshll.u32 [#allocation2], 4
          %s251 = int_to_ptr.vmem [resolvable:$true] %s250
          %256 = dma.hbm_to_vmem [thread:$0]  %s6, 8192, %s251, [#allocation3], 128, 128, 8
        $region36: #{convnext_block_with_concat.1} parent=11 // pred_fallthru
          _
        // Predicated region
        $region37: #{convnext_block_with_concat.1} parent=11 // pred_check
          %p257 = pneg %p188
        $region38: #{convnext_block_with_concat.1} parent=11 // pred_check_branch
          %259 = sbr.rel (%p257) target = $region40
        $region39: #{convnext_block_with_concat.1} parent=11 // pred_region
          _
        $region40: #{convnext_block_with_concat.1} parent=11 // pred_fallthru
          _
      $region12: #{convnext_block_with_concat.1} parent=5 // pred_fallthru
        _
      %p260 = scmp.lt.s32.totalorder %s15, 2
      // Predicated region
      $region41: #{convnext_block_with_concat.1} parent=5 // pred_check
        %p261 = pneg %p260
      $region42: #{convnext_block_with_concat.1} parent=5 // pred_check_branch
        %263 = sbr.rel (%p261) target = $region44
      $region43: #{convnext_block_with_concat.1} parent=5 // pred_region
        // Predicated region
        $region45: #{convnext_block_with_concat.1} parent=43 // pred_check
          %p264 = pneg %p35
        $region46: #{convnext_block_with_concat.1} parent=43 // pred_check_branch
          %266 = sbr.rel (%p264) target = $region48
        $region47: #{convnext_block_with_concat.1} parent=43 // pred_region
          %p267 = scmp.lt.s32.totalorder %s15, 1
          %s268 = scalar_select %p267, %s15, 1
          %s269 = smul.addr %s268, 6
          %s270 = smul.addr %s269, 8
          %s271 = scalar_lea.vmem %s0, %s270
        $region48: #{convnext_block_with_concat.1} parent=43 // pred_fallthru
          _
      $region44: #{convnext_block_with_concat.1} parent=5 // pred_fallthru
        _
      %p272 = scmp.le.s32.totalorder 1, %s15
      %p273 = scmp.lt.s32.totalorder %s15, 3
      %p274 = pnand %p272, %p273
      %p275 = pneg %p274
      // Predicated region
      $region49: #{convnext_block_with_concat.1} parent=5 // pred_check
        _
      $region50: #{convnext_block_with_concat.1} parent=5 // pred_check_branch
        %277 = sbr.rel (%p274) target = $region52
      $region51: #{convnext_block_with_concat.1} parent=5 // pred_region
        %s278 = ssub.s32 %s15, 1
        // Predicated region
        $region53: #{convnext_block_with_concat.1} parent=51 // pred_check
          %p279 = pneg %p167
        $region54: #{convnext_block_with_concat.1} parent=51 // pred_check_branch
          %281 = sbr.rel (%p279) target = $region56
        $region55: #{convnext_block_with_concat.1} parent=51 // pred_region
          %282 = dma.done [#allocation3], 8192
        $region56: #{convnext_block_with_concat.1} parent=51 // pred_fallthru
          _
        %p283 = scmp.lt.s32.totalorder %s20, 1
        %s284 = scalar_select %p283, %s20, 1
        %s285 = smul.addr %s284, 6
        %s286 = smul.addr %s285, 8
        %s287 = scalar_lea.vmem %s0, %s286
        %p288 = pneg %p41
        %p289 = pneg %p38
        %p290 = pneg %p62
        %p291 = pneg %p59
        %p292 = pneg %p83
        %p293 = pneg %p80
        %p294 = pneg %p104
        %p295 = pneg %p101
        %p296 = pneg %p125
        %p297 = pneg %p122
        %p298 = pneg %p146
        %p299 = pneg %p143
        %p300 = pneg %p167
        %p301 = pneg %p164
        %p302 = pneg %p188
        %p303 = pneg %p185
        %p304 = pneg %p214
        %p305 = pneg %p211
        %p306 = scmp.lt.s32.totalorder %s20, 1
        %s307 = scalar_select %p306, %s20, 1
        %s308 = smul.addr %s307, 2
        %s309 = smul.addr %s308, 8
        %s310 = scalar_lea.vmem %s8, %s309
        %p311 = scmp.lt.s32.totalorder %s20, 1
        %s312 = scalar_select %p311, %s20, 1
        %s313 = smul.addr %s312, 6
        %s314 = smul.addr %s313, 8
        %s315 = scalar_lea.vmem %s0, %s314
        %p316 = scmp.lt.s32.totalorder %s20, 1
        %s317 = scalar_select %p316, %s20, 1
        %s318 = smul.addr %s317, 2
        %s319 = smul.addr %s318, 8
        %s320 = scalar_lea.vmem %s8, %s319
        %v321 = vld [vmem:[%s315] sm:$0xff]
        %v322 = vld [vmem:[%s315 + $0x8] sm:$0xff]
        %v323 = vld [vmem:[%s315 + $0x10] sm:$0xff]
        %v324 = vld [vmem:[%s315 + $0x18] sm:$0xff]
        %v325 = vld [vmem:[%s315 + $0x20] sm:$0x3f]
        %v326 = vld [vmem:[%s315 + $0x28] sm:$0x3f]
        %v327 = vld [vmem:[%s1] sm:$0xff]
        %v328 = vld [vmem:[%s1 + $0x8] sm:$0xff]
        %v329 = vld [vmem:[%s1 + $0x10] sm:$0xff]
        %v330 = vld [vmem:[%s1 + $0x18] sm:$0xff]
        %v331 = vld [vmem:[%s1 + $0x20] sm:$0xff]
        %v332 = vld [vmem:[%s1 + $0x28] sm:$0xff]
        %v333 = vld [vmem:[%s1 + $0x30] sm:$0xff]
        %v334 = vld [vmem:[%s1 + $0x38] sm:$0xff]
        %v335 = vld [vmem:[%s1 + $0x40] sm:$0xff]
        %v336 = vld [vmem:[%s1 + $0x48] sm:$0xff]
        %v337 = vld [vmem:[%s1 + $0x50] sm:$0xff]
        %v338 = vld [vmem:[%s1 + $0x58] sm:$0xff]
        %v339 = vld [vmem:[%s1 + $0x60] sm:$0xff]
        %v340 = vld [vmem:[%s1 + $0x68] sm:$0xff]
        %v341 = vld [vmem:[%s1 + $0x70] sm:$0xff]
        %v342 = vld [vmem:[%s1 + $0x78] sm:$0xff]
        %v343 = vld [vmem:[%s1 + $0x80] sm:$0xff]
        %v344 = vld [vmem:[%s1 + $0x88] sm:$0xff]
        %v345 = vld [vmem:[%s1 + $0x90] sm:$0xff]
        %v346 = vld [vmem:[%s1 + $0x98] sm:$0xff]
        %v347 = vld [vmem:[%s1 + $0xa0] sm:$0xff]
        %v348 = vld [vmem:[%s1 + $0xa8] sm:$0xff]
        %v349 = vld [vmem:[%s2] sm:$0x1]
        %v351 = vlaneseq
        %v352 = vshrl.u32 %v351, 7
        %v353 = vsub.s32 0, %v352
        %v354 = vrot.slane %v349, %v353
        %vm356 = vcmask 392192
        %v358 = vsel %vm356, %v322, 0
        %v361 = vsel %vm356, %v324, 0
        %363 = vmatprep.subr.mxu0 0.0
        %364 = vmatpush1.msra.mxu0 %v342
        %365 = vmatprep.subr.mxu0 0.0
        %366 = vmatpush1.msra.mxu0 %v341
        %367 = vmatprep.subr.mxu0 0.0
        %368 = vmatpush1.msra.mxu0 %v340
        %369 = vmatprep.subr.mxu0 0.0
        %370 = vmatpush1.msra.mxu0 %v339
        %371 = vmatprep.subr.mxu0 0.0
        %372 = vmatpush1.msra.mxu0 %v338
        %373 = vmatprep.subr.mxu0 0.0
        %374 = vmatpush1.msra.mxu0 %v337
        %375 = vmatprep.subr.mxu0 0.0
        %376 = vmatpush1.msra.mxu0 %v336
        %377 = vmatprep.subr.mxu0 0.0
        %378 = vmatpush1.msra.mxu0 %v335
        %379 = vmatprep.subr.mxu0 0.0
        %380 = vmatpush1.msra.mxu0 %v334
        %381 = vmatprep.subr.mxu0 0.0
        %382 = vmatpush1.msra.mxu0 %v333
        %383 = vmatprep.subr.mxu0 0.0
        %384 = vmatpush1.msra.mxu0 %v332
        %385 = vmatprep.subr.mxu0 0.0
        %386 = vmatpush1.msra.mxu0 %v331
        %387 = vmatprep.subr.mxu0 0.0
        %388 = vmatpush1.msra.mxu0 %v330
        %389 = vmatprep.subr.mxu0 0.0
        %390 = vmatpush1.msra.mxu0 %v329
        %391 = vmatprep.subr.mxu0 0.0
        %392 = vmatpush1.msra.mxu0 %v328
        %393 = vmatprep.subr.mxu0 0.0
        %394 = vmatpush1.msra.mxu0 %v327
        %395 = vmatprep.subr.mxu0 0.0
        %396 = vmatpush2.msra.mxu0 0.0
        %397 = vmatprep.subr.mxu0 0.0
        %398 = vmatpush2.msra.mxu0 0.0
        %399 = vmatprep.subr.mxu0 0.0
        %400 = vmatpush2.msra.mxu0 0.0
        %401 = vmatprep.subr.mxu0 0.0
        %402 = vmatpush2.msra.mxu0 0.0
        %403 = vmatprep.subr.mxu0 0.0
        %404 = vmatpush2.msra.mxu0 0.0
        %405 = vmatprep.subr.mxu0 0.0
        %406 = vmatpush2.msra.mxu0 0.0
        %407 = vmatprep.subr.mxu0 0.0
        %408 = vmatpush2.msra.mxu0 0.0
        %409 = vmatprep.subr.mxu0 0.0
        %410 = vmatpush2.msra.mxu0 0.0
        %411 = vmatprep.subr.mxu0 0.0
        %412 = vmatpush2.msra.mxu0 0.0
        %413 = vmatprep.subr.mxu0 0.0
        %414 = vmatpush2.msra.mxu0 0.0
        %415 = vmatprep.subr.mxu0 0.0
        %416 = vmatpush2.msra.mxu0 %v348
        %417 = vmatprep.subr.mxu0 0.0
        %418 = vmatpush2.msra.mxu0 %v347
        %419 = vmatprep.subr.mxu0 0.0
        %420 = vmatpush2.msra.mxu0 %v346
        %421 = vmatprep.subr.mxu0 0.0
        %422 = vmatpush2.msra.mxu0 %v345
        %423 = vmatprep.subr.mxu0 0.0
        %424 = vmatpush2.msra.mxu0 %v344
        %425 = vmatprep.subr.mxu0 0.0
        %426 = vmatpush2.msra.mxu0 %v343
        %427 = vmatprep.mubr.f32.mxu0 %v358
        %428 = vmatmul.mubr.f32.gmra.mxu0 %v321
        %v429 = vpop.f32.mrf.mxu0
        %v430 = vadd.f32 %v354, %v429
        %v431 = vpop.f32.mrf.mxu0
        %432 = vmatprep.mubr.f32.mxu0 %v361
        %433 = vmatmul.mubr.f32.gmra.mxu0 %v323
        %v434 = vpop.f32.mrf.mxu0
        %v435 = vadd.f32 %v354, %v434
        %v436 = vpop.f32.mrf.mxu0
        %437 = vdwg.mxu0
        %s438 = scalar_lea.vmem %s1, 176
        %v439 = vld [vmem:[%s438] sm:$0xff]
        %v440 = vld [vmem:[%s438 + $0x8] sm:$0xff]
        %v441 = vld [vmem:[%s438 + $0x10] sm:$0xff]
        %v442 = vld [vmem:[%s438 + $0x18] sm:$0xff]
        %v443 = vld [vmem:[%s438 + $0x20] sm:$0xff]
        %v444 = vld [vmem:[%s438 + $0x28] sm:$0xff]
        %v445 = vld [vmem:[%s438 + $0x30] sm:$0xff]
        %v446 = vld [vmem:[%s438 + $0x38] sm:$0xff]
        %v447 = vld [vmem:[%s438 + $0x40] sm:$0xff]
        %v448 = vld [vmem:[%s438 + $0x48] sm:$0xff]
        %v449 = vld [vmem:[%s438 + $0x50] sm:$0xff]
        %v450 = vld [vmem:[%s438 + $0x58] sm:$0xff]
        %v451 = vld [vmem:[%s438 + $0x60] sm:$0xff]
        %v452 = vld [vmem:[%s438 + $0x68] sm:$0xff]
        %v453 = vld [vmem:[%s438 + $0x70] sm:$0xff]
        %v454 = vld [vmem:[%s438 + $0x78] sm:$0xff]
        %v455 = vld [vmem:[%s438 + $0x80] sm:$0xff]
        %v456 = vld [vmem:[%s438 + $0x88] sm:$0xff]
        %v457 = vld [vmem:[%s438 + $0x90] sm:$0xff]
        %v458 = vld [vmem:[%s438 + $0x98] sm:$0xff]
        %v459 = vld [vmem:[%s438 + $0xa0] sm:$0xff]
        %v460 = vld [vmem:[%s438 + $0xa8] sm:$0xff]
        %vm465 = vcmask 1046528
        %v466 = vrot.slane %v321, 1
        %v467 = vrot.slane %v323, 1
        %v468 = vsel %vm465, %v466, %v467
        %v469 = vrot.slane %v322, 1
        %v470 = vrot.slane %v324, 1
        %v471 = vsel %vm465, %v469, %v470
        %v472 = vrot.slane %v325, 1
        %v473 = vsel %vm465, %v467, %v472
        %v474 = vrot.slane %v326, 1
        %v475 = vsel %vm465, %v470, %v474
        %v478 = vsel %vm356, %v471, 0
        %v480 = vsel %vm356, %v475, 0
        %482 = vmatprep.subr.mxu0 0.0
        %483 = vmatpush1.msra.mxu0 %v454
        %484 = vmatprep.subr.mxu0 0.0
        %485 = vmatpush1.msra.mxu0 %v453
        %486 = vmatprep.subr.mxu0 0.0
        %487 = vmatpush1.msra.mxu0 %v452
        %488 = vmatprep.subr.mxu0 0.0
        %489 = vmatpush1.msra.mxu0 %v451
        %490 = vmatprep.subr.mxu0 0.0
        %491 = vmatpush1.msra.mxu0 %v450
        %492 = vmatprep.subr.mxu0 0.0
        %493 = vmatpush1.msra.mxu0 %v449
        %494 = vmatprep.subr.mxu0 0.0
        %495 = vmatpush1.msra.mxu0 %v448
        %496 = vmatprep.subr.mxu0 0.0
        %497 = vmatpush1.msra.mxu0 %v447
        %498 = vmatprep.subr.mxu0 0.0
        %499 = vmatpush1.msra.mxu0 %v446
        %500 = vmatprep.subr.mxu0 0.0
        %501 = vmatpush1.msra.mxu0 %v445
        %502 = vmatprep.subr.mxu0 0.0
        %503 = vmatpush1.msra.mxu0 %v444
        %504 = vmatprep.subr.mxu0 0.0
        %505 = vmatpush1.msra.mxu0 %v443
        %506 = vmatprep.subr.mxu0 0.0
        %507 = vmatpush1.msra.mxu0 %v442
        %508 = vmatprep.subr.mxu0 0.0
        %509 = vmatpush1.msra.mxu0 %v441
        %510 = vmatprep.subr.mxu0 0.0
        %511 = vmatpush1.msra.mxu0 %v440
        %512 = vmatprep.subr.mxu0 0.0
        %513 = vmatpush1.msra.mxu0 %v439
        %514 = vmatprep.subr.mxu0 0.0
        %515 = vmatpush2.msra.mxu0 0.0
        %516 = vmatprep.subr.mxu0 0.0
        %517 = vmatpush2.msra.mxu0 0.0
        %518 = vmatprep.subr.mxu0 0.0
        %519 = vmatpush2.msra.mxu0 0.0
        %520 = vmatprep.subr.mxu0 0.0
        %521 = vmatpush2.msra.mxu0 0.0
        %522 = vmatprep.subr.mxu0 0.0
        %523 = vmatpush2.msra.mxu0 0.0
        %524 = vmatprep.subr.mxu0 0.0
        %525 = vmatpush2.msra.mxu0 0.0
        %526 = vmatprep.subr.mxu0 0.0
        %527 = vmatpush2.msra.mxu0 0.0
        %528 = vmatprep.subr.mxu0 0.0
        %529 = vmatpush2.msra.mxu0 0.0
        %530 = vmatprep.subr.mxu0 0.0
        %531 = vmatpush2.msra.mxu0 0.0
        %532 = vmatprep.subr.mxu0 0.0
        %533 = vmatpush2.msra.mxu0 0.0
        %534 = vmatprep.subr.mxu0 0.0
        %535 = vmatpush2.msra.mxu0 %v460
        %536 = vmatprep.subr.mxu0 0.0
        %537 = vmatpush2.msra.mxu0 %v459
        %538 = vmatprep.subr.mxu0 0.0
        %539 = vmatpush2.msra.mxu0 %v458
        %540 = vmatprep.subr.mxu0 0.0
        %541 = vmatpush2.msra.mxu0 %v457
        %542 = vmatprep.subr.mxu0 0.0
        %543 = vmatpush2.msra.mxu0 %v456
        %544 = vmatprep.subr.mxu0 0.0
        %545 = vmatpush2.msra.mxu0 %v455
        %546 = vmatprep.mubr.f32.mxu0 %v478
        %547 = vmatmul.mubr.f32.gmra.mxu0 %v468
        %v548 = vpop.f32.mrf.mxu0
        %v549 = vadd.f32 0.0, %v548
        %v550 = vpop.f32.mrf.mxu0
        %551 = vmatprep.mubr.f32.mxu0 %v480
        %552 = vmatmul.mubr.f32.gmra.mxu0 %v473
        %v553 = vpop.f32.mrf.mxu0
        %v554 = vadd.f32 0.0, %v553
        %v555 = vpop.f32.mrf.mxu0
        %556 = vdwg.mxu0
        %v557 = vadd.f32 %v430, %v549
        %v558 = vadd.f32 %v435, %v554
        %s559 = scalar_lea.vmem %s1, 352
        %v560 = vld [vmem:[%s559] sm:$0xff]
        %v561 = vld [vmem:[%s559 + $0x8] sm:$0xff]
        %v562 = vld [vmem:[%s559 + $0x10] sm:$0xff]
        %v563 = vld [vmem:[%s559 + $0x18] sm:$0xff]
        %v564 = vld [vmem:[%s559 + $0x20] sm:$0xff]
        %v565 = vld [vmem:[%s559 + $0x28] sm:$0xff]
        %v566 = vld [vmem:[%s559 + $0x30] sm:$0xff]
        %v567 = vld [vmem:[%s559 + $0x38] sm:$0xff]
        %v568 = vld [vmem:[%s559 + $0x40] sm:$0xff]
        %v569 = vld [vmem:[%s559 + $0x48] sm:$0xff]
        %v570 = vld [vmem:[%s559 + $0x50] sm:$0xff]
        %v571 = vld [vmem:[%s559 + $0x58] sm:$0xff]
        %v572 = vld [vmem:[%s559 + $0x60] sm:$0xff]
        %v573 = vld [vmem:[%s559 + $0x68] sm:$0xff]
        %v574 = vld [vmem:[%s559 + $0x70] sm:$0xff]
        %v575 = vld [vmem:[%s559 + $0x78] sm:$0xff]
        %v576 = vld [vmem:[%s559 + $0x80] sm:$0xff]
        %v577 = vld [vmem:[%s559 + $0x88] sm:$0xff]
        %v578 = vld [vmem:[%s559 + $0x90] sm:$0xff]
        %v579 = vld [vmem:[%s559 + $0x98] sm:$0xff]
        %v580 = vld [vmem:[%s559 + $0xa0] sm:$0xff]
        %v581 = vld [vmem:[%s559 + $0xa8] sm:$0xff]
        %vm582 = vcmask 1045504
        %v583 = vrot.slane %v321, 2
        %v584 = vrot.slane %v323, 2
        %v585 = vsel %vm582, %v583, %v584
        %v586 = vrot.slane %v322, 2
        %v587 = vrot.slane %v324, 2
        %v588 = vsel %vm582, %v586, %v587
        %v589 = vrot.slane %v325, 2
        %v590 = vsel %vm582, %v584, %v589
        %v591 = vrot.slane %v326, 2
        %v592 = vsel %vm582, %v587, %v591
        %v595 = vsel %vm356, %v588, 0
        %v597 = vsel %vm356, %v592, 0
        %599 = vmatprep.subr.mxu0 0.0
        %600 = vmatpush1.msra.mxu0 %v575
        %601 = vmatprep.subr.mxu0 0.0
        %602 = vmatpush1.msra.mxu0 %v574
        %603 = vmatprep.subr.mxu0 0.0
        %604 = vmatpush1.msra.mxu0 %v573
        %605 = vmatprep.subr.mxu0 0.0
        %606 = vmatpush1.msra.mxu0 %v572
        %607 = vmatprep.subr.mxu0 0.0
        %608 = vmatpush1.msra.mxu0 %v571
        %609 = vmatprep.subr.mxu0 0.0
        %610 = vmatpush1.msra.mxu0 %v570
        %611 = vmatprep.subr.mxu0 0.0
        %612 = vmatpush1.msra.mxu0 %v569
        %613 = vmatprep.subr.mxu0 0.0
        %614 = vmatpush1.msra.mxu0 %v568
        %615 = vmatprep.subr.mxu0 0.0
        %616 = vmatpush1.msra.mxu0 %v567
        %617 = vmatprep.subr.mxu0 0.0
        %618 = vmatpush1.msra.mxu0 %v566
        %619 = vmatprep.subr.mxu0 0.0
        %620 = vmatpush1.msra.mxu0 %v565
        %621 = vmatprep.subr.mxu0 0.0
        %622 = vmatpush1.msra.mxu0 %v564
        %623 = vmatprep.subr.mxu0 0.0
        %624 = vmatpush1.msra.mxu0 %v563
        %625 = vmatprep.subr.mxu0 0.0
        %626 = vmatpush1.msra.mxu0 %v562
        %627 = vmatprep.subr.mxu0 0.0
        %628 = vmatpush1.msra.mxu0 %v561
        %629 = vmatprep.subr.mxu0 0.0
        %630 = vmatpush1.msra.mxu0 %v560
        %631 = vmatprep.subr.mxu0 0.0
        %632 = vmatpush2.msra.mxu0 0.0
        %633 = vmatprep.subr.mxu0 0.0
        %634 = vmatpush2.msra.mxu0 0.0
        %635 = vmatprep.subr.mxu0 0.0
        %636 = vmatpush2.msra.mxu0 0.0
        %637 = vmatprep.subr.mxu0 0.0
        %638 = vmatpush2.msra.mxu0 0.0
        %639 = vmatprep.subr.mxu0 0.0
        %640 = vmatpush2.msra.mxu0 0.0
        %641 = vmatprep.subr.mxu0 0.0
        %642 = vmatpush2.msra.mxu0 0.0
        %643 = vmatprep.subr.mxu0 0.0
        %644 = vmatpush2.msra.mxu0 0.0
        %645 = vmatprep.subr.mxu0 0.0
        %646 = vmatpush2.msra.mxu0 0.0
        %647 = vmatprep.subr.mxu0 0.0
        %648 = vmatpush2.msra.mxu0 0.0
        %649 = vmatprep.subr.mxu0 0.0
        %650 = vmatpush2.msra.mxu0 0.0
        %651 = vmatprep.subr.mxu0 0.0
        %652 = vmatpush2.msra.mxu0 %v581
        %653 = vmatprep.subr.mxu0 0.0
        %654 = vmatpush2.msra.mxu0 %v580
        %655 = vmatprep.subr.mxu0 0.0
        %656 = vmatpush2.msra.mxu0 %v579
        %657 = vmatprep.subr.mxu0 0.0
        %658 = vmatpush2.msra.mxu0 %v578
        %659 = vmatprep.subr.mxu0 0.0
        %660 = vmatpush2.msra.mxu0 %v577
        %661 = vmatprep.subr.mxu0 0.0
        %662 = vmatpush2.msra.mxu0 %v576
        %663 = vmatprep.mubr.f32.mxu0 %v595
        %664 = vmatmul.mubr.f32.gmra.mxu0 %v585
        %v665 = vpop.f32.mrf.mxu0
        %v666 = vadd.f32 0.0, %v665
        %v667 = vpop.f32.mrf.mxu0
        %668 = vmatprep.mubr.f32.mxu0 %v597
        %669 = vmatmul.mubr.f32.gmra.mxu0 %v590
        %v670 = vpop.f32.mrf.mxu0
        %v671 = vadd.f32 0.0, %v670
        %v672 = vpop.f32.mrf.mxu0
        %673 = vdwg.mxu0
        %v674 = vadd.f32 %v557, %v666
        %v675 = vadd.f32 %v558, %v671
        %s676 = scalar_lea.vmem %s1, 528
        %v677 = vld [vmem:[%s676] sm:$0xff]
        %v678 = vld [vmem:[%s676 + $0x8] sm:$0xff]
        %v679 = vld [vmem:[%s676 + $0x10] sm:$0xff]
        %v680 = vld [vmem:[%s676 + $0x18] sm:$0xff]
        %v681 = vld [vmem:[%s676 + $0x20] sm:$0xff]
        %v682 = vld [vmem:[%s676 + $0x28] sm:$0xff]
        %v683 = vld [vmem:[%s676 + $0x30] sm:$0xff]
        %v684 = vld [vmem:[%s676 + $0x38] sm:$0xff]
        %v685 = vld [vmem:[%s676 + $0x40] sm:$0xff]
        %v686 = vld [vmem:[%s676 + $0x48] sm:$0xff]
        %v687 = vld [vmem:[%s676 + $0x50] sm:$0xff]
        %v688 = vld [vmem:[%s676 + $0x58] sm:$0xff]
        %v689 = vld [vmem:[%s676 + $0x60] sm:$0xff]
        %v690 = vld [vmem:[%s676 + $0x68] sm:$0xff]
        %v691 = vld [vmem:[%s676 + $0x70] sm:$0xff]
        %v692 = vld [vmem:[%s676 + $0x78] sm:$0xff]
        %v693 = vld [vmem:[%s676 + $0x80] sm:$0xff]
        %v694 = vld [vmem:[%s676 + $0x88] sm:$0xff]
        %v695 = vld [vmem:[%s676 + $0x90] sm:$0xff]
        %v696 = vld [vmem:[%s676 + $0x98] sm:$0xff]
        %v697 = vld [vmem:[%s676 + $0xa0] sm:$0xff]
        %v698 = vld [vmem:[%s676 + $0xa8] sm:$0xff]
        %vm699 = vcmask 1044480
        %v700 = vrot.slane %v321, 3
        %v701 = vrot.slane %v323, 3
        %v702 = vsel %vm699, %v700, %v701
        %v703 = vrot.slane %v322, 3
        %v704 = vrot.slane %v324, 3
        %v705 = vsel %vm699, %v703, %v704
        %v706 = vrot.slane %v325, 3
        %v707 = vsel %vm699, %v701, %v706
        %v708 = vrot.slane %v326, 3
        %v709 = vsel %vm699, %v704, %v708
        %v712 = vsel %vm356, %v705, 0
        %v714 = vsel %vm356, %v709, 0
        %716 = vmatprep.subr.mxu0 0.0
        %717 = vmatpush1.msra.mxu0 %v692
        %718 = vmatprep.subr.mxu0 0.0
        %719 = vmatpush1.msra.mxu0 %v691
        %720 = vmatprep.subr.mxu0 0.0
        %721 = vmatpush1.msra.mxu0 %v690
        %722 = vmatprep.subr.mxu0 0.0
        %723 = vmatpush1.msra.mxu0 %v689
        %724 = vmatprep.subr.mxu0 0.0
        %725 = vmatpush1.msra.mxu0 %v688
        %726 = vmatprep.subr.mxu0 0.0
        %727 = vmatpush1.msra.mxu0 %v687
        %728 = vmatprep.subr.mxu0 0.0
        %729 = vmatpush1.msra.mxu0 %v686
        %730 = vmatprep.subr.mxu0 0.0
        %731 = vmatpush1.msra.mxu0 %v685
        %732 = vmatprep.subr.mxu0 0.0
        %733 = vmatpush1.msra.mxu0 %v684
        %734 = vmatprep.subr.mxu0 0.0
        %735 = vmatpush1.msra.mxu0 %v683
        %736 = vmatprep.subr.mxu0 0.0
        %737 = vmatpush1.msra.mxu0 %v682
        %738 = vmatprep.subr.mxu0 0.0
        %739 = vmatpush1.msra.mxu0 %v681
        %740 = vmatprep.subr.mxu0 0.0
        %741 = vmatpush1.msra.mxu0 %v680
        %742 = vmatprep.subr.mxu0 0.0
        %743 = vmatpush1.msra.mxu0 %v679
        %744 = vmatprep.subr.mxu0 0.0
        %745 = vmatpush1.msra.mxu0 %v678
        %746 = vmatprep.subr.mxu0 0.0
        %747 = vmatpush1.msra.mxu0 %v677
        %748 = vmatprep.subr.mxu0 0.0
        %749 = vmatpush2.msra.mxu0 0.0
        %750 = vmatprep.subr.mxu0 0.0
        %751 = vmatpush2.msra.mxu0 0.0
        %752 = vmatprep.subr.mxu0 0.0
        %753 = vmatpush2.msra.mxu0 0.0
        %754 = vmatprep.subr.mxu0 0.0
        %755 = vmatpush2.msra.mxu0 0.0
        %756 = vmatprep.subr.mxu0 0.0
        %757 = vmatpush2.msra.mxu0 0.0
        %758 = vmatprep.subr.mxu0 0.0
        %759 = vmatpush2.msra.mxu0 0.0
        %760 = vmatprep.subr.mxu0 0.0
        %761 = vmatpush2.msra.mxu0 0.0
        %762 = vmatprep.subr.mxu0 0.0
        %763 = vmatpush2.msra.mxu0 0.0
        %764 = vmatprep.subr.mxu0 0.0
        %765 = vmatpush2.msra.mxu0 0.0
        %766 = vmatprep.subr.mxu0 0.0
        %767 = vmatpush2.msra.mxu0 0.0
        %768 = vmatprep.subr.mxu0 0.0
        %769 = vmatpush2.msra.mxu0 %v698
        %770 = vmatprep.subr.mxu0 0.0
        %771 = vmatpush2.msra.mxu0 %v697
        %772 = vmatprep.subr.mxu0 0.0
        %773 = vmatpush2.msra.mxu0 %v696
        %774 = vmatprep.subr.mxu0 0.0
        %775 = vmatpush2.msra.mxu0 %v695
        %776 = vmatprep.subr.mxu0 0.0
        %777 = vmatpush2.msra.mxu0 %v694
        %778 = vmatprep.subr.mxu0 0.0
        %779 = vmatpush2.msra.mxu0 %v693
        %780 = vmatprep.mubr.f32.mxu0 %v712
        %781 = vmatmul.mubr.f32.gmra.mxu0 %v702
        %v782 = vpop.f32.mrf.mxu0
        %v783 = vadd.f32 0.0, %v782
        %v784 = vpop.f32.mrf.mxu0
        %785 = vmatprep.mubr.f32.mxu0 %v714
        %786 = vmatmul.mubr.f32.gmra.mxu0 %v707
        %v787 = vpop.f32.mrf.mxu0
        %v788 = vadd.f32 0.0, %v787
        %v789 = vpop.f32.mrf.mxu0
        %790 = vdwg.mxu0
        %v791 = vadd.f32 %v674, %v783
        %v792 = vadd.f32 %v675, %v788
        %s793 = scalar_lea.vmem %s1, 704
        %v794 = vld [vmem:[%s793] sm:$0xff]
        %v795 = vld [vmem:[%s793 + $0x8] sm:$0xff]
        %v796 = vld [vmem:[%s793 + $0x10] sm:$0xff]
        %v797 = vld [vmem:[%s793 + $0x18] sm:$0xff]
        %v798 = vld [vmem:[%s793 + $0x20] sm:$0xff]
        %v799 = vld [vmem:[%s793 + $0x28] sm:$0xff]
        %v800 = vld [vmem:[%s793 + $0x30] sm:$0xff]
        %v801 = vld [vmem:[%s793 + $0x38] sm:$0xff]
        %v802 = vld [vmem:[%s793 + $0x40] sm:$0xff]
        %v803 = vld [vmem:[%s793 + $0x48] sm:$0xff]
        %v804 = vld [vmem:[%s793 + $0x50] sm:$0xff]
        %v805 = vld [vmem:[%s793 + $0x58] sm:$0xff]
        %v806 = vld [vmem:[%s793 + $0x60] sm:$0xff]
        %v807 = vld [vmem:[%s793 + $0x68] sm:$0xff]
        %v808 = vld [vmem:[%s793 + $0x70] sm:$0xff]
        %v809 = vld [vmem:[%s793 + $0x78] sm:$0xff]
        %v810 = vld [vmem:[%s793 + $0x80] sm:$0xff]
        %v811 = vld [vmem:[%s793 + $0x88] sm:$0xff]
        %v812 = vld [vmem:[%s793 + $0x90] sm:$0xff]
        %v813 = vld [vmem:[%s793 + $0x98] sm:$0xff]
        %v814 = vld [vmem:[%s793 + $0xa0] sm:$0xff]
        %v815 = vld [vmem:[%s793 + $0xa8] sm:$0xff]
        %vm816 = vcmask 1043456
        %v817 = vrot.slane %v321, 4
        %v818 = vrot.slane %v323, 4
        %v819 = vsel %vm816, %v817, %v818
        %v820 = vrot.slane %v322, 4
        %v821 = vrot.slane %v324, 4
        %v822 = vsel %vm816, %v820, %v821
        %v823 = vrot.slane %v325, 4
        %v824 = vsel %vm816, %v818, %v823
        %v825 = vrot.slane %v326, 4
        %v826 = vsel %vm816, %v821, %v825
        %v829 = vsel %vm356, %v822, 0
        %v831 = vsel %vm356, %v826, 0
        %833 = vmatprep.subr.mxu0 0.0
        %834 = vmatpush1.msra.mxu0 %v809
        %835 = vmatprep.subr.mxu0 0.0
        %836 = vmatpush1.msra.mxu0 %v808
        %837 = vmatprep.subr.mxu0 0.0
        %838 = vmatpush1.msra.mxu0 %v807
        %839 = vmatprep.subr.mxu0 0.0
        %840 = vmatpush1.msra.mxu0 %v806
        %841 = vmatprep.subr.mxu0 0.0
        %842 = vmatpush1.msra.mxu0 %v805
        %843 = vmatprep.subr.mxu0 0.0
        %844 = vmatpush1.msra.mxu0 %v804
        %845 = vmatprep.subr.mxu0 0.0
        %846 = vmatpush1.msra.mxu0 %v803
        %847 = vmatprep.subr.mxu0 0.0
        %848 = vmatpush1.msra.mxu0 %v802
        %849 = vmatprep.subr.mxu0 0.0
        %850 = vmatpush1.msra.mxu0 %v801
        %851 = vmatprep.subr.mxu0 0.0
        %852 = vmatpush1.msra.mxu0 %v800
        %853 = vmatprep.subr.mxu0 0.0
        %854 = vmatpush1.msra.mxu0 %v799
        %855 = vmatprep.subr.mxu0 0.0
        %856 = vmatpush1.msra.mxu0 %v798
        %857 = vmatprep.subr.mxu0 0.0
        %858 = vmatpush1.msra.mxu0 %v797
        %859 = vmatprep.subr.mxu0 0.0
        %860 = vmatpush1.msra.mxu0 %v796
        %861 = vmatprep.subr.mxu0 0.0
        %862 = vmatpush1.msra.mxu0 %v795
        %863 = vmatprep.subr.mxu0 0.0
        %864 = vmatpush1.msra.mxu0 %v794
        %865 = vmatprep.subr.mxu0 0.0
        %866 = vmatpush2.msra.mxu0 0.0
        %867 = vmatprep.subr.mxu0 0.0
        %868 = vmatpush2.msra.mxu0 0.0
        %869 = vmatprep.subr.mxu0 0.0
        %870 = vmatpush2.msra.mxu0 0.0
        %871 = vmatprep.subr.mxu0 0.0
        %872 = vmatpush2.msra.mxu0 0.0
        %873 = vmatprep.subr.mxu0 0.0
        %874 = vmatpush2.msra.mxu0 0.0
        %875 = vmatprep.subr.mxu0 0.0
        %876 = vmatpush2.msra.mxu0 0.0
        %877 = vmatprep.subr.mxu0 0.0
        %878 = vmatpush2.msra.mxu0 0.0
        %879 = vmatprep.subr.mxu0 0.0
        %880 = vmatpush2.msra.mxu0 0.0
        %881 = vmatprep.subr.mxu0 0.0
        %882 = vmatpush2.msra.mxu0 0.0
        %883 = vmatprep.subr.mxu0 0.0
        %884 = vmatpush2.msra.mxu0 0.0
        %885 = vmatprep.subr.mxu0 0.0
        %886 = vmatpush2.msra.mxu0 %v815
        %887 = vmatprep.subr.mxu0 0.0
        %888 = vmatpush2.msra.mxu0 %v814
        %889 = vmatprep.subr.mxu0 0.0
        %890 = vmatpush2.msra.mxu0 %v813
        %891 = vmatprep.subr.mxu0 0.0
        %892 = vmatpush2.msra.mxu0 %v812
        %893 = vmatprep.subr.mxu0 0.0
        %894 = vmatpush2.msra.mxu0 %v811
        %895 = vmatprep.subr.mxu0 0.0
        %896 = vmatpush2.msra.mxu0 %v810
        %897 = vmatprep.mubr.f32.mxu0 %v829
        %898 = vmatmul.mubr.f32.gmra.mxu0 %v819
        %v899 = vpop.f32.mrf.mxu0
        %v900 = vadd.f32 0.0, %v899
        %v901 = vpop.f32.mrf.mxu0
        %902 = vmatprep.mubr.f32.mxu0 %v831
        %903 = vmatmul.mubr.f32.gmra.mxu0 %v824
        %v904 = vpop.f32.mrf.mxu0
        %v905 = vadd.f32 0.0, %v904
        %v906 = vpop.f32.mrf.mxu0
        %907 = vdwg.mxu0
        %v908 = vadd.f32 %v791, %v900
        %v909 = vadd.f32 %v792, %v905
        %s910 = scalar_lea.vmem %s1, 880
        %v911 = vld [vmem:[%s910] sm:$0xff]
        %v912 = vld [vmem:[%s910 + $0x8] sm:$0xff]
        %v913 = vld [vmem:[%s910 + $0x10] sm:$0xff]
        %v914 = vld [vmem:[%s910 + $0x18] sm:$0xff]
        %v915 = vld [vmem:[%s910 + $0x20] sm:$0xff]
        %v916 = vld [vmem:[%s910 + $0x28] sm:$0xff]
        %v917 = vld [vmem:[%s910 + $0x30] sm:$0xff]
        %v918 = vld [vmem:[%s910 + $0x38] sm:$0xff]
        %v919 = vld [vmem:[%s910 + $0x40] sm:$0xff]
        %v920 = vld [vmem:[%s910 + $0x48] sm:$0xff]
        %v921 = vld [vmem:[%s910 + $0x50] sm:$0xff]
        %v922 = vld [vmem:[%s910 + $0x58] sm:$0xff]
        %v923 = vld [vmem:[%s910 + $0x60] sm:$0xff]
        %v924 = vld [vmem:[%s910 + $0x68] sm:$0xff]
        %v925 = vld [vmem:[%s910 + $0x70] sm:$0xff]
        %v926 = vld [vmem:[%s910 + $0x78] sm:$0xff]
        %v927 = vld [vmem:[%s910 + $0x80] sm:$0xff]
        %v928 = vld [vmem:[%s910 + $0x88] sm:$0xff]
        %v929 = vld [vmem:[%s910 + $0x90] sm:$0xff]
        %v930 = vld [vmem:[%s910 + $0x98] sm:$0xff]
        %v931 = vld [vmem:[%s910 + $0xa0] sm:$0xff]
        %v932 = vld [vmem:[%s910 + $0xa8] sm:$0xff]
        %vm933 = vcmask 1042432
        %v934 = vrot.slane %v321, 5
        %v935 = vrot.slane %v323, 5
        %v936 = vsel %vm933, %v934, %v935
        %v937 = vrot.slane %v322, 5
        %v938 = vrot.slane %v324, 5
        %v939 = vsel %vm933, %v937, %v938
        %v940 = vrot.slane %v325, 5
        %v941 = vsel %vm933, %v935, %v940
        %v942 = vrot.slane %v326, 5
        %v943 = vsel %vm933, %v938, %v942
        %v946 = vsel %vm356, %v939, 0
        %v948 = vsel %vm356, %v943, 0
        %950 = vmatprep.subr.mxu0 0.0
        %951 = vmatpush1.msra.mxu0 %v926
        %952 = vmatprep.subr.mxu0 0.0
        %953 = vmatpush1.msra.mxu0 %v925
        %954 = vmatprep.subr.mxu0 0.0
        %955 = vmatpush1.msra.mxu0 %v924
        %956 = vmatprep.subr.mxu0 0.0
        %957 = vmatpush1.msra.mxu0 %v923
        %958 = vmatprep.subr.mxu0 0.0
        %959 = vmatpush1.msra.mxu0 %v922
        %960 = vmatprep.subr.mxu0 0.0
        %961 = vmatpush1.msra.mxu0 %v921
        %962 = vmatprep.subr.mxu0 0.0
        %963 = vmatpush1.msra.mxu0 %v920
        %964 = vmatprep.subr.mxu0 0.0
        %965 = vmatpush1.msra.mxu0 %v919
        %966 = vmatprep.subr.mxu0 0.0
        %967 = vmatpush1.msra.mxu0 %v918
        %968 = vmatprep.subr.mxu0 0.0
        %969 = vmatpush1.msra.mxu0 %v917
        %970 = vmatprep.subr.mxu0 0.0
        %971 = vmatpush1.msra.mxu0 %v916
        %972 = vmatprep.subr.mxu0 0.0
        %973 = vmatpush1.msra.mxu0 %v915
        %974 = vmatprep.subr.mxu0 0.0
        %975 = vmatpush1.msra.mxu0 %v914
        %976 = vmatprep.subr.mxu0 0.0
        %977 = vmatpush1.msra.mxu0 %v913
        %978 = vmatprep.subr.mxu0 0.0
        %979 = vmatpush1.msra.mxu0 %v912
        %980 = vmatprep.subr.mxu0 0.0
        %981 = vmatpush1.msra.mxu0 %v911
        %982 = vmatprep.subr.mxu0 0.0
        %983 = vmatpush2.msra.mxu0 0.0
        %984 = vmatprep.subr.mxu0 0.0
        %985 = vmatpush2.msra.mxu0 0.0
        %986 = vmatprep.subr.mxu0 0.0
        %987 = vmatpush2.msra.mxu0 0.0
        %988 = vmatprep.subr.mxu0 0.0
        %989 = vmatpush2.msra.mxu0 0.0
        %990 = vmatprep.subr.mxu0 0.0
        %991 = vmatpush2.msra.mxu0 0.0
        %992 = vmatprep.subr.mxu0 0.0
        %993 = vmatpush2.msra.mxu0 0.0
        %994 = vmatprep.subr.mxu0 0.0
        %995 = vmatpush2.msra.mxu0 0.0
        %996 = vmatprep.subr.mxu0 0.0
        %997 = vmatpush2.msra.mxu0 0.0
        %998 = vmatprep.subr.mxu0 0.0
        %999 = vmatpush2.msra.mxu0 0.0
        %1000 = vmatprep.subr.mxu0 0.0
        %1001 = vmatpush2.msra.mxu0 0.0
        %1002 = vmatprep.subr.mxu0 0.0
        %1003 = vmatpush2.msra.mxu0 %v932
        %1004 = vmatprep.subr.mxu0 0.0
        %1005 = vmatpush2.msra.mxu0 %v931
        %1006 = vmatprep.subr.mxu0 0.0
        %1007 = vmatpush2.msra.mxu0 %v930
        %1008 = vmatprep.subr.mxu0 0.0
        %1009 = vmatpush2.msra.mxu0 %v929
        %1010 = vmatprep.subr.mxu0 0.0
        %1011 = vmatpush2.msra.mxu0 %v928
        %1012 = vmatprep.subr.mxu0 0.0
        %1013 = vmatpush2.msra.mxu0 %v927
        %1014 = vmatprep.mubr.f32.mxu0 %v946
        %1015 = vmatmul.mubr.f32.gmra.mxu0 %v936
        %v1016 = vpop.f32.mrf.mxu0
        %v1017 = vadd.f32 0.0, %v1016
        %v1018 = vpop.f32.mrf.mxu0
        %1019 = vmatprep.mubr.f32.mxu0 %v948
        %1020 = vmatmul.mubr.f32.gmra.mxu0 %v941
        %v1021 = vpop.f32.mrf.mxu0
        %v1022 = vadd.f32 0.0, %v1021
        %v1023 = vpop.f32.mrf.mxu0
        %1024 = vdwg.mxu0
        %v1025 = vadd.f32 %v908, %v1017
        %v1026 = vadd.f32 %v909, %v1022
        %s1027 = scalar_lea.vmem %s1, 1056
        %v1028 = vld [vmem:[%s1027] sm:$0xff]
        %v1029 = vld [vmem:[%s1027 + $0x8] sm:$0xff]
        %v1030 = vld [vmem:[%s1027 + $0x10] sm:$0xff]
        %v1031 = vld [vmem:[%s1027 + $0x18] sm:$0xff]
        %v1032 = vld [vmem:[%s1027 + $0x20] sm:$0xff]
        %v1033 = vld [vmem:[%s1027 + $0x28] sm:$0xff]
        %v1034 = vld [vmem:[%s1027 + $0x30] sm:$0xff]
        %v1035 = vld [vmem:[%s1027 + $0x38] sm:$0xff]
        %v1036 = vld [vmem:[%s1027 + $0x40] sm:$0xff]
        %v1037 = vld [vmem:[%s1027 + $0x48] sm:$0xff]
        %v1038 = vld [vmem:[%s1027 + $0x50] sm:$0xff]
        %v1039 = vld [vmem:[%s1027 + $0x58] sm:$0xff]
        %v1040 = vld [vmem:[%s1027 + $0x60] sm:$0xff]
        %v1041 = vld [vmem:[%s1027 + $0x68] sm:$0xff]
        %v1042 = vld [vmem:[%s1027 + $0x70] sm:$0xff]
        %v1043 = vld [vmem:[%s1027 + $0x78] sm:$0xff]
        %v1044 = vld [vmem:[%s1027 + $0x80] sm:$0xff]
        %v1045 = vld [vmem:[%s1027 + $0x88] sm:$0xff]
        %v1046 = vld [vmem:[%s1027 + $0x90] sm:$0xff]
        %v1047 = vld [vmem:[%s1027 + $0x98] sm:$0xff]
        %v1048 = vld [vmem:[%s1027 + $0xa0] sm:$0xff]
        %v1049 = vld [vmem:[%s1027 + $0xa8] sm:$0xff]
        %vm1050 = vcmask 1041408
        %v1051 = vrot.slane %v321, 6
        %v1052 = vrot.slane %v323, 6
        %v1053 = vsel %vm1050, %v1051, %v1052
        %v1054 = vrot.slane %v322, 6
        %v1055 = vrot.slane %v324, 6
        %v1056 = vsel %vm1050, %v1054, %v1055
        %v1057 = vrot.slane %v325, 6
        %v1058 = vsel %vm1050, %v1052, %v1057
        %v1059 = vrot.slane %v326, 6
        %v1060 = vsel %vm1050, %v1055, %v1059
        %v1063 = vsel %vm356, %v1056, 0
        %v1065 = vsel %vm356, %v1060, 0
        %1067 = vmatprep.subr.mxu0 0.0
        %1068 = vmatpush1.msra.mxu0 %v1043
        %1069 = vmatprep.subr.mxu0 0.0
        %1070 = vmatpush1.msra.mxu0 %v1042
        %1071 = vmatprep.subr.mxu0 0.0
        %1072 = vmatpush1.msra.mxu0 %v1041
        %1073 = vmatprep.subr.mxu0 0.0
        %1074 = vmatpush1.msra.mxu0 %v1040
        %1075 = vmatprep.subr.mxu0 0.0
        %1076 = vmatpush1.msra.mxu0 %v1039
        %1077 = vmatprep.subr.mxu0 0.0
        %1078 = vmatpush1.msra.mxu0 %v1038
        %1079 = vmatprep.subr.mxu0 0.0
        %1080 = vmatpush1.msra.mxu0 %v1037
        %1081 = vmatprep.subr.mxu0 0.0
        %1082 = vmatpush1.msra.mxu0 %v1036
        %1083 = vmatprep.subr.mxu0 0.0
        %1084 = vmatpush1.msra.mxu0 %v1035
        %1085 = vmatprep.subr.mxu0 0.0
        %1086 = vmatpush1.msra.mxu0 %v1034
        %1087 = vmatprep.subr.mxu0 0.0
        %1088 = vmatpush1.msra.mxu0 %v1033
        %1089 = vmatprep.subr.mxu0 0.0
        %1090 = vmatpush1.msra.mxu0 %v1032
        %1091 = vmatprep.subr.mxu0 0.0
        %1092 = vmatpush1.msra.mxu0 %v1031
        %1093 = vmatprep.subr.mxu0 0.0
        %1094 = vmatpush1.msra.mxu0 %v1030
        %1095 = vmatprep.subr.mxu0 0.0
        %1096 = vmatpush1.msra.mxu0 %v1029
        %1097 = vmatprep.subr.mxu0 0.0
        %1098 = vmatpush1.msra.mxu0 %v1028
        %1099 = vmatprep.subr.mxu0 0.0
        %1100 = vmatpush2.msra.mxu0 0.0
        %1101 = vmatprep.subr.mxu0 0.0
        %1102 = vmatpush2.msra.mxu0 0.0
        %1103 = vmatprep.subr.mxu0 0.0
        %1104 = vmatpush2.msra.mxu0 0.0
        %1105 = vmatprep.subr.mxu0 0.0
        %1106 = vmatpush2.msra.mxu0 0.0
        %1107 = vmatprep.subr.mxu0 0.0
        %1108 = vmatpush2.msra.mxu0 0.0
        %1109 = vmatprep.subr.mxu0 0.0
        %1110 = vmatpush2.msra.mxu0 0.0
        %1111 = vmatprep.subr.mxu0 0.0
        %1112 = vmatpush2.msra.mxu0 0.0
        %1113 = vmatprep.subr.mxu0 0.0
        %1114 = vmatpush2.msra.mxu0 0.0
        %1115 = vmatprep.subr.mxu0 0.0
        %1116 = vmatpush2.msra.mxu0 0.0
        %1117 = vmatprep.subr.mxu0 0.0
        %1118 = vmatpush2.msra.mxu0 0.0
        %1119 = vmatprep.subr.mxu0 0.0
        %1120 = vmatpush2.msra.mxu0 %v1049
        %1121 = vmatprep.subr.mxu0 0.0
        %1122 = vmatpush2.msra.mxu0 %v1048
        %1123 = vmatprep.subr.mxu0 0.0
        %1124 = vmatpush2.msra.mxu0 %v1047
        %1125 = vmatprep.subr.mxu0 0.0
        %1126 = vmatpush2.msra.mxu0 %v1046
        %1127 = vmatprep.subr.mxu0 0.0
        %1128 = vmatpush2.msra.mxu0 %v1045
        %1129 = vmatprep.subr.mxu0 0.0
        %1130 = vmatpush2.msra.mxu0 %v1044
        %1131 = vmatprep.mubr.f32.mxu0 %v1063
        %1132 = vmatmul.mubr.f32.gmra.mxu0 %v1053
        %v1133 = vpop.f32.mrf.mxu0
        %v1134 = vadd.f32 0.0, %v1133
        %v1135 = vpop.f32.mrf.mxu0
        %1136 = vmatprep.mubr.f32.mxu0 %v1065
        %1137 = vmatmul.mubr.f32.gmra.mxu0 %v1058
        %v1138 = vpop.f32.mrf.mxu0
        %v1139 = vadd.f32 0.0, %v1138
        %v1140 = vpop.f32.mrf.mxu0
        %1141 = vdwg.mxu0
        %v1142 = vadd.f32 %v1025, %v1134
        %v1143 = vadd.f32 %v1026, %v1139
        %v1144 = vld [vmem:[%s3] sm:$0xff]
        %v1145 = vld [vmem:[%s3 + $0x8] sm:$0xff]
        %v1146 = vld [vmem:[%s3 + $0x10] sm:$0xff]
        %v1147 = vld [vmem:[%s3 + $0x18] sm:$0xff]
        %v1148 = vld [vmem:[%s3 + $0x20] sm:$0xff]
        %v1149 = vld [vmem:[%s3 + $0x28] sm:$0xff]
        %v1150 = vld [vmem:[%s3 + $0x30] sm:$0xff]
        %v1151 = vld [vmem:[%s3 + $0x38] sm:$0xff]
        %v1152 = vld [vmem:[%s3 + $0x40] sm:$0xff]
        %v1153 = vld [vmem:[%s3 + $0x48] sm:$0xff]
        %v1154 = vld [vmem:[%s3 + $0x50] sm:$0xff]
        %v1155 = vld [vmem:[%s3 + $0x58] sm:$0xff]
        %v1156 = vld [vmem:[%s3 + $0x60] sm:$0xff]
        %v1157 = vld [vmem:[%s3 + $0x68] sm:$0xff]
        %v1158 = vld [vmem:[%s3 + $0x70] sm:$0xff]
        %v1159 = vld [vmem:[%s3 + $0x78] sm:$0xff]
        %1160 = vmatprep.subr.mxu0 0.0
        %1161 = vmatpush1.msra.mxu0 %v1159
        %1162 = vmatprep.subr.mxu0 0.0
        %1163 = vmatpush1.msra.mxu0 %v1158
        %1164 = vmatprep.subr.mxu0 0.0
        %1165 = vmatpush1.msra.mxu0 %v1157
        %1166 = vmatprep.subr.mxu0 0.0
        %1167 = vmatpush1.msra.mxu0 %v1156
        %1168 = vmatprep.subr.mxu0 0.0
        %1169 = vmatpush1.msra.mxu0 %v1155
        %1170 = vmatprep.subr.mxu0 0.0
        %1171 = vmatpush1.msra.mxu0 %v1154
        %1172 = vmatprep.subr.mxu0 0.0
        %1173 = vmatpush1.msra.mxu0 %v1153
        %1174 = vmatprep.subr.mxu0 0.0
        %1175 = vmatpush1.msra.mxu0 %v1152
        %1176 = vmatprep.subr.mxu0 0.0
        %1177 = vmatpush1.msra.mxu0 %v1151
        %1178 = vmatprep.subr.mxu0 0.0
        %1179 = vmatpush1.msra.mxu0 %v1150
        %1180 = vmatprep.subr.mxu0 0.0
        %1181 = vmatpush1.msra.mxu0 %v1149
        %1182 = vmatprep.subr.mxu0 0.0
        %1183 = vmatpush1.msra.mxu0 %v1148
        %1184 = vmatprep.subr.mxu0 0.0
        %1185 = vmatpush1.msra.mxu0 %v1147
        %1186 = vmatprep.subr.mxu0 0.0
        %1187 = vmatpush1.msra.mxu0 %v1146
        %1188 = vmatprep.subr.mxu0 0.0
        %1189 = vmatpush1.msra.mxu0 %v1145
        %1190 = vmatprep.subr.mxu0 0.0
        %1191 = vmatpush1.msra.mxu0 %v1144
        %1192 = vmatprep.subr.mxu0 0.0
        %1193 = vmatpush2.msra.mxu0 0.0
        %1194 = vmatprep.subr.mxu0 0.0
        %1195 = vmatpush2.msra.mxu0 0.0
        %1196 = vmatprep.subr.mxu0 0.0
        %1197 = vmatpush2.msra.mxu0 0.0
        %1198 = vmatprep.subr.mxu0 0.0
        %1199 = vmatpush2.msra.mxu0 0.0
        %1200 = vmatprep.subr.mxu0 0.0
        %1201 = vmatpush2.msra.mxu0 0.0
        %1202 = vmatprep.subr.mxu0 0.0
        %1203 = vmatpush2.msra.mxu0 0.0
        %1204 = vmatprep.subr.mxu0 0.0
        %1205 = vmatpush2.msra.mxu0 0.0
        %1206 = vmatprep.subr.mxu0 0.0
        %1207 = vmatpush2.msra.mxu0 0.0
        %1208 = vmatprep.subr.mxu0 0.0
        %1209 = vmatpush2.msra.mxu0 0.0
        %1210 = vmatprep.subr.mxu0 0.0
        %1211 = vmatpush2.msra.mxu0 0.0
        %1212 = vmatprep.subr.mxu0 0.0
        %1213 = vmatpush2.msra.mxu0 0.0
        %1214 = vmatprep.subr.mxu0 0.0
        %1215 = vmatpush2.msra.mxu0 0.0
        %1216 = vmatprep.subr.mxu0 0.0
        %1217 = vmatpush2.msra.mxu0 0.0
        %1218 = vmatprep.subr.mxu0 0.0
        %1219 = vmatpush2.msra.mxu0 0.0
        %1220 = vmatprep.subr.mxu0 0.0
        %1221 = vmatpush2.msra.mxu0 0.0
        %1222 = vmatprep.subr.mxu0 0.0
        %1223 = vmatpush2.msra.mxu0 0.0
        %1224 = vmatprep.mubr.f32.mxu0 0.0
        %1225 = vmatmul.mubr.f32.gmra.mxu0 %v1142
        %v1226 = vpop.f32.mrf.mxu0
        %v1227 = vadd.f32 0.0, %v1226
        %v1228 = vpop.f32.mrf.mxu0
        %1229 = vmatprep.mubr.f32.mxu0 0.0
        %1230 = vmatmul.mubr.f32.gmra.mxu0 %v1143
        %v1231 = vpop.f32.mrf.mxu0
        %v1232 = vadd.f32 0.0, %v1231
        %v1233 = vpop.f32.mrf.mxu0
        %1234 = vdwg.mxu0
        %v1235 = vsub.f32 %v1142, %v1227
        %v1236 = vsub.f32 %v1143, %v1232
        %v1237 = vmul.f32 %v1235, %v1235
        %v1238 = vmul.f32 %v1236, %v1236
        %1239 = vmatprep.subr.mxu0 0.0
        %1240 = vmatpush1.msra.mxu0 %v1159
        %1241 = vmatprep.subr.mxu0 0.0
        %1242 = vmatpush1.msra.mxu0 %v1158
        %1243 = vmatprep.subr.mxu0 0.0
        %1244 = vmatpush1.msra.mxu0 %v1157
        %1245 = vmatprep.subr.mxu0 0.0
        %1246 = vmatpush1.msra.mxu0 %v1156
        %1247 = vmatprep.subr.mxu0 0.0
        %1248 = vmatpush1.msra.mxu0 %v1155
        %1249 = vmatprep.subr.mxu0 0.0
        %1250 = vmatpush1.msra.mxu0 %v1154
        %1251 = vmatprep.subr.mxu0 0.0
        %1252 = vmatpush1.msra.mxu0 %v1153
        %1253 = vmatprep.subr.mxu0 0.0
        %1254 = vmatpush1.msra.mxu0 %v1152
        %1255 = vmatprep.subr.mxu0 0.0
        %1256 = vmatpush1.msra.mxu0 %v1151
        %1257 = vmatprep.subr.mxu0 0.0
        %1258 = vmatpush1.msra.mxu0 %v1150
        %1259 = vmatprep.subr.mxu0 0.0
        %1260 = vmatpush1.msra.mxu0 %v1149
        %1261 = vmatprep.subr.mxu0 0.0
        %1262 = vmatpush1.msra.mxu0 %v1148
        %1263 = vmatprep.subr.mxu0 0.0
        %1264 = vmatpush1.msra.mxu0 %v1147
        %1265 = vmatprep.subr.mxu0 0.0
        %1266 = vmatpush1.msra.mxu0 %v1146
        %1267 = vmatprep.subr.mxu0 0.0
        %1268 = vmatpush1.msra.mxu0 %v1145
        %1269 = vmatprep.subr.mxu0 0.0
        %1270 = vmatpush1.msra.mxu0 %v1144
        %1271 = vmatprep.subr.mxu0 0.0
        %1272 = vmatpush2.msra.mxu0 0.0
        %1273 = vmatprep.subr.mxu0 0.0
        %1274 = vmatpush2.msra.mxu0 0.0
        %1275 = vmatprep.subr.mxu0 0.0
        %1276 = vmatpush2.msra.mxu0 0.0
        %1277 = vmatprep.subr.mxu0 0.0
        %1278 = vmatpush2.msra.mxu0 0.0
        %1279 = vmatprep.subr.mxu0 0.0
        %1280 = vmatpush2.msra.mxu0 0.0
        %1281 = vmatprep.subr.mxu0 0.0
        %1282 = vmatpush2.msra.mxu0 0.0
        %1283 = vmatprep.subr.mxu0 0.0
        %1284 = vmatpush2.msra.mxu0 0.0
        %1285 = vmatprep.subr.mxu0 0.0
        %1286 = vmatpush2.msra.mxu0 0.0
        %1287 = vmatprep.subr.mxu0 0.0
        %1288 = vmatpush2.msra.mxu0 0.0
        %1289 = vmatprep.subr.mxu0 0.0
        %1290 = vmatpush2.msra.mxu0 0.0
        %1291 = vmatprep.subr.mxu0 0.0
        %1292 = vmatpush2.msra.mxu0 0.0
        %1293 = vmatprep.subr.mxu0 0.0
        %1294 = vmatpush2.msra.mxu0 0.0
        %1295 = vmatprep.subr.mxu0 0.0
        %1296 = vmatpush2.msra.mxu0 0.0
        %1297 = vmatprep.subr.mxu0 0.0
        %1298 = vmatpush2.msra.mxu0 0.0
        %1299 = vmatprep.subr.mxu0 0.0
        %1300 = vmatpush2.msra.mxu0 0.0
        %1301 = vmatprep.subr.mxu0 0.0
        %1302 = vmatpush2.msra.mxu0 0.0
        %1303 = vmatprep.mubr.f32.mxu0 0.0
        %1304 = vmatmul.mubr.f32.gmra.mxu0 %v1237
        %v1305 = vpop.f32.mrf.mxu0
        %v1306 = vadd.f32 1e-06, %v1305
        %v1307 = vpop.f32.mrf.mxu0
        %1308 = vmatprep.mubr.f32.mxu0 0.0
        %1309 = vmatmul.mubr.f32.gmra.mxu0 %v1238
        %v1310 = vpop.f32.mrf.mxu0
        %v1311 = vadd.f32 1e-06, %v1310
        %v1312 = vpop.f32.mrf.mxu0
        %1313 = vdwg.mxu0
        %v1314 = vrsqrt.pop %v1306
        %v1315 = vrsqrt.pop %v1311
        %v1316 = vmul.f32 %v1235, %v1314
        %v1317 = vmul.f32 %v1236, %v1315
        %v1318 = vld [vmem:[%s4] sm:$0xff]
        %v1319 = vld [vmem:[%s4 + $0x8] sm:$0xff]
        %v1320 = vld [vmem:[%s4 + $0x10] sm:$0xff]
        %v1321 = vld [vmem:[%s4 + $0x18] sm:$0xff]
        %v1322 = vld [vmem:[%s4 + $0x20] sm:$0xff]
        %v1323 = vld [vmem:[%s4 + $0x28] sm:$0xff]
        %v1324 = vld [vmem:[%s4 + $0x30] sm:$0xff]
        %v1325 = vld [vmem:[%s4 + $0x38] sm:$0xff]
        %v1326 = vld [vmem:[%s4 + $0x40] sm:$0xff]
        %v1327 = vld [vmem:[%s4 + $0x48] sm:$0xff]
        %v1328 = vld [vmem:[%s4 + $0x50] sm:$0xff]
        %v1329 = vld [vmem:[%s4 + $0x58] sm:$0xff]
        %v1330 = vld [vmem:[%s4 + $0x60] sm:$0xff]
        %v1331 = vld [vmem:[%s4 + $0x68] sm:$0xff]
        %v1332 = vld [vmem:[%s4 + $0x70] sm:$0xff]
        %v1333 = vld [vmem:[%s4 + $0x78] sm:$0xff]
        %v1334 = vld [vmem:[%s4 + $0x80] sm:$0xff]
        %v1335 = vld [vmem:[%s4 + $0x88] sm:$0xff]
        %v1336 = vld [vmem:[%s4 + $0x90] sm:$0xff]
        %v1337 = vld [vmem:[%s4 + $0x98] sm:$0xff]
        %v1338 = vld [vmem:[%s4 + $0xa0] sm:$0xff]
        %v1339 = vld [vmem:[%s4 + $0xa8] sm:$0xff]
        %v1340 = vld [vmem:[%s4 + $0xb0] sm:$0xff]
        %v1341 = vld [vmem:[%s4 + $0xb8] sm:$0xff]
        %v1342 = vld [vmem:[%s4 + $0xc0] sm:$0xff]
        %v1343 = vld [vmem:[%s4 + $0xc8] sm:$0xff]
        %v1344 = vld [vmem:[%s4 + $0xd0] sm:$0xff]
        %v1345 = vld [vmem:[%s4 + $0xd8] sm:$0xff]
        %v1346 = vld [vmem:[%s4 + $0xe0] sm:$0xff]
        %v1347 = vld [vmem:[%s4 + $0xe8] sm:$0xff]
        %v1348 = vld [vmem:[%s4 + $0xf0] sm:$0xff]
        %v1349 = vld [vmem:[%s4 + $0xf8] sm:$0xff]
        %v1350 = vld [vmem:[%s4 + $0x100] sm:$0xff]
        %v1351 = vld [vmem:[%s4 + $0x108] sm:$0xff]
        %v1352 = vld [vmem:[%s4 + $0x110] sm:$0xff]
        %v1353 = vld [vmem:[%s4 + $0x118] sm:$0xff]
        %v1354 = vld [vmem:[%s4 + $0x120] sm:$0xff]
        %v1355 = vld [vmem:[%s4 + $0x128] sm:$0xff]
        %v1356 = vld [vmem:[%s4 + $0x130] sm:$0xff]
        %v1357 = vld [vmem:[%s4 + $0x138] sm:$0xff]
        %v1358 = vld [vmem:[%s4 + $0x140] sm:$0xff]
        %v1359 = vld [vmem:[%s4 + $0x148] sm:$0xff]
        %v1360 = vld [vmem:[%s4 + $0x150] sm:$0xff]
        %v1361 = vld [vmem:[%s4 + $0x158] sm:$0xff]
        %v1362 = vld [vmem:[%s4 + $0x160] sm:$0xff]
        %v1363 = vld [vmem:[%s4 + $0x168] sm:$0xff]
        %v1364 = vld [vmem:[%s4 + $0x170] sm:$0xff]
        %v1365 = vld [vmem:[%s4 + $0x178] sm:$0xff]
        %v1366 = vld [vmem:[%s4 + $0x180] sm:$0xff]
        %v1367 = vld [vmem:[%s4 + $0x188] sm:$0xff]
        %v1368 = vld [vmem:[%s4 + $0x190] sm:$0xff]
        %v1369 = vld [vmem:[%s4 + $0x198] sm:$0xff]
        %v1370 = vld [vmem:[%s4 + $0x1a0] sm:$0xff]
        %v1371 = vld [vmem:[%s4 + $0x1a8] sm:$0xff]
        %v1372 = vld [vmem:[%s4 + $0x1b0] sm:$0xff]
        %v1373 = vld [vmem:[%s4 + $0x1b8] sm:$0xff]
        %v1374 = vld [vmem:[%s4 + $0x1c0] sm:$0xff]
        %v1375 = vld [vmem:[%s4 + $0x1c8] sm:$0xff]
        %v1376 = vld [vmem:[%s4 + $0x1d0] sm:$0xff]
        %v1377 = vld [vmem:[%s4 + $0x1d8] sm:$0xff]
        %v1378 = vld [vmem:[%s4 + $0x1e0] sm:$0xff]
        %v1379 = vld [vmem:[%s4 + $0x1e8] sm:$0xff]
        %v1380 = vld [vmem:[%s4 + $0x1f0] sm:$0xff]
        %v1381 = vld [vmem:[%s4 + $0x1f8] sm:$0xff]
        %v1382 = vld [vmem:[%s5] sm:$0xf]
        %v1384 = vlaneseq
        %v1385 = vshrl.u32 %v1384, 7
        %v1386 = vsub.s32 0, %v1385
        %v1387 = vrot.slane %v1382, %v1386
        %v1388 = vlaneseq
        %v1389 = vshrl.u32 %v1388, 7
        %v1390 = vsub.s32 1, %v1389
        %v1391 = vrot.slane %v1382, %v1390
        %v1392 = vlaneseq
        %v1393 = vshrl.u32 %v1392, 7
        %v1394 = vsub.s32 2, %v1393
        %v1395 = vrot.slane %v1382, %v1394
        %v1396 = vlaneseq
        %v1397 = vshrl.u32 %v1396, 7
        %v1398 = vsub.s32 3, %v1397
        %v1399 = vrot.slane %v1382, %v1398
        %1404 = vmatprep.subr.mxu0 %v1379
        %1405 = vmatpush1.msra.mxu0 %v1378
        %1406 = vmatprep.subr.mxu0 %v1375
        %1407 = vmatpush1.msra.mxu0 %v1374
        %1408 = vmatprep.subr.mxu0 %v1371
        %1409 = vmatpush1.msra.mxu0 %v1370
        %1410 = vmatprep.subr.mxu0 %v1367
        %1411 = vmatpush1.msra.mxu0 %v1366
        %1412 = vmatprep.subr.mxu0 %v1363
        %1413 = vmatpush1.msra.mxu0 %v1362
        %1414 = vmatprep.subr.mxu0 %v1359
        %1415 = vmatpush1.msra.mxu0 %v1358
        %1416 = vmatprep.subr.mxu0 %v1355
        %1417 = vmatpush1.msra.mxu0 %v1354
        %1418 = vmatprep.subr.mxu0 %v1351
        %1419 = vmatpush1.msra.mxu0 %v1350
        %1420 = vmatprep.subr.mxu0 %v1347
        %1421 = vmatpush1.msra.mxu0 %v1346
        %1422 = vmatprep.subr.mxu0 %v1343
        %1423 = vmatpush1.msra.mxu0 %v1342
        %1424 = vmatprep.subr.mxu0 %v1339
        %1425 = vmatpush1.msra.mxu0 %v1338
        %1426 = vmatprep.subr.mxu0 %v1335
        %1427 = vmatpush1.msra.mxu0 %v1334
        %1428 = vmatprep.subr.mxu0 %v1331
        %1429 = vmatpush1.msra.mxu0 %v1330
        %1430 = vmatprep.subr.mxu0 %v1327
        %1431 = vmatpush1.msra.mxu0 %v1326
        %1432 = vmatprep.subr.mxu0 %v1323
        %1433 = vmatpush1.msra.mxu0 %v1322
        %1434 = vmatprep.subr.mxu0 %v1319
        %1435 = vmatpush1.msra.mxu0 %v1318
        %1436 = vmatprep.subr.mxu0 0.0
        %1437 = vmatpush2.msra.mxu0 0.0
        %1438 = vmatprep.subr.mxu0 0.0
        %1439 = vmatpush2.msra.mxu0 0.0
        %1440 = vmatprep.subr.mxu0 0.0
        %1441 = vmatpush2.msra.mxu0 0.0
        %1442 = vmatprep.subr.mxu0 0.0
        %1443 = vmatpush2.msra.mxu0 0.0
        %1444 = vmatprep.subr.mxu0 0.0
        %1445 = vmatpush2.msra.mxu0 0.0
        %1446 = vmatprep.subr.mxu0 0.0
        %1447 = vmatpush2.msra.mxu0 0.0
        %1448 = vmatprep.subr.mxu0 0.0
        %1449 = vmatpush2.msra.mxu0 0.0
        %1450 = vmatprep.subr.mxu0 0.0
        %1451 = vmatpush2.msra.mxu0 0.0
        %1452 = vmatprep.subr.mxu0 0.0
        %1453 = vmatpush2.msra.mxu0 0.0
        %1454 = vmatprep.subr.mxu0 0.0
        %1455 = vmatpush2.msra.mxu0 0.0
        %1456 = vmatprep.subr.mxu0 0.0
        %1457 = vmatpush2.msra.mxu0 0.0
        %1458 = vmatprep.subr.mxu0 0.0
        %1459 = vmatpush2.msra.mxu0 0.0
        %1460 = vmatprep.subr.mxu0 0.0
        %1461 = vmatpush2.msra.mxu0 0.0
        %1462 = vmatprep.subr.mxu0 0.0
        %1463 = vmatpush2.msra.mxu0 0.0
        %1464 = vmatprep.subr.mxu0 0.0
        %1465 = vmatpush2.msra.mxu0 0.0
        %1466 = vmatprep.subr.mxu0 0.0
        %1467 = vmatpush2.msra.mxu0 0.0
        %1468 = vmatprep.mubr.f32.mxu0 0.0
        %1469 = vmatmul.mubr.f32.gmra.mxu0 %v1316
        %v1470 = vpop.f32.mrf.mxu0
        %v1471 = vadd.f32 %v1387, %v1470
        %v1472 = vpop.f32.mrf.mxu0
        %v1473 = vadd.f32 %v1391, %v1472
        %1474 = vmatprep.mubr.f32.mxu0 0.0
        %1475 = vmatmul.mubr.f32.gmra.mxu0 %v1317
        %v1476 = vpop.f32.mrf.mxu0
        %v1477 = vadd.f32 %v1387, %v1476
        %v1478 = vpop.f32.mrf.mxu0
        %v1479 = vadd.f32 %v1391, %v1478
        %1480 = vdwg.mxu0
        %1481 = vmatprep.subr.mxu0 %v1381
        %1482 = vmatpush1.msra.mxu0 %v1380
        %1483 = vmatprep.subr.mxu0 %v1377
        %1484 = vmatpush1.msra.mxu0 %v1376
        %1485 = vmatprep.subr.mxu0 %v1373
        %1486 = vmatpush1.msra.mxu0 %v1372
        %1487 = vmatprep.subr.mxu0 %v1369
        %1488 = vmatpush1.msra.mxu0 %v1368
        %1489 = vmatprep.subr.mxu0 %v1365
        %1490 = vmatpush1.msra.mxu0 %v1364
        %1491 = vmatprep.subr.mxu0 %v1361
        %1492 = vmatpush1.msra.mxu0 %v1360
        %1493 = vmatprep.subr.mxu0 %v1357
        %1494 = vmatpush1.msra.mxu0 %v1356
        %1495 = vmatprep.subr.mxu0 %v1353
        %1496 = vmatpush1.msra.mxu0 %v1352
        %1497 = vmatprep.subr.mxu0 %v1349
        %1498 = vmatpush1.msra.mxu0 %v1348
        %1499 = vmatprep.subr.mxu0 %v1345
        %1500 = vmatpush1.msra.mxu0 %v1344
        %1501 = vmatprep.subr.mxu0 %v1341
        %1502 = vmatpush1.msra.mxu0 %v1340
        %1503 = vmatprep.subr.mxu0 %v1337
        %1504 = vmatpush1.msra.mxu0 %v1336
        %1505 = vmatprep.subr.mxu0 %v1333
        %1506 = vmatpush1.msra.mxu0 %v1332
        %1507 = vmatprep.subr.mxu0 %v1329
        %1508 = vmatpush1.msra.mxu0 %v1328
        %1509 = vmatprep.subr.mxu0 %v1325
        %1510 = vmatpush1.msra.mxu0 %v1324
        %1511 = vmatprep.subr.mxu0 %v1321
        %1512 = vmatpush1.msra.mxu0 %v1320
        %1513 = vmatprep.subr.mxu0 0.0
        %1514 = vmatpush2.msra.mxu0 0.0
        %1515 = vmatprep.subr.mxu0 0.0
        %1516 = vmatpush2.msra.mxu0 0.0
        %1517 = vmatprep.subr.mxu0 0.0
        %1518 = vmatpush2.msra.mxu0 0.0
        %1519 = vmatprep.subr.mxu0 0.0
        %1520 = vmatpush2.msra.mxu0 0.0
        %1521 = vmatprep.subr.mxu0 0.0
        %1522 = vmatpush2.msra.mxu0 0.0
        %1523 = vmatprep.subr.mxu0 0.0
        %1524 = vmatpush2.msra.mxu0 0.0
        %1525 = vmatprep.subr.mxu0 0.0
        %1526 = vmatpush2.msra.mxu0 0.0
        %1527 = vmatprep.subr.mxu0 0.0
        %1528 = vmatpush2.msra.mxu0 0.0
        %1529 = vmatprep.subr.mxu0 0.0
        %1530 = vmatpush2.msra.mxu0 0.0
        %1531 = vmatprep.subr.mxu0 0.0
        %1532 = vmatpush2.msra.mxu0 0.0
        %1533 = vmatprep.subr.mxu0 0.0
        %1534 = vmatpush2.msra.mxu0 0.0
        %1535 = vmatprep.subr.mxu0 0.0
        %1536 = vmatpush2.msra.mxu0 0.0
        %1537 = vmatprep.subr.mxu0 0.0
        %1538 = vmatpush2.msra.mxu0 0.0
        %1539 = vmatprep.subr.mxu0 0.0
        %1540 = vmatpush2.msra.mxu0 0.0
        %1541 = vmatprep.subr.mxu0 0.0
        %1542 = vmatpush2.msra.mxu0 0.0
        %1543 = vmatprep.subr.mxu0 0.0
        %1544 = vmatpush2.msra.mxu0 0.0
        %1545 = vmatprep.mubr.f32.mxu0 0.0
        %1546 = vmatmul.mubr.f32.gmra.mxu0 %v1316
        %v1547 = vpop.f32.mrf.mxu0
        %v1548 = vadd.f32 %v1395, %v1547
        %v1549 = vpop.f32.mrf.mxu0
        %v1550 = vadd.f32 %v1399, %v1549
        %1551 = vmatprep.mubr.f32.mxu0 0.0
        %1552 = vmatmul.mubr.f32.gmra.mxu0 %v1317
        %v1553 = vpop.f32.mrf.mxu0
        %v1554 = vadd.f32 %v1395, %v1553
        %v1555 = vpop.f32.mrf.mxu0
        %v1556 = vadd.f32 %v1399, %v1555
        %1557 = vdwg.mxu0
        %v1558 = vmul.f32 %v1471, 0.5
        %v1559 = vmul.f32 %v1473, 0.5
        %v1560 = vmul.f32 %v1548, 0.5
        %v1561 = vmul.f32 %v1550, 0.5
        %v1562 = vmul.f32 %v1477, 0.5
        %v1563 = vmul.f32 %v1479, 0.5
        %v1564 = vmul.f32 %v1554, 0.5
        %v1565 = vmul.f32 %v1556, 0.5
        %v1566 = vmul.f32 %v1471, 0.70710677
        %v1567 = vmul.f32 %v1473, 0.70710677
        %v1568 = vmul.f32 %v1548, 0.70710677
        %v1569 = vmul.f32 %v1550, 0.70710677
        %v1570 = vmul.f32 %v1477, 0.70710677
        %v1571 = vmul.f32 %v1479, 0.70710677
        %v1572 = vmul.f32 %v1554, 0.70710677
        %v1573 = vmul.f32 %v1556, 0.70710677
        %v1574 = verf.f32.pop %v1566
        %v1575 = verf.f32.pop %v1567
        %v1576 = verf.f32.pop %v1568
        %v1577 = verf.f32.pop %v1569
        %v1578 = verf.f32.pop %v1570
        %v1579 = verf.f32.pop %v1571
        %v1580 = verf.f32.pop %v1572
        %v1581 = verf.f32.pop %v1573
        %v1582 = vadd.f32 %v1574, 1.0
        %v1583 = vadd.f32 %v1575, 1.0
        %v1584 = vadd.f32 %v1576, 1.0
        %v1585 = vadd.f32 %v1577, 1.0
        %v1586 = vadd.f32 %v1578, 1.0
        %v1587 = vadd.f32 %v1579, 1.0
        %v1588 = vadd.f32 %v1580, 1.0
        %v1589 = vadd.f32 %v1581, 1.0
        %v1590 = vmul.f32 %v1558, %v1582
        %v1591 = vmul.f32 %v1559, %v1583
        %v1592 = vmul.f32 %v1560, %v1584
        %v1593 = vmul.f32 %v1561, %v1585
        %v1594 = vmul.f32 %v1562, %v1586
        %v1595 = vmul.f32 %v1563, %v1587
        %v1596 = vmul.f32 %v1564, %v1588
        %v1597 = vmul.f32 %v1565, %v1589
        %v1598 = vld [vmem:[#allocation2] sm:$0xff]
        %v1599 = vld [vmem:[#allocation2 + $0x8] sm:$0xff]
        %v1600 = vld [vmem:[#allocation2 + $0x10] sm:$0xff]
        %v1601 = vld [vmem:[#allocation2 + $0x18] sm:$0xff]
        %v1602 = vld [vmem:[#allocation2 + $0x20] sm:$0xff]
        %v1603 = vld [vmem:[#allocation2 + $0x28] sm:$0xff]
        %v1604 = vld [vmem:[#allocation2 + $0x30] sm:$0xff]
        %v1605 = vld [vmem:[#allocation2 + $0x38] sm:$0xff]
        %v1606 = vld [vmem:[#allocation2 + $0x40] sm:$0xff]
        %v1607 = vld [vmem:[#allocation2 + $0x48] sm:$0xff]
        %v1608 = vld [vmem:[#allocation2 + $0x50] sm:$0xff]
        %v1609 = vld [vmem:[#allocation2 + $0x58] sm:$0xff]
        %v1610 = vld [vmem:[#allocation2 + $0x60] sm:$0xff]
        %v1611 = vld [vmem:[#allocation2 + $0x68] sm:$0xff]
        %v1612 = vld [vmem:[#allocation2 + $0x70] sm:$0xff]
        %v1613 = vld [vmem:[#allocation2 + $0x78] sm:$0xff]
        %v1614 = vld [vmem:[#allocation2 + $0x80] sm:$0xff]
        %v1615 = vld [vmem:[#allocation2 + $0x88] sm:$0xff]
        %v1616 = vld [vmem:[#allocation2 + $0x90] sm:$0xff]
        %v1617 = vld [vmem:[#allocation2 + $0x98] sm:$0xff]
        %v1618 = vld [vmem:[#allocation2 + $0xa0] sm:$0xff]
        %v1619 = vld [vmem:[#allocation2 + $0xa8] sm:$0xff]
        %v1620 = vld [vmem:[#allocation2 + $0xb0] sm:$0xff]
        %v1621 = vld [vmem:[#allocation2 + $0xb8] sm:$0xff]
        %v1622 = vld [vmem:[#allocation2 + $0xc0] sm:$0xff]
        %v1623 = vld [vmem:[#allocation2 + $0xc8] sm:$0xff]
        %v1624 = vld [vmem:[#allocation2 + $0xd0] sm:$0xff]
        %v1625 = vld [vmem:[#allocation2 + $0xd8] sm:$0xff]
        %v1626 = vld [vmem:[#allocation2 + $0xe0] sm:$0xff]
        %v1627 = vld [vmem:[#allocation2 + $0xe8] sm:$0xff]
        %v1628 = vld [vmem:[#allocation2 + $0xf0] sm:$0xff]
        %v1629 = vld [vmem:[#allocation2 + $0xf8] sm:$0xff]
        %v1630 = vld [vmem:[#allocation2 + $0x100] sm:$0xff]
        %v1631 = vld [vmem:[#allocation2 + $0x108] sm:$0xff]
        %v1632 = vld [vmem:[#allocation2 + $0x110] sm:$0xff]
        %v1633 = vld [vmem:[#allocation2 + $0x118] sm:$0xff]
        %v1634 = vld [vmem:[#allocation2 + $0x120] sm:$0xff]
        %v1635 = vld [vmem:[#allocation2 + $0x128] sm:$0xff]
        %v1636 = vld [vmem:[#allocation2 + $0x130] sm:$0xff]
        %v1637 = vld [vmem:[#allocation2 + $0x138] sm:$0xff]
        %v1638 = vld [vmem:[#allocation2 + $0x140] sm:$0xff]
        %v1639 = vld [vmem:[#allocation2 + $0x148] sm:$0xff]
        %v1640 = vld [vmem:[#allocation2 + $0x150] sm:$0xff]
        %v1641 = vld [vmem:[#allocation2 + $0x158] sm:$0xff]
        %v1642 = vld [vmem:[#allocation2 + $0x160] sm:$0xff]
        %v1643 = vld [vmem:[#allocation2 + $0x168] sm:$0xff]
        %v1644 = vld [vmem:[#allocation2 + $0x170] sm:$0xff]
        %v1645 = vld [vmem:[#allocation2 + $0x178] sm:$0xff]
        %v1646 = vld [vmem:[#allocation2 + $0x180] sm:$0xff]
        %v1647 = vld [vmem:[#allocation2 + $0x188] sm:$0xff]
        %v1648 = vld [vmem:[#allocation2 + $0x190] sm:$0xff]
        %v1649 = vld [vmem:[#allocation2 + $0x198] sm:$0xff]
        %v1650 = vld [vmem:[#allocation2 + $0x1a0] sm:$0xff]
        %v1651 = vld [vmem:[#allocation2 + $0x1a8] sm:$0xff]
        %v1652 = vld [vmem:[#allocation2 + $0x1b0] sm:$0xff]
        %v1653 = vld [vmem:[#allocation2 + $0x1b8] sm:$0xff]
        %v1654 = vld [vmem:[#allocation2 + $0x1c0] sm:$0xff]
        %v1655 = vld [vmem:[#allocation2 + $0x1c8] sm:$0xff]
        %v1656 = vld [vmem:[#allocation2 + $0x1d0] sm:$0xff]
        %v1657 = vld [vmem:[#allocation2 + $0x1d8] sm:$0xff]
        %v1658 = vld [vmem:[#allocation2 + $0x1e0] sm:$0xff]
        %v1659 = vld [vmem:[#allocation2 + $0x1e8] sm:$0xff]
        %v1660 = vld [vmem:[#allocation2 + $0x1f0] sm:$0xff]
        %v1661 = vld [vmem:[#allocation2 + $0x1f8] sm:$0xff]
        %v1662 = vld [vmem:[%s7] sm:$0x1]
        %v1664 = vlaneseq
        %v1665 = vshrl.u32 %v1664, 7
        %v1666 = vsub.s32 0, %v1665
        %v1667 = vrot.slane %v1662, %v1666
        %1669 = vmatprep.subr.mxu0 0.0
        %1670 = vmatpush1.msra.mxu0 %v1613
        %1671 = vmatprep.subr.mxu0 0.0
        %1672 = vmatpush1.msra.mxu0 %v1612
        %1673 = vmatprep.subr.mxu0 0.0
        %1674 = vmatpush1.msra.mxu0 %v1611
        %1675 = vmatprep.subr.mxu0 0.0
        %1676 = vmatpush1.msra.mxu0 %v1610
        %1677 = vmatprep.subr.mxu0 0.0
        %1678 = vmatpush1.msra.mxu0 %v1609
        %1679 = vmatprep.subr.mxu0 0.0
        %1680 = vmatpush1.msra.mxu0 %v1608
        %1681 = vmatprep.subr.mxu0 0.0
        %1682 = vmatpush1.msra.mxu0 %v1607
        %1683 = vmatprep.subr.mxu0 0.0
        %1684 = vmatpush1.msra.mxu0 %v1606
        %1685 = vmatprep.subr.mxu0 0.0
        %1686 = vmatpush1.msra.mxu0 %v1605
        %1687 = vmatprep.subr.mxu0 0.0
        %1688 = vmatpush1.msra.mxu0 %v1604
        %1689 = vmatprep.subr.mxu0 0.0
        %1690 = vmatpush1.msra.mxu0 %v1603
        %1691 = vmatprep.subr.mxu0 0.0
        %1692 = vmatpush1.msra.mxu0 %v1602
        %1693 = vmatprep.subr.mxu0 0.0
        %1694 = vmatpush1.msra.mxu0 %v1601
        %1695 = vmatprep.subr.mxu0 0.0
        %1696 = vmatpush1.msra.mxu0 %v1600
        %1697 = vmatprep.subr.mxu0 0.0
        %1698 = vmatpush1.msra.mxu0 %v1599
        %1699 = vmatprep.subr.mxu0 0.0
        %1700 = vmatpush1.msra.mxu0 %v1598
        %1701 = vmatprep.subr.mxu0 0.0
        %1702 = vmatpush2.msra.mxu0 %v1629
        %1703 = vmatprep.subr.mxu0 0.0
        %1704 = vmatpush2.msra.mxu0 %v1628
        %1705 = vmatprep.subr.mxu0 0.0
        %1706 = vmatpush2.msra.mxu0 %v1627
        %1707 = vmatprep.subr.mxu0 0.0
        %1708 = vmatpush2.msra.mxu0 %v1626
        %1709 = vmatprep.subr.mxu0 0.0
        %1710 = vmatpush2.msra.mxu0 %v1625
        %1711 = vmatprep.subr.mxu0 0.0
        %1712 = vmatpush2.msra.mxu0 %v1624
        %1713 = vmatprep.subr.mxu0 0.0
        %1714 = vmatpush2.msra.mxu0 %v1623
        %1715 = vmatprep.subr.mxu0 0.0
        %1716 = vmatpush2.msra.mxu0 %v1622
        %1717 = vmatprep.subr.mxu0 0.0
        %1718 = vmatpush2.msra.mxu0 %v1621
        %1719 = vmatprep.subr.mxu0 0.0
        %1720 = vmatpush2.msra.mxu0 %v1620
        %1721 = vmatprep.subr.mxu0 0.0
        %1722 = vmatpush2.msra.mxu0 %v1619
        %1723 = vmatprep.subr.mxu0 0.0
        %1724 = vmatpush2.msra.mxu0 %v1618
        %1725 = vmatprep.subr.mxu0 0.0
        %1726 = vmatpush2.msra.mxu0 %v1617
        %1727 = vmatprep.subr.mxu0 0.0
        %1728 = vmatpush2.msra.mxu0 %v1616
        %1729 = vmatprep.subr.mxu0 0.0
        %1730 = vmatpush2.msra.mxu0 %v1615
        %1731 = vmatprep.subr.mxu0 0.0
        %1732 = vmatpush2.msra.mxu0 %v1614
        %1733 = vmatprep.mubr.f32.mxu0 %v1591
        %1734 = vmatmul.mubr.f32.gmra.mxu0 %v1590
        %v1735 = vpop.f32.mrf.mxu0
        %v1736 = vadd.f32 %v1667, %v1735
        %v1737 = vpop.f32.mrf.mxu0
        %1738 = vmatprep.mubr.f32.mxu0 %v1595
        %1739 = vmatmul.mubr.f32.gmra.mxu0 %v1594
        %v1740 = vpop.f32.mrf.mxu0
        %v1741 = vadd.f32 %v1667, %v1740
        %v1742 = vpop.f32.mrf.mxu0
        %1743 = vdwg.mxu0
        %1744 = vmatprep.subr.mxu0 0.0
        %1745 = vmatpush1.msra.mxu0 %v1645
        %1746 = vmatprep.subr.mxu0 0.0
        %1747 = vmatpush1.msra.mxu0 %v1644
        %1748 = vmatprep.subr.mxu0 0.0
        %1749 = vmatpush1.msra.mxu0 %v1643
        %1750 = vmatprep.subr.mxu0 0.0
        %1751 = vmatpush1.msra.mxu0 %v1642
        %1752 = vmatprep.subr.mxu0 0.0
        %1753 = vmatpush1.msra.mxu0 %v1641
        %1754 = vmatprep.subr.mxu0 0.0
        %1755 = vmatpush1.msra.mxu0 %v1640
        %1756 = vmatprep.subr.mxu0 0.0
        %1757 = vmatpush1.msra.mxu0 %v1639
        %1758 = vmatprep.subr.mxu0 0.0
        %1759 = vmatpush1.msra.mxu0 %v1638
        %1760 = vmatprep.subr.mxu0 0.0
        %1761 = vmatpush1.msra.mxu0 %v1637
        %1762 = vmatprep.subr.mxu0 0.0
        %1763 = vmatpush1.msra.mxu0 %v1636
        %1764 = vmatprep.subr.mxu0 0.0
        %1765 = vmatpush1.msra.mxu0 %v1635
        %1766 = vmatprep.subr.mxu0 0.0
        %1767 = vmatpush1.msra.mxu0 %v1634
        %1768 = vmatprep.subr.mxu0 0.0
        %1769 = vmatpush1.msra.mxu0 %v1633
        %1770 = vmatprep.subr.mxu0 0.0
        %1771 = vmatpush1.msra.mxu0 %v1632
        %1772 = vmatprep.subr.mxu0 0.0
        %1773 = vmatpush1.msra.mxu0 %v1631
        %1774 = vmatprep.subr.mxu0 0.0
        %1775 = vmatpush1.msra.mxu0 %v1630
        %1776 = vmatprep.subr.mxu0 0.0
        %1777 = vmatpush2.msra.mxu0 %v1661
        %1778 = vmatprep.subr.mxu0 0.0
        %1779 = vmatpush2.msra.mxu0 %v1660
        %1780 = vmatprep.subr.mxu0 0.0
        %1781 = vmatpush2.msra.mxu0 %v1659
        %1782 = vmatprep.subr.mxu0 0.0
        %1783 = vmatpush2.msra.mxu0 %v1658
        %1784 = vmatprep.subr.mxu0 0.0
        %1785 = vmatpush2.msra.mxu0 %v1657
        %1786 = vmatprep.subr.mxu0 0.0
        %1787 = vmatpush2.msra.mxu0 %v1656
        %1788 = vmatprep.subr.mxu0 0.0
        %1789 = vmatpush2.msra.mxu0 %v1655
        %1790 = vmatprep.subr.mxu0 0.0
        %1791 = vmatpush2.msra.mxu0 %v1654
        %1792 = vmatprep.subr.mxu0 0.0
        %1793 = vmatpush2.msra.mxu0 %v1653
        %1794 = vmatprep.subr.mxu0 0.0
        %1795 = vmatpush2.msra.mxu0 %v1652
        %1796 = vmatprep.subr.mxu0 0.0
        %1797 = vmatpush2.msra.mxu0 %v1651
        %1798 = vmatprep.subr.mxu0 0.0
        %1799 = vmatpush2.msra.mxu0 %v1650
        %1800 = vmatprep.subr.mxu0 0.0
        %1801 = vmatpush2.msra.mxu0 %v1649
        %1802 = vmatprep.subr.mxu0 0.0
        %1803 = vmatpush2.msra.mxu0 %v1648
        %1804 = vmatprep.subr.mxu0 0.0
        %1805 = vmatpush2.msra.mxu0 %v1647
        %1806 = vmatprep.subr.mxu0 0.0
        %1807 = vmatpush2.msra.mxu0 %v1646
        %1808 = vmatprep.mubr.f32.mxu0 %v1593
        %1809 = vmatmul.mubr.f32.gmra.mxu0 %v1592
        %v1810 = vpop.f32.mrf.mxu0
        %v1811 = vadd.f32 %v1736, %v1810
        %v1812 = vpop.f32.mrf.mxu0
        %1813 = vmatprep.mubr.f32.mxu0 %v1597
        %1814 = vmatmul.mubr.f32.gmra.mxu0 %v1596
        %v1815 = vpop.f32.mrf.mxu0
        %v1816 = vadd.f32 %v1741, %v1815
        %v1817 = vpop.f32.mrf.mxu0
        %1818 = vdwg.mxu0
        %1819 = vst [vmem:[%s320] sm:$0xff] %v1811
        %1820 = vst [vmem:[%s320 + $0x8] sm:$0xff] %v1816
        %p1821 = scmp.lt.s32.totalorder %s20, 1
        %s1822 = scalar_select %p1821, %s20, 1
        %s1823 = smul.addr %s1822, 2
        %s1824 = smul.addr %s1823, 8
        %s1825 = scalar_lea.vmem %s8, %s1824
        // Predicated region
        $region57: #{convnext_block_with_concat.1} parent=51 // pred_check
          %p1826 = pneg %p211
        $region58: #{convnext_block_with_concat.1} parent=51 // pred_check_branch
          %1828 = sbr.rel (%p1826) target = $region60
        $region59: #{convnext_block_with_concat.1} parent=51 // pred_region
          _
        $region60: #{convnext_block_with_concat.1} parent=51 // pred_fallthru
          _
      $region52: #{convnext_block_with_concat.1} parent=5 // pred_fallthru
        _
      %p1829 = scmp.le.s32.totalorder 2, %s15
      // Predicated region
      $region61: #{convnext_block_with_concat.1} parent=5 // pred_check
        %p1830 = pneg %p1829
      $region62: #{convnext_block_with_concat.1} parent=5 // pred_check_branch
        %1832 = sbr.rel (%p1830) target = $region64
      $region63: #{convnext_block_with_concat.1} parent=5 // pred_region
        %s1833 = ssub.s32 %s15, 2
        // Predicated region
        $region65: #{convnext_block_with_concat.1} parent=63 // pred_check
          %p1834 = pneg %p217
        $region66: #{convnext_block_with_concat.1} parent=63 // pred_check_branch
          %1836 = sbr.rel (%p1834) target = $region68
        $region67: #{convnext_block_with_concat.1} parent=63 // pred_region
          %p1837 = scmp.lt.s32.totalorder %s21, 1
          %s1838 = scalar_select %p1837, %s21, 1
          %s1839 = smul.addr %s1838, 2
          %s1840 = smul.addr %s1839, 8
          %s1841 = scalar_lea.vmem %s8, %s1840
        $region68: #{convnext_block_with_concat.1} parent=63 // pred_fallthru
          _
      $region64: #{convnext_block_with_concat.1} parent=5 // pred_fallthru
        _
    $region6: #{convnext_block_with_concat.1} parent=1 // loop_footer
      %s19 = sadd.s32 1, %s15
    $region7: #{convnext_block_with_concat.1} parent=1 // loop_footer_branch
      %14 = sbr.rel target = $region3
    $region8: #{convnext_block_with_concat.1} parent=1 // loop_exit
      _
    %1842 = vsyncpa [#allocation3], 1
    %s1843 = scalar_lea.sflag [#allocation3], 1
    %1844 = vsyncpa %s1843, 1

// kernel: convnext_block_with_concat.1
$region0: #{convnext_block_with_concat.1}
  #allocation0 [shape = 'u32[]', space=smem, size = 0x4, offset = 0x4, fixed_abs, tag = 'smem constant byte address 0x4 - core index']
  #allocation1 [shape = 'u32[144,128]{1,0:T(1,128)}', space=vmem, size = 0x12000, scoped, tag = 'internal scratch']
  %s0 = inlined_call_operand.vmem [shape: f32[2,22,176], index: 0, kind: input, shape index: {}]
  %s1 = inlined_call_operand.vmem [shape: f32[7,176,128], index: 1, kind: input, shape index: {}]
  %s2 = inlined_call_operand.vmem [shape: f32[1,128], index: 2, kind: input, shape index: {}]
  %s3 = inlined_call_operand.vmem [shape: f32[128,128], index: 3, kind: input, shape index: {}]
  %s4 = inlined_call_operand.vmem [shape: f32[128,512], index: 4, kind: input, shape index: {}]
  %s5 = inlined_call_operand.vmem [shape: f32[1,512], index: 5, kind: input, shape index: {}]
  %s6 = inlined_call_operand.hbm [shape: f32[512,128], index: 6, kind: input, shape index: {}]
  %s7 = inlined_call_operand.vmem [shape: f32[1,128], index: 7, kind: input, shape index: {}]
  %s8 = inlined_call_operand.vmem [shape: f32[2,16,128], index: 8, kind: output, shape index: {}]
  %s9 = sld [smem:[#allocation0]]
  $region69: #{convnext_block_with_concat.1} parent=0
    _
  %s11 = ssub.s32 1, %s9
  %s12 = scalar_select 0, %s11, %s9
  $region1: #{convnext_block_with_concat.1} parent=0
    #allocation2 [shape = 'u8[262144]{0}', space=vmem, size = 0x40000, scoped, tag = 'input window, operand 6, single buffered']
    #allocation3 [shape = 's32[2]{0}', space=sflag, size = 0x8, scoped, tag = 'scoped memory for convnext_block_with_concat.1']
    %13 = vsyncpa [#allocation3], 0
    loop: start=0, step=1, limit=4
    $region2: #{convnext_block_with_concat.1} parent=1 // loop_pre_header
      _
    $region3: #{convnext_block_with_concat.1} parent=1 // loop_header
      %s15 = sphi 0, %s19
      %p16 = scmp.ge.s32.totalorder %s15, 4
      %s25 = sphi 0, %s27
      %s28 = sphi 0, %s25
      %s29 = sphi 0, %s28
      %s45 = sphi 0, %s29
      %s49 = sphi 0, %s49
      %s51 = sphi 0, %s49
      %s52 = sphi 0, %s51
      %s66 = sphi 0, %s52
      %s70 = sphi 0, %s70
      %s72 = sphi 0, %s70
      %s73 = sphi 0, %s72
      %s87 = sphi 0, %s73
      %s91 = sphi 0, %s91
      %s93 = sphi 0, %s91
      %s94 = sphi 0, %s93
      %s108 = sphi 0, %s94
      %s112 = sphi 0, %s112
      %s114 = sphi 0, %s112
      %s115 = sphi 0, %s114
      %s129 = sphi 0, %s115
      %s133 = sphi 0, %s133
      %s135 = sphi 0, %s133
      %s136 = sphi 0, %s135
      %s150 = sphi 0, %s136
      %s154 = sphi 0, %s154
      %s156 = sphi 0, %s154
      %s157 = sphi 0, %s156
      %s171 = sphi 0, %s157
      %s175 = sphi 0, %s175
      %s177 = sphi 0, %s175
      %s178 = sphi 0, %s177
      %s192 = sphi 0, %s178
      %s198 = sphi 0, %s200
      %s201 = sphi 0, %s198
      %s202 = sphi 0, %s201
      %s218 = sphi 0, %s202
    $region4: #{convnext_block_with_concat.1} parent=1 // loop_header_branch
      %18 = sbr.rel (%p16) target = $region8
    $region5: #{convnext_block_with_concat.1} parent=1 // loop_body
      %s20 = ssub.s32 %s15, 1
      %s21 = ssub.s32 %s15, 2
      %s22 = sadd.s32 %s15, 1
      %s23 = ssub.s32 %s15, %s22
      %p24 = scmp.eq.s32.totalorder %s23, 0
      %s26 = sadd.s32 %s25, 1
      %s27 = scalar_select %p24, %s25, %s26
      %p30 = pneg %p24
      %p31 = scmp.eq.s32.totalorder %s15, 1
      %p32 = por %p30, %p31
      %p33 = scmp.ne.s32.totalorder %s25, %s28
      %p34 = scmp.eq.s32.totalorder %s15, 0
      %p35 = por %p33, %p34
      %p36 = scmp.ne.s32.totalorder %s25, %s28
      %p37 = scmp.eq.s32.totalorder %s20, 1
      %p38 = por %p36, %p37
      %p39 = scmp.ne.s32.totalorder %s28, %s29
      %p40 = scmp.eq.s32.totalorder %s20, 0
      %p41 = por %p39, %p40
      %p42 = scmp.ne.s32.totalorder %s28, %s29
      %p43 = scmp.eq.s32.totalorder %s21, 1
      %p44 = por %p42, %p43
      %p46 = scmp.ne.s32.totalorder %s29, %s45
      %p47 = scmp.eq.s32.totalorder %s21, 0
      %p48 = por %p46, %p47
      %s50 = sadd.s32 %s49, 1
      %p53 = scmp.eq.s32.totalorder %s15, 1
      %p54 = scmp.ne.s32.totalorder %s49, %s51
      %p55 = scmp.eq.s32.totalorder %s15, 0
      %p56 = por %p54, %p55
      %p57 = scmp.ne.s32.totalorder %s49, %s51
      %p58 = scmp.eq.s32.totalorder %s20, 1
      %p59 = por %p57, %p58
      %p60 = scmp.ne.s32.totalorder %s51, %s52
      %p61 = scmp.eq.s32.totalorder %s20, 0
      %p62 = por %p60, %p61
      %p63 = scmp.ne.s32.totalorder %s51, %s52
      %p64 = scmp.eq.s32.totalorder %s21, 1
      %p65 = por %p63, %p64
      %p67 = scmp.ne.s32.totalorder %s52, %s66
      %p68 = scmp.eq.s32.totalorder %s21, 0
      %p69 = por %p67, %p68
      %s71 = sadd.s32 %s70, 1
      %p74 = scmp.eq.s32.totalorder %s15, 1
      %p75 = scmp.ne.s32.totalorder %s70, %s72
      %p76 = scmp.eq.s32.totalorder %s15, 0
      %p77 = por %p75, %p76
      %p78 = scmp.ne.s32.totalorder %s70, %s72
      %p79 = scmp.eq.s32.totalorder %s20, 1
      %p80 = por %p78, %p79
      %p81 = scmp.ne.s32.totalorder %s72, %s73
      %p82 = scmp.eq.s32.totalorder %s20, 0
      %p83 = por %p81, %p82
      %p84 = scmp.ne.s32.totalorder %s72, %s73
      %p85 = scmp.eq.s32.totalorder %s21, 1
      %p86 = por %p84, %p85
      %p88 = scmp.ne.s32.totalorder %s73, %s87
      %p89 = scmp.eq.s32.totalorder %s21, 0
      %p90 = por %p88, %p89
      %s92 = sadd.s32 %s91, 1
      %p95 = scmp.eq.s32.totalorder %s15, 1
      %p96 = scmp.ne.s32.totalorder %s91, %s93
      %p97 = scmp.eq.s32.totalorder %s15, 0
      %p98 = por %p96, %p97
      %p99 = scmp.ne.s32.totalorder %s91, %s93
      %p100 = scmp.eq.s32.totalorder %s20, 1
      %p101 = por %p99, %p100
      %p102 = scmp.ne.s32.totalorder %s93, %s94
      %p103 = scmp.eq.s32.totalorder %s20, 0
      %p104 = por %p102, %p103
      %p105 = scmp.ne.s32.totalorder %s93, %s94
      %p106 = scmp.eq.s32.totalorder %s21, 1
      %p107 = por %p105, %p106
      %p109 = scmp.ne.s32.totalorder %s94, %s108
      %p110 = scmp.eq.s32.totalorder %s21, 0
      %p111 = por %p109, %p110
      %s113 = sadd.s32 %s112, 1
      %p116 = scmp.eq.s32.totalorder %s15, 1
      %p117 = scmp.ne.s32.totalorder %s112, %s114
      %p118 = scmp.eq.s32.totalorder %s15, 0
      %p119 = por %p117, %p118
      %p120 = scmp.ne.s32.totalorder %s112, %s114
      %p121 = scmp.eq.s32.totalorder %s20, 1
      %p122 = por %p120, %p121
      %p123 = scmp.ne.s32.totalorder %s114, %s115
      %p124 = scmp.eq.s32.totalorder %s20, 0
      %p125 = por %p123, %p124
      %p126 = scmp.ne.s32.totalorder %s114, %s115
      %p127 = scmp.eq.s32.totalorder %s21, 1
      %p128 = por %p126, %p127
      %p130 = scmp.ne.s32.totalorder %s115, %s129
      %p131 = scmp.eq.s32.totalorder %s21, 0
      %p132 = por %p130, %p131
      %s134 = sadd.s32 %s133, 1
      %p137 = scmp.eq.s32.totalorder %s15, 1
      %p138 = scmp.ne.s32.totalorder %s133, %s135
      %p139 = scmp.eq.s32.totalorder %s15, 0
      %p140 = por %p138, %p139
      %p141 = scmp.ne.s32.totalorder %s133, %s135
      %p142 = scmp.eq.s32.totalorder %s20, 1
      %p143 = por %p141, %p142
      %p144 = scmp.ne.s32.totalorder %s135, %s136
      %p145 = scmp.eq.s32.totalorder %s20, 0
      %p146 = por %p144, %p145
      %p147 = scmp.ne.s32.totalorder %s135, %s136
      %p148 = scmp.eq.s32.totalorder %s21, 1
      %p149 = por %p147, %p148
      %p151 = scmp.ne.s32.totalorder %s136, %s150
      %p152 = scmp.eq.s32.totalorder %s21, 0
      %p153 = por %p151, %p152
      %s155 = sadd.s32 %s154, 1
      %p158 = scmp.eq.s32.totalorder %s15, 1
      %p159 = scmp.ne.s32.totalorder %s154, %s156
      %p160 = scmp.eq.s32.totalorder %s15, 0
      %p161 = por %p159, %p160
      %p162 = scmp.ne.s32.totalorder %s154, %s156
      %p163 = scmp.eq.s32.totalorder %s20, 1
      %p164 = por %p162, %p163
      %p165 = scmp.ne.s32.totalorder %s156, %s157
      %p166 = scmp.eq.s32.totalorder %s20, 0
      %p167 = por %p165, %p166
      %p168 = scmp.ne.s32.totalorder %s156, %s157
      %p169 = scmp.eq.s32.totalorder %s21, 1
      %p170 = por %p168, %p169
      %p172 = scmp.ne.s32.totalorder %s157, %s171
      %p173 = scmp.eq.s32.totalorder %s21, 0
      %p174 = por %p172, %p173
      %s176 = sadd.s32 %s175, 1
      %p179 = scmp.eq.s32.totalorder %s15, 1
      %p180 = scmp.ne.s32.totalorder %s175, %s177
      %p181 = scmp.eq.s32.totalorder %s15, 0
      %p182 = por %p180, %p181
      %p183 = scmp.ne.s32.totalorder %s175, %s177
      %p184 = scmp.eq.s32.totalorder %s20, 1
      %p185 = por %p183, %p184
      %p186 = scmp.ne.s32.totalorder %s177, %s178
      %p187 = scmp.eq.s32.totalorder %s20, 0
      %p188 = por %p186, %p187
      %p189 = scmp.ne.s32.totalorder %s177, %s178
      %p190 = scmp.eq.s32.totalorder %s21, 1
      %p191 = por %p189, %p190
      %p193 = scmp.ne.s32.totalorder %s178, %s192
      %p194 = scmp.eq.s32.totalorder %s21, 0
      %p195 = por %p193, %p194
      %s196 = ssub.s32 %s15, %s22
      %p197 = scmp.eq.s32.totalorder %s196, 0
      %s199 = sadd.s32 %s198, 1
      %s200 = scalar_select %p197, %s198, %s199
      %p203 = pneg %p197
      %p204 = scmp.eq.s32.totalorder %s15, 1
      %p205 = por %p203, %p204
      %p206 = scmp.ne.s32.totalorder %s198, %s201
      %p207 = scmp.eq.s32.totalorder %s15, 0
      %p208 = por %p206, %p207
      %p209 = scmp.ne.s32.totalorder %s198, %s201
      %p210 = scmp.eq.s32.totalorder %s20, 1
      %p211 = por %p209, %p210
      %p212 = scmp.ne.s32.totalorder %s201, %s202
      %p213 = scmp.eq.s32.totalorder %s20, 0
      %p214 = por %p212, %p213
      %p215 = scmp.ne.s32.totalorder %s201, %s202
      %p216 = scmp.eq.s32.totalorder %s21, 1
      %p217 = por %p215, %p216
      %p219 = scmp.ne.s32.totalorder %s202, %s218
      %p220 = scmp.eq.s32.totalorder %s21, 0
      %p221 = por %p219, %p220
      %p222 = scmp.le.s32.totalorder 1, %s15
      %p223 = scmp.lt.s32.totalorder %s15, 3
      %p224 = pnand %p222, %p223
      %p225 = pneg %p224
      // Predicated region
      $region9: #{convnext_block_with_concat.1} parent=5 // pred_check
        _
      $region10: #{convnext_block_with_concat.1} parent=5 // pred_check_branch
        %227 = sbr.rel (%p224) target = $region12
      $region11: #{convnext_block_with_concat.1} parent=5 // pred_region
        %s228 = ssub.s32 %s15, 1
        // Predicated region
        $region13: #{convnext_block_with_concat.1} parent=11 // pred_check
          %p229 = pneg %p62
        $region14: #{convnext_block_with_concat.1} parent=11 // pred_check_branch
          %231 = sbr.rel (%p229) target = $region16
        $region15: #{convnext_block_with_concat.1} parent=11 // pred_region
          _
        $region16: #{convnext_block_with_concat.1} parent=11 // pred_fallthru
          _
        // Predicated region
        $region17: #{convnext_block_with_concat.1} parent=11 // pred_check
          %p232 = pneg %p83
        $region18: #{convnext_block_with_concat.1} parent=11 // pred_check_branch
          %234 = sbr.rel (%p232) target = $region20
        $region19: #{convnext_block_with_concat.1} parent=11 // pred_region
          _
        $region20: #{convnext_block_with_concat.1} parent=11 // pred_fallthru
          _
        // Predicated region
        $region21: #{convnext_block_with_concat.1} parent=11 // pred_check
          %p235 = pneg %p104
        $region22: #{convnext_block_with_concat.1} parent=11 // pred_check_branch
          %237 = sbr.rel (%p235) target = $region24
        $region23: #{convnext_block_with_concat.1} parent=11 // pred_region
          _
        $region24: #{convnext_block_with_concat.1} parent=11 // pred_fallthru
          _
        // Predicated region
        $region25: #{convnext_block_with_concat.1} parent=11 // pred_check
          %p238 = pneg %p125
        $region26: #{convnext_block_with_concat.1} parent=11 // pred_check_branch
          %240 = sbr.rel (%p238) target = $region28
        $region27: #{convnext_block_with_concat.1} parent=11 // pred_region
          _
        $region28: #{convnext_block_with_concat.1} parent=11 // pred_fallthru
          _
        // Predicated region
        $region29: #{convnext_block_with_concat.1} parent=11 // pred_check
          %p241 = pneg %p146
        $region30: #{convnext_block_with_concat.1} parent=11 // pred_check_branch
          %243 = sbr.rel (%p241) target = $region32
        $region31: #{convnext_block_with_concat.1} parent=11 // pred_region
          _
        $region32: #{convnext_block_with_concat.1} parent=11 // pred_fallthru
          _
        // Predicated region
        $region33: #{convnext_block_with_concat.1} parent=11 // pred_check
          %p244 = pneg %p167
        $region34: #{convnext_block_with_concat.1} parent=11 // pred_check_branch
          %246 = sbr.rel (%p244) target = $region36
        $region35: #{convnext_block_with_concat.1} parent=11 // pred_region
          %s248 = ssub.s32 8192, 8192
          %249 = vsyncadd [#allocation3], %s248
          %s250 = sshll.u32 [#allocation2], 4
          %s251 = int_to_ptr.vmem [resolvable:$true] %s250
          %256 = dma.hbm_to_vmem [thread:$0]  %s6, 8192, %s251, [#allocation3], 128, 128, 8
        $region36: #{convnext_block_with_concat.1} parent=11 // pred_fallthru
          _
        // Predicated region
        $region37: #{convnext_block_with_concat.1} parent=11 // pred_check
          %p257 = pneg %p188
        $region38: #{convnext_block_with_concat.1} parent=11 // pred_check_branch
          %259 = sbr.rel (%p257) target = $region40
        $region39: #{convnext_block_with_concat.1} parent=11 // pred_region
          _
        $region40: #{convnext_block_with_concat.1} parent=11 // pred_fallthru
          _
      $region12: #{convnext_block_with_concat.1} parent=5 // pred_fallthru
        _
      %p260 = scmp.lt.s32.totalorder %s15, 2
      // Predicated region
      $region41: #{convnext_block_with_concat.1} parent=5 // pred_check
        %p261 = pneg %p260
      $region42: #{convnext_block_with_concat.1} parent=5 // pred_check_branch
        %263 = sbr.rel (%p261) target = $region44
      $region43: #{convnext_block_with_concat.1} parent=5 // pred_region
        // Predicated region
        $region45: #{convnext_block_with_concat.1} parent=43 // pred_check
          %p264 = pneg %p35
        $region46: #{convnext_block_with_concat.1} parent=43 // pred_check_branch
          %266 = sbr.rel (%p264) target = $region48
        $region47: #{convnext_block_with_concat.1} parent=43 // pred_region
          %p267 = scmp.lt.s32.totalorder %s15, 1
          %s268 = scalar_select %p267, %s15, 1
          %s269 = smul.addr %s268, 6
          %s270 = smul.addr %s269, 8
          %s271 = scalar_lea.vmem %s0, %s270
        $region48: #{convnext_block_with_concat.1} parent=43 // pred_fallthru
          _
      $region44: #{convnext_block_with_concat.1} parent=5 // pred_fallthru
        _
      %p272 = scmp.le.s32.totalorder 1, %s15
      %p273 = scmp.lt.s32.totalorder %s15, 3
      %p274 = pnand %p272, %p273
      %p275 = pneg %p274
      // Predicated region
      $region49: #{convnext_block_with_concat.1} parent=5 // pred_check
        _
      $region50: #{convnext_block_with_concat.1} parent=5 // pred_check_branch
        %277 = sbr.rel (%p274) target = $region52
      $region51: #{convnext_block_with_concat.1} parent=5 // pred_region
        %s278 = ssub.s32 %s15, 1
        // Predicated region
        $region53: #{convnext_block_with_concat.1} parent=51 // pred_check
          %p279 = pneg %p167
        $region54: #{convnext_block_with_concat.1} parent=51 // pred_check_branch
          %281 = sbr.rel (%p279) target = $region56
        $region55: #{convnext_block_with_concat.1} parent=51 // pred_region
          %282 = dma.done [#allocation3], 8192
        $region56: #{convnext_block_with_concat.1} parent=51 // pred_fallthru
          _
        %p283 = scmp.lt.s32.totalorder %s20, 1
        %s284 = scalar_select %p283, %s20, 1
        %s285 = smul.addr %s284, 6
        %s286 = smul.addr %s285, 8
        %s287 = scalar_lea.vmem %s0, %s286
        %p288 = pneg %p41
        %p289 = pneg %p38
        %p290 = pneg %p62
        %p291 = pneg %p59
        %p292 = pneg %p83
        %p293 = pneg %p80
        %p294 = pneg %p104
        %p295 = pneg %p101
        %p296 = pneg %p125
        %p297 = pneg %p122
        %p298 = pneg %p146
        %p299 = pneg %p143
        %p300 = pneg %p167
        %p301 = pneg %p164
        %p302 = pneg %p188
        %p303 = pneg %p185
        %p304 = pneg %p214
        %p305 = pneg %p211
        %p306 = scmp.lt.s32.totalorder %s20, 1
        %s307 = scalar_select %p306, %s20, 1
        %s308 = smul.addr %s307, 2
        %s309 = smul.addr %s308, 8
        %s310 = scalar_lea.vmem %s8, %s309
        %p311 = scmp.lt.s32.totalorder %s20, 1
        %s312 = scalar_select %p311, %s20, 1
        %s313 = smul.addr %s312, 6
        %s314 = smul.addr %s313, 8
        %s315 = scalar_lea.vmem %s0, %s314
        %p316 = scmp.lt.s32.totalorder %s20, 1
        %s317 = scalar_select %p316, %s20, 1
        %s318 = smul.addr %s317, 2
        %s319 = smul.addr %s318, 8
        %s320 = scalar_lea.vmem %s8, %s319
        %v321 = vld [vmem:[%s315] sm:$0xff]
        %v322 = vld [vmem:[%s315 + $0x8] sm:$0xff]
        %v323 = vld [vmem:[%s315 + $0x10] sm:$0xff]
        %v324 = vld [vmem:[%s315 + $0x18] sm:$0xff]
        %v325 = vld [vmem:[%s315 + $0x20] sm:$0x3f]
        %v326 = vld [vmem:[%s315 + $0x28] sm:$0x3f]
        %v327 = vld [vmem:[%s1] sm:$0xff]
        %v328 = vld [vmem:[%s1 + $0x8] sm:$0xff]
        %v329 = vld [vmem:[%s1 + $0x10] sm:$0xff]
        %v330 = vld [vmem:[%s1 + $0x18] sm:$0xff]
        %v331 = vld [vmem:[%s1 + $0x20] sm:$0xff]
        %v332 = vld [vmem:[%s1 + $0x28] sm:$0xff]
        %v333 = vld [vmem:[%s1 + $0x30] sm:$0xff]
        %v334 = vld [vmem:[%s1 + $0x38] sm:$0xff]
        %v335 = vld [vmem:[%s1 + $0x40] sm:$0xff]
        %v336 = vld [vmem:[%s1 + $0x48] sm:$0xff]
        %v337 = vld [vmem:[%s1 + $0x50] sm:$0xff]
        %v338 = vld [vmem:[%s1 + $0x58] sm:$0xff]
        %v339 = vld [vmem:[%s1 + $0x60] sm:$0xff]
        %v340 = vld [vmem:[%s1 + $0x68] sm:$0xff]
        %v341 = vld [vmem:[%s1 + $0x70] sm:$0xff]
        %v342 = vld [vmem:[%s1 + $0x78] sm:$0xff]
        %v343 = vld [vmem:[%s1 + $0x80] sm:$0xff]
        %v344 = vld [vmem:[%s1 + $0x88] sm:$0xff]
        %v345 = vld [vmem:[%s1 + $0x90] sm:$0xff]
        %v346 = vld [vmem:[%s1 + $0x98] sm:$0xff]
        %v347 = vld [vmem:[%s1 + $0xa0] sm:$0xff]
        %v348 = vld [vmem:[%s1 + $0xa8] sm:$0xff]
        %v349 = vld [vmem:[%s2] sm:$0x1]
        %v351 = vlaneseq
        %v352 = vshrl.u32 %v351, 7
        %v353 = vsub.s32 0, %v352
        %v354 = vrot.slane %v349, %v353
        %vm356 = vcmask 392192
        %v358 = vsel %vm356, %v322, 0
        %v361 = vsel %vm356, %v324, 0
        %363 = vmatprep.subr.mxu0 0.0
        %364 = vmatpush1.msra.mxu0 %v342
        %365 = vmatprep.subr.mxu0 0.0
        %366 = vmatpush1.msra.mxu0 %v341
        %367 = vmatprep.subr.mxu0 0.0
        %368 = vmatpush1.msra.mxu0 %v340
        %369 = vmatprep.subr.mxu0 0.0
        %370 = vmatpush1.msra.mxu0 %v339
        %371 = vmatprep.subr.mxu0 0.0
        %372 = vmatpush1.msra.mxu0 %v338
        %373 = vmatprep.subr.mxu0 0.0
        %374 = vmatpush1.msra.mxu0 %v337
        %375 = vmatprep.subr.mxu0 0.0
        %376 = vmatpush1.msra.mxu0 %v336
        %377 = vmatprep.subr.mxu0 0.0
        %378 = vmatpush1.msra.mxu0 %v335
        %379 = vmatprep.subr.mxu0 0.0
        %380 = vmatpush1.msra.mxu0 %v334
        %381 = vmatprep.subr.mxu0 0.0
        %382 = vmatpush1.msra.mxu0 %v333
        %383 = vmatprep.subr.mxu0 0.0
        %384 = vmatpush1.msra.mxu0 %v332
        %385 = vmatprep.subr.mxu0 0.0
        %386 = vmatpush1.msra.mxu0 %v331
        %387 = vmatprep.subr.mxu0 0.0
        %388 = vmatpush1.msra.mxu0 %v330
        %389 = vmatprep.subr.mxu0 0.0
        %390 = vmatpush1.msra.mxu0 %v329
        %391 = vmatprep.subr.mxu0 0.0
        %392 = vmatpush1.msra.mxu0 %v328
        %393 = vmatprep.subr.mxu0 0.0
        %394 = vmatpush1.msra.mxu0 %v327
        %395 = vmatprep.subr.mxu0 0.0
        %396 = vmatpush2.msra.mxu0 0.0
        %397 = vmatprep.subr.mxu0 0.0
        %398 = vmatpush2.msra.mxu0 0.0
        %399 = vmatprep.subr.mxu0 0.0
        %400 = vmatpush2.msra.mxu0 0.0
        %401 = vmatprep.subr.mxu0 0.0
        %402 = vmatpush2.msra.mxu0 0.0
        %403 = vmatprep.subr.mxu0 0.0
        %404 = vmatpush2.msra.mxu0 0.0
        %405 = vmatprep.subr.mxu0 0.0
        %406 = vmatpush2.msra.mxu0 0.0
        %407 = vmatprep.subr.mxu0 0.0
        %408 = vmatpush2.msra.mxu0 0.0
        %409 = vmatprep.subr.mxu0 0.0
        %410 = vmatpush2.msra.mxu0 0.0
        %411 = vmatprep.subr.mxu0 0.0
        %412 = vmatpush2.msra.mxu0 0.0
        %413 = vmatprep.subr.mxu0 0.0
        %414 = vmatpush2.msra.mxu0 0.0
        %415 = vmatprep.subr.mxu0 0.0
        %416 = vmatpush2.msra.mxu0 %v348
        %417 = vmatprep.subr.mxu0 0.0
        %418 = vmatpush2.msra.mxu0 %v347
        %419 = vmatprep.subr.mxu0 0.0
        %420 = vmatpush2.msra.mxu0 %v346
        %421 = vmatprep.subr.mxu0 0.0
        %422 = vmatpush2.msra.mxu0 %v345
        %423 = vmatprep.subr.mxu0 0.0
        %424 = vmatpush2.msra.mxu0 %v344
        %425 = vmatprep.subr.mxu0 0.0
        %426 = vmatpush2.msra.mxu0 %v343
        %427 = vmatprep.mubr.f32.mxu0 %v358
        %428 = vmatmul.mubr.f32.gmra.mxu0 %v321
        %v429 = vpop.f32.mrf.mxu0
        %v430 = vadd.f32 %v354, %v429
        %v431 = vpop.f32.mrf.mxu0
        %432 = vmatprep.mubr.f32.mxu0 %v361
        %433 = vmatmul.mubr.f32.gmra.mxu0 %v323
        %v434 = vpop.f32.mrf.mxu0
        %v435 = vadd.f32 %v354, %v434
        %v436 = vpop.f32.mrf.mxu0
        %437 = vdwg.mxu0
        %s438 = scalar_lea.vmem %s1, 176
        %v439 = vld [vmem:[%s438] sm:$0xff]
        %v440 = vld [vmem:[%s438 + $0x8] sm:$0xff]
        %v441 = vld [vmem:[%s438 + $0x10] sm:$0xff]
        %v442 = vld [vmem:[%s438 + $0x18] sm:$0xff]
        %v443 = vld [vmem:[%s438 + $0x20] sm:$0xff]
        %v444 = vld [vmem:[%s438 + $0x28] sm:$0xff]
        %v445 = vld [vmem:[%s438 + $0x30] sm:$0xff]
        %v446 = vld [vmem:[%s438 + $0x38] sm:$0xff]
        %v447 = vld [vmem:[%s438 + $0x40] sm:$0xff]
        %v448 = vld [vmem:[%s438 + $0x48] sm:$0xff]
        %v449 = vld [vmem:[%s438 + $0x50] sm:$0xff]
        %v450 = vld [vmem:[%s438 + $0x58] sm:$0xff]
        %v451 = vld [vmem:[%s438 + $0x60] sm:$0xff]
        %v452 = vld [vmem:[%s438 + $0x68] sm:$0xff]
        %v453 = vld [vmem:[%s438 + $0x70] sm:$0xff]
        %v454 = vld [vmem:[%s438 + $0x78] sm:$0xff]
        %v455 = vld [vmem:[%s438 + $0x80] sm:$0xff]
        %v456 = vld [vmem:[%s438 + $0x88] sm:$0xff]
        %v457 = vld [vmem:[%s438 + $0x90] sm:$0xff]
        %v458 = vld [vmem:[%s438 + $0x98] sm:$0xff]
        %v459 = vld [vmem:[%s438 + $0xa0] sm:$0xff]
        %v460 = vld [vmem:[%s438 + $0xa8] sm:$0xff]
        %vm465 = vcmask 1046528
        %v466 = vrot.slane %v321, 1
        %v467 = vrot.slane %v323, 1
        %v468 = vsel %vm465, %v466, %v467
        %v469 = vrot.slane %v322, 1
        %v470 = vrot.slane %v324, 1
        %v471 = vsel %vm465, %v469, %v470
        %v472 = vrot.slane %v325, 1
        %v473 = vsel %vm465, %v467, %v472
        %v474 = vrot.slane %v326, 1
        %v475 = vsel %vm465, %v470, %v474
        %v478 = vsel %vm356, %v471, 0
        %v480 = vsel %vm356, %v475, 0
        %482 = vmatprep.subr.mxu0 0.0
        %483 = vmatpush1.msra.mxu0 %v454
        %484 = vmatprep.subr.mxu0 0.0
        %485 = vmatpush1.msra.mxu0 %v453
        %486 = vmatprep.subr.mxu0 0.0
        %487 = vmatpush1.msra.mxu0 %v452
        %488 = vmatprep.subr.mxu0 0.0
        %489 = vmatpush1.msra.mxu0 %v451
        %490 = vmatprep.subr.mxu0 0.0
        %491 = vmatpush1.msra.mxu0 %v450
        %492 = vmatprep.subr.mxu0 0.0
        %493 = vmatpush1.msra.mxu0 %v449
        %494 = vmatprep.subr.mxu0 0.0
        %495 = vmatpush1.msra.mxu0 %v448
        %496 = vmatprep.subr.mxu0 0.0
        %497 = vmatpush1.msra.mxu0 %v447
        %498 = vmatprep.subr.mxu0 0.0
        %499 = vmatpush1.msra.mxu0 %v446
        %500 = vmatprep.subr.mxu0 0.0
        %501 = vmatpush1.msra.mxu0 %v445
        %502 = vmatprep.subr.mxu0 0.0
        %503 = vmatpush1.msra.mxu0 %v444
        %504 = vmatprep.subr.mxu0 0.0
        %505 = vmatpush1.msra.mxu0 %v443
        %506 = vmatprep.subr.mxu0 0.0
        %507 = vmatpush1.msra.mxu0 %v442
        %508 = vmatprep.subr.mxu0 0.0
        %509 = vmatpush1.msra.mxu0 %v441
        %510 = vmatprep.subr.mxu0 0.0
        %511 = vmatpush1.msra.mxu0 %v440
        %512 = vmatprep.subr.mxu0 0.0
        %513 = vmatpush1.msra.mxu0 %v439
        %514 = vmatprep.subr.mxu0 0.0
        %515 = vmatpush2.msra.mxu0 0.0
        %516 = vmatprep.subr.mxu0 0.0
        %517 = vmatpush2.msra.mxu0 0.0
        %518 = vmatprep.subr.mxu0 0.0
        %519 = vmatpush2.msra.mxu0 0.0
        %520 = vmatprep.subr.mxu0 0.0
        %521 = vmatpush2.msra.mxu0 0.0
        %522 = vmatprep.subr.mxu0 0.0
        %523 = vmatpush2.msra.mxu0 0.0
        %524 = vmatprep.subr.mxu0 0.0
        %525 = vmatpush2.msra.mxu0 0.0
        %526 = vmatprep.subr.mxu0 0.0
        %527 = vmatpush2.msra.mxu0 0.0
        %528 = vmatprep.subr.mxu0 0.0
        %529 = vmatpush2.msra.mxu0 0.0
        %530 = vmatprep.subr.mxu0 0.0
        %531 = vmatpush2.msra.mxu0 0.0
        %532 = vmatprep.subr.mxu0 0.0
        %533 = vmatpush2.msra.mxu0 0.0
        %534 = vmatprep.subr.mxu0 0.0
        %535 = vmatpush2.msra.mxu0 %v460
        %536 = vmatprep.subr.mxu0 0.0
        %537 = vmatpush2.msra.mxu0 %v459
        %538 = vmatprep.subr.mxu0 0.0
        %539 = vmatpush2.msra.mxu0 %v458
        %540 = vmatprep.subr.mxu0 0.0
        %541 = vmatpush2.msra.mxu0 %v457
        %542 = vmatprep.subr.mxu0 0.0
        %543 = vmatpush2.msra.mxu0 %v456
        %544 = vmatprep.subr.mxu0 0.0
        %545 = vmatpush2.msra.mxu0 %v455
        %546 = vmatprep.mubr.f32.mxu0 %v478
        %547 = vmatmul.mubr.f32.gmra.mxu0 %v468
        %v548 = vpop.f32.mrf.mxu0
        %v549 = vadd.f32 0.0, %v548
        %v550 = vpop.f32.mrf.mxu0
        %551 = vmatprep.mubr.f32.mxu0 %v480
        %552 = vmatmul.mubr.f32.gmra.mxu0 %v473
        %v553 = vpop.f32.mrf.mxu0
        %v554 = vadd.f32 0.0, %v553
        %v555 = vpop.f32.mrf.mxu0
        %556 = vdwg.mxu0
        %v557 = vadd.f32 %v430, %v549
        %v558 = vadd.f32 %v435, %v554
        %s559 = scalar_lea.vmem %s1, 352
        %v560 = vld [vmem:[%s559] sm:$0xff]
        %v561 = vld [vmem:[%s559 + $0x8] sm:$0xff]
        %v562 = vld [vmem:[%s559 + $0x10] sm:$0xff]
        %v563 = vld [vmem:[%s559 + $0x18] sm:$0xff]
        %v564 = vld [vmem:[%s559 + $0x20] sm:$0xff]
        %v565 = vld [vmem:[%s559 + $0x28] sm:$0xff]
        %v566 = vld [vmem:[%s559 + $0x30] sm:$0xff]
        %v567 = vld [vmem:[%s559 + $0x38] sm:$0xff]
        %v568 = vld [vmem:[%s559 + $0x40] sm:$0xff]
        %v569 = vld [vmem:[%s559 + $0x48] sm:$0xff]
        %v570 = vld [vmem:[%s559 + $0x50] sm:$0xff]
        %v571 = vld [vmem:[%s559 + $0x58] sm:$0xff]
        %v572 = vld [vmem:[%s559 + $0x60] sm:$0xff]
        %v573 = vld [vmem:[%s559 + $0x68] sm:$0xff]
        %v574 = vld [vmem:[%s559 + $0x70] sm:$0xff]
        %v575 = vld [vmem:[%s559 + $0x78] sm:$0xff]
        %v576 = vld [vmem:[%s559 + $0x80] sm:$0xff]
        %v577 = vld [vmem:[%s559 + $0x88] sm:$0xff]
        %v578 = vld [vmem:[%s559 + $0x90] sm:$0xff]
        %v579 = vld [vmem:[%s559 + $0x98] sm:$0xff]
        %v580 = vld [vmem:[%s559 + $0xa0] sm:$0xff]
        %v581 = vld [vmem:[%s559 + $0xa8] sm:$0xff]
        %vm582 = vcmask 1045504
        %v583 = vrot.slane %v321, 2
        %v584 = vrot.slane %v323, 2
        %v585 = vsel %vm582, %v583, %v584
        %v586 = vrot.slane %v322, 2
        %v587 = vrot.slane %v324, 2
        %v588 = vsel %vm582, %v586, %v587
        %v589 = vrot.slane %v325, 2
        %v590 = vsel %vm582, %v584, %v589
        %v591 = vrot.slane %v326, 2
        %v592 = vsel %vm582, %v587, %v591
        %v595 = vsel %vm356, %v588, 0
        %v597 = vsel %vm356, %v592, 0
        %599 = vmatprep.subr.mxu0 0.0
        %600 = vmatpush1.msra.mxu0 %v575
        %601 = vmatprep.subr.mxu0 0.0
        %602 = vmatpush1.msra.mxu0 %v574
        %603 = vmatprep.subr.mxu0 0.0
        %604 = vmatpush1.msra.mxu0 %v573
        %605 = vmatprep.subr.mxu0 0.0
        %606 = vmatpush1.msra.mxu0 %v572
        %607 = vmatprep.subr.mxu0 0.0
        %608 = vmatpush1.msra.mxu0 %v571
        %609 = vmatprep.subr.mxu0 0.0
        %610 = vmatpush1.msra.mxu0 %v570
        %611 = vmatprep.subr.mxu0 0.0
        %612 = vmatpush1.msra.mxu0 %v569
        %613 = vmatprep.subr.mxu0 0.0
        %614 = vmatpush1.msra.mxu0 %v568
        %615 = vmatprep.subr.mxu0 0.0
        %616 = vmatpush1.msra.mxu0 %v567
        %617 = vmatprep.subr.mxu0 0.0
        %618 = vmatpush1.msra.mxu0 %v566
        %619 = vmatprep.subr.mxu0 0.0
        %620 = vmatpush1.msra.mxu0 %v565
        %621 = vmatprep.subr.mxu0 0.0
        %622 = vmatpush1.msra.mxu0 %v564
        %623 = vmatprep.subr.mxu0 0.0
        %624 = vmatpush1.msra.mxu0 %v563
        %625 = vmatprep.subr.mxu0 0.0
        %626 = vmatpush1.msra.mxu0 %v562
        %627 = vmatprep.subr.mxu0 0.0
        %628 = vmatpush1.msra.mxu0 %v561
        %629 = vmatprep.subr.mxu0 0.0
        %630 = vmatpush1.msra.mxu0 %v560
        %631 = vmatprep.subr.mxu0 0.0
        %632 = vmatpush2.msra.mxu0 0.0
        %633 = vmatprep.subr.mxu0 0.0
        %634 = vmatpush2.msra.mxu0 0.0
        %635 = vmatprep.subr.mxu0 0.0
        %636 = vmatpush2.msra.mxu0 0.0
        %637 = vmatprep.subr.mxu0 0.0
        %638 = vmatpush2.msra.mxu0 0.0
        %639 = vmatprep.subr.mxu0 0.0
        %640 = vmatpush2.msra.mxu0 0.0
        %641 = vmatprep.subr.mxu0 0.0
        %642 = vmatpush2.msra.mxu0 0.0
        %643 = vmatprep.subr.mxu0 0.0
        %644 = vmatpush2.msra.mxu0 0.0
        %645 = vmatprep.subr.mxu0 0.0
        %646 = vmatpush2.msra.mxu0 0.0
        %647 = vmatprep.subr.mxu0 0.0
        %648 = vmatpush2.msra.mxu0 0.0
        %649 = vmatprep.subr.mxu0 0.0
        %650 = vmatpush2.msra.mxu0 0.0
        %651 = vmatprep.subr.mxu0 0.0
        %652 = vmatpush2.msra.mxu0 %v581
        %653 = vmatprep.subr.mxu0 0.0
        %654 = vmatpush2.msra.mxu0 %v580
        %655 = vmatprep.subr.mxu0 0.0
        %656 = vmatpush2.msra.mxu0 %v579
        %657 = vmatprep.subr.mxu0 0.0
        %658 = vmatpush2.msra.mxu0 %v578
        %659 = vmatprep.subr.mxu0 0.0
        %660 = vmatpush2.msra.mxu0 %v577
        %661 = vmatprep.subr.mxu0 0.0
        %662 = vmatpush2.msra.mxu0 %v576
        %663 = vmatprep.mubr.f32.mxu0 %v595
        %664 = vmatmul.mubr.f32.gmra.mxu0 %v585
        %v665 = vpop.f32.mrf.mxu0
        %v666 = vadd.f32 0.0, %v665
        %v667 = vpop.f32.mrf.mxu0
        %668 = vmatprep.mubr.f32.mxu0 %v597
        %669 = vmatmul.mubr.f32.gmra.mxu0 %v590
        %v670 = vpop.f32.mrf.mxu0
        %v671 = vadd.f32 0.0, %v670
        %v672 = vpop.f32.mrf.mxu0
        %673 = vdwg.mxu0
        %v674 = vadd.f32 %v557, %v666
        %v675 = vadd.f32 %v558, %v671
        %s676 = scalar_lea.vmem %s1, 528
        %v677 = vld [vmem:[%s676] sm:$0xff]
        %v678 = vld [vmem:[%s676 + $0x8] sm:$0xff]
        %v679 = vld [vmem:[%s676 + $0x10] sm:$0xff]
        %v680 = vld [vmem:[%s676 + $0x18] sm:$0xff]
        %v681 = vld [vmem:[%s676 + $0x20] sm:$0xff]
        %v682 = vld [vmem:[%s676 + $0x28] sm:$0xff]
        %v683 = vld [vmem:[%s676 + $0x30] sm:$0xff]
        %v684 = vld [vmem:[%s676 + $0x38] sm:$0xff]
        %v685 = vld [vmem:[%s676 + $0x40] sm:$0xff]
        %v686 = vld [vmem:[%s676 + $0x48] sm:$0xff]
        %v687 = vld [vmem:[%s676 + $0x50] sm:$0xff]
        %v688 = vld [vmem:[%s676 + $0x58] sm:$0xff]
        %v689 = vld [vmem:[%s676 + $0x60] sm:$0xff]
        %v690 = vld [vmem:[%s676 + $0x68] sm:$0xff]
        %v691 = vld [vmem:[%s676 + $0x70] sm:$0xff]
        %v692 = vld [vmem:[%s676 + $0x78] sm:$0xff]
        %v693 = vld [vmem:[%s676 + $0x80] sm:$0xff]
        %v694 = vld [vmem:[%s676 + $0x88] sm:$0xff]
        %v695 = vld [vmem:[%s676 + $0x90] sm:$0xff]
        %v696 = vld [vmem:[%s676 + $0x98] sm:$0xff]
        %v697 = vld [vmem:[%s676 + $0xa0] sm:$0xff]
        %v698 = vld [vmem:[%s676 + $0xa8] sm:$0xff]
        %vm699 = vcmask 1044480
        %v700 = vrot.slane %v321, 3
        %v701 = vrot.slane %v323, 3
        %v702 = vsel %vm699, %v700, %v701
        %v703 = vrot.slane %v322, 3
        %v704 = vrot.slane %v324, 3
        %v705 = vsel %vm699, %v703, %v704
        %v706 = vrot.slane %v325, 3
        %v707 = vsel %vm699, %v701, %v706
        %v708 = vrot.slane %v326, 3
        %v709 = vsel %vm699, %v704, %v708
        %v712 = vsel %vm356, %v705, 0
        %v714 = vsel %vm356, %v709, 0
        %716 = vmatprep.subr.mxu0 0.0
        %717 = vmatpush1.msra.mxu0 %v692
        %718 = vmatprep.subr.mxu0 0.0
        %719 = vmatpush1.msra.mxu0 %v691
        %720 = vmatprep.subr.mxu0 0.0
        %721 = vmatpush1.msra.mxu0 %v690
        %722 = vmatprep.subr.mxu0 0.0
        %723 = vmatpush1.msra.mxu0 %v689
        %724 = vmatprep.subr.mxu0 0.0
        %725 = vmatpush1.msra.mxu0 %v688
        %726 = vmatprep.subr.mxu0 0.0
        %727 = vmatpush1.msra.mxu0 %v687
        %728 = vmatprep.subr.mxu0 0.0
        %729 = vmatpush1.msra.mxu0 %v686
        %730 = vmatprep.subr.mxu0 0.0
        %731 = vmatpush1.msra.mxu0 %v685
        %732 = vmatprep.subr.mxu0 0.0
        %733 = vmatpush1.msra.mxu0 %v684
        %734 = vmatprep.subr.mxu0 0.0
        %735 = vmatpush1.msra.mxu0 %v683
        %736 = vmatprep.subr.mxu0 0.0
        %737 = vmatpush1.msra.mxu0 %v682
        %738 = vmatprep.subr.mxu0 0.0
        %739 = vmatpush1.msra.mxu0 %v681
        %740 = vmatprep.subr.mxu0 0.0
        %741 = vmatpush1.msra.mxu0 %v680
        %742 = vmatprep.subr.mxu0 0.0
        %743 = vmatpush1.msra.mxu0 %v679
        %744 = vmatprep.subr.mxu0 0.0
        %745 = vmatpush1.msra.mxu0 %v678
        %746 = vmatprep.subr.mxu0 0.0
        %747 = vmatpush1.msra.mxu0 %v677
        %748 = vmatprep.subr.mxu0 0.0
        %749 = vmatpush2.msra.mxu0 0.0
        %750 = vmatprep.subr.mxu0 0.0
        %751 = vmatpush2.msra.mxu0 0.0
        %752 = vmatprep.subr.mxu0 0.0
        %753 = vmatpush2.msra.mxu0 0.0
        %754 = vmatprep.subr.mxu0 0.0
        %755 = vmatpush2.msra.mxu0 0.0
        %756 = vmatprep.subr.mxu0 0.0
        %757 = vmatpush2.msra.mxu0 0.0
        %758 = vmatprep.subr.mxu0 0.0
        %759 = vmatpush2.msra.mxu0 0.0
        %760 = vmatprep.subr.mxu0 0.0
        %761 = vmatpush2.msra.mxu0 0.0
        %762 = vmatprep.subr.mxu0 0.0
        %763 = vmatpush2.msra.mxu0 0.0
        %764 = vmatprep.subr.mxu0 0.0
        %765 = vmatpush2.msra.mxu0 0.0
        %766 = vmatprep.subr.mxu0 0.0
        %767 = vmatpush2.msra.mxu0 0.0
        %768 = vmatprep.subr.mxu0 0.0
        %769 = vmatpush2.msra.mxu0 %v698
        %770 = vmatprep.subr.mxu0 0.0
        %771 = vmatpush2.msra.mxu0 %v697
        %772 = vmatprep.subr.mxu0 0.0
        %773 = vmatpush2.msra.mxu0 %v696
        %774 = vmatprep.subr.mxu0 0.0
        %775 = vmatpush2.msra.mxu0 %v695
        %776 = vmatprep.subr.mxu0 0.0
        %777 = vmatpush2.msra.mxu0 %v694
        %778 = vmatprep.subr.mxu0 0.0
        %779 = vmatpush2.msra.mxu0 %v693
        %780 = vmatprep.mubr.f32.mxu0 %v712
        %781 = vmatmul.mubr.f32.gmra.mxu0 %v702
        %v782 = vpop.f32.mrf.mxu0
        %v783 = vadd.f32 0.0, %v782
        %v784 = vpop.f32.mrf.mxu0
        %785 = vmatprep.mubr.f32.mxu0 %v714
        %786 = vmatmul.mubr.f32.gmra.mxu0 %v707
        %v787 = vpop.f32.mrf.mxu0
        %v788 = vadd.f32 0.0, %v787
        %v789 = vpop.f32.mrf.mxu0
        %790 = vdwg.mxu0
        %v791 = vadd.f32 %v674, %v783
        %v792 = vadd.f32 %v675, %v788
        %s793 = scalar_lea.vmem %s1, 704
        %v794 = vld [vmem:[%s793] sm:$0xff]
        %v795 = vld [vmem:[%s793 + $0x8] sm:$0xff]
        %v796 = vld [vmem:[%s793 + $0x10] sm:$0xff]
        %v797 = vld [vmem:[%s793 + $0x18] sm:$0xff]
        %v798 = vld [vmem:[%s793 + $0x20] sm:$0xff]
        %v799 = vld [vmem:[%s793 + $0x28] sm:$0xff]
        %v800 = vld [vmem:[%s793 + $0x30] sm:$0xff]
        %v801 = vld [vmem:[%s793 + $0x38] sm:$0xff]
        %v802 = vld [vmem:[%s793 + $0x40] sm:$0xff]
        %v803 = vld [vmem:[%s793 + $0x48] sm:$0xff]
        %v804 = vld [vmem:[%s793 + $0x50] sm:$0xff]
        %v805 = vld [vmem:[%s793 + $0x58] sm:$0xff]
        %v806 = vld [vmem:[%s793 + $0x60] sm:$0xff]
        %v807 = vld [vmem:[%s793 + $0x68] sm:$0xff]
        %v808 = vld [vmem:[%s793 + $0x70] sm:$0xff]
        %v809 = vld [vmem:[%s793 + $0x78] sm:$0xff]
        %v810 = vld [vmem:[%s793 + $0x80] sm:$0xff]
        %v811 = vld [vmem:[%s793 + $0x88] sm:$0xff]
        %v812 = vld [vmem:[%s793 + $0x90] sm:$0xff]
        %v813 = vld [vmem:[%s793 + $0x98] sm:$0xff]
        %v814 = vld [vmem:[%s793 + $0xa0] sm:$0xff]
        %v815 = vld [vmem:[%s793 + $0xa8] sm:$0xff]
        %vm816 = vcmask 1043456
        %v817 = vrot.slane %v321, 4
        %v818 = vrot.slane %v323, 4
        %v819 = vsel %vm816, %v817, %v818
        %v820 = vrot.slane %v322, 4
        %v821 = vrot.slane %v324, 4
        %v822 = vsel %vm816, %v820, %v821
        %v823 = vrot.slane %v325, 4
        %v824 = vsel %vm816, %v818, %v823
        %v825 = vrot.slane %v326, 4
        %v826 = vsel %vm816, %v821, %v825
        %v829 = vsel %vm356, %v822, 0
        %v831 = vsel %vm356, %v826, 0
        %833 = vmatprep.subr.mxu0 0.0
        %834 = vmatpush1.msra.mxu0 %v809
        %835 = vmatprep.subr.mxu0 0.0
        %836 = vmatpush1.msra.mxu0 %v808
        %837 = vmatprep.subr.mxu0 0.0
        %838 = vmatpush1.msra.mxu0 %v807
        %839 = vmatprep.subr.mxu0 0.0
        %840 = vmatpush1.msra.mxu0 %v806
        %841 = vmatprep.subr.mxu0 0.0
        %842 = vmatpush1.msra.mxu0 %v805
        %843 = vmatprep.subr.mxu0 0.0
        %844 = vmatpush1.msra.mxu0 %v804
        %845 = vmatprep.subr.mxu0 0.0
        %846 = vmatpush1.msra.mxu0 %v803
        %847 = vmatprep.subr.mxu0 0.0
        %848 = vmatpush1.msra.mxu0 %v802
        %849 = vmatprep.subr.mxu0 0.0
        %850 = vmatpush1.msra.mxu0 %v801
        %851 = vmatprep.subr.mxu0 0.0
        %852 = vmatpush1.msra.mxu0 %v800
        %853 = vmatprep.subr.mxu0 0.0
        %854 = vmatpush1.msra.mxu0 %v799
        %855 = vmatprep.subr.mxu0 0.0
        %856 = vmatpush1.msra.mxu0 %v798
        %857 = vmatprep.subr.mxu0 0.0
        %858 = vmatpush1.msra.mxu0 %v797
        %859 = vmatprep.subr.mxu0 0.0
        %860 = vmatpush1.msra.mxu0 %v796
        %861 = vmatprep.subr.mxu0 0.0
        %862 = vmatpush1.msra.mxu0 %v795
        %863 = vmatprep.subr.mxu0 0.0
        %864 = vmatpush1.msra.mxu0 %v794
        %865 = vmatprep.subr.mxu0 0.0
        %866 = vmatpush2.msra.mxu0 0.0
        %867 = vmatprep.subr.mxu0 0.0
        %868 = vmatpush2.msra.mxu0 0.0
        %869 = vmatprep.subr.mxu0 0.0
        %870 = vmatpush2.msra.mxu0 0.0
        %871 = vmatprep.subr.mxu0 0.0
        %872 = vmatpush2.msra.mxu0 0.0
        %873 = vmatprep.subr.mxu0 0.0
        %874 = vmatpush2.msra.mxu0 0.0
        %875 = vmatprep.subr.mxu0 0.0
        %876 = vmatpush2.msra.mxu0 0.0
        %877 = vmatprep.subr.mxu0 0.0
        %878 = vmatpush2.msra.mxu0 0.0
        %879 = vmatprep.subr.mxu0 0.0
        %880 = vmatpush2.msra.mxu0 0.0
        %881 = vmatprep.subr.mxu0 0.0
        %882 = vmatpush2.msra.mxu0 0.0
        %883 = vmatprep.subr.mxu0 0.0
        %884 = vmatpush2.msra.mxu0 0.0
        %885 = vmatprep.subr.mxu0 0.0
        %886 = vmatpush2.msra.mxu0 %v815
        %887 = vmatprep.subr.mxu0 0.0
        %888 = vmatpush2.msra.mxu0 %v814
        %889 = vmatprep.subr.mxu0 0.0
        %890 = vmatpush2.msra.mxu0 %v813
        %891 = vmatprep.subr.mxu0 0.0
        %892 = vmatpush2.msra.mxu0 %v812
        %893 = vmatprep.subr.mxu0 0.0
        %894 = vmatpush2.msra.mxu0 %v811
        %895 = vmatprep.subr.mxu0 0.0
        %896 = vmatpush2.msra.mxu0 %v810
        %897 = vmatprep.mubr.f32.mxu0 %v829
        %898 = vmatmul.mubr.f32.gmra.mxu0 %v819
        %v899 = vpop.f32.mrf.mxu0
        %v900 = vadd.f32 0.0, %v899
        %v901 = vpop.f32.mrf.mxu0
        %902 = vmatprep.mubr.f32.mxu0 %v831
        %903 = vmatmul.mubr.f32.gmra.mxu0 %v824
        %v904 = vpop.f32.mrf.mxu0
        %v905 = vadd.f32 0.0, %v904
        %v906 = vpop.f32.mrf.mxu0
        %907 = vdwg.mxu0
        %v908 = vadd.f32 %v791, %v900
        %v909 = vadd.f32 %v792, %v905
        %s910 = scalar_lea.vmem %s1, 880
        %v911 = vld [vmem:[%s910] sm:$0xff]
        %v912 = vld [vmem:[%s910 + $0x8] sm:$0xff]
        %v913 = vld [vmem:[%s910 + $0x10] sm:$0xff]
        %v914 = vld [vmem:[%s910 + $0x18] sm:$0xff]
        %v915 = vld [vmem:[%s910 + $0x20] sm:$0xff]
        %v916 = vld [vmem:[%s910 + $0x28] sm:$0xff]
        %v917 = vld [vmem:[%s910 + $0x30] sm:$0xff]
        %v918 = vld [vmem:[%s910 + $0x38] sm:$0xff]
        %v919 = vld [vmem:[%s910 + $0x40] sm:$0xff]
        %v920 = vld [vmem:[%s910 + $0x48] sm:$0xff]
        %v921 = vld [vmem:[%s910 + $0x50] sm:$0xff]
        %v922 = vld [vmem:[%s910 + $0x58] sm:$0xff]
        %v923 = vld [vmem:[%s910 + $0x60] sm:$0xff]
        %v924 = vld [vmem:[%s910 + $0x68] sm:$0xff]
        %v925 = vld [vmem:[%s910 + $0x70] sm:$0xff]
        %v926 = vld [vmem:[%s910 + $0x78] sm:$0xff]
        %v927 = vld [vmem:[%s910 + $0x80] sm:$0xff]
        %v928 = vld [vmem:[%s910 + $0x88] sm:$0xff]
        %v929 = vld [vmem:[%s910 + $0x90] sm:$0xff]
        %v930 = vld [vmem:[%s910 + $0x98] sm:$0xff]
        %v931 = vld [vmem:[%s910 + $0xa0] sm:$0xff]
        %v932 = vld [vmem:[%s910 + $0xa8] sm:$0xff]
        %vm933 = vcmask 1042432
        %v934 = vrot.slane %v321, 5
        %v935 = vrot.slane %v323, 5
        %v936 = vsel %vm933, %v934, %v935
        %v937 = vrot.slane %v322, 5
        %v938 = vrot.slane %v324, 5
        %v939 = vsel %vm933, %v937, %v938
        %v940 = vrot.slane %v325, 5
        %v941 = vsel %vm933, %v935, %v940
        %v942 = vrot.slane %v326, 5
        %v943 = vsel %vm933, %v938, %v942
        %v946 = vsel %vm356, %v939, 0
        %v948 = vsel %vm356, %v943, 0
        %950 = vmatprep.subr.mxu0 0.0
        %951 = vmatpush1.msra.mxu0 %v926
        %952 = vmatprep.subr.mxu0 0.0
        %953 = vmatpush1.msra.mxu0 %v925
        %954 = vmatprep.subr.mxu0 0.0
        %955 = vmatpush1.msra.mxu0 %v924
        %956 = vmatprep.subr.mxu0 0.0
        %957 = vmatpush1.msra.mxu0 %v923
        %958 = vmatprep.subr.mxu0 0.0
        %959 = vmatpush1.msra.mxu0 %v922
        %960 = vmatprep.subr.mxu0 0.0
        %961 = vmatpush1.msra.mxu0 %v921
        %962 = vmatprep.subr.mxu0 0.0
        %963 = vmatpush1.msra.mxu0 %v920
        %964 = vmatprep.subr.mxu0 0.0
        %965 = vmatpush1.msra.mxu0 %v919
        %966 = vmatprep.subr.mxu0 0.0
        %967 = vmatpush1.msra.mxu0 %v918
        %968 = vmatprep.subr.mxu0 0.0
        %969 = vmatpush1.msra.mxu0 %v917
        %970 = vmatprep.subr.mxu0 0.0
        %971 = vmatpush1.msra.mxu0 %v916
        %972 = vmatprep.subr.mxu0 0.0
        %973 = vmatpush1.msra.mxu0 %v915
        %974 = vmatprep.subr.mxu0 0.0
        %975 = vmatpush1.msra.mxu0 %v914
        %976 = vmatprep.subr.mxu0 0.0
        %977 = vmatpush1.msra.mxu0 %v913
        %978 = vmatprep.subr.mxu0 0.0
        %979 = vmatpush1.msra.mxu0 %v912
        %980 = vmatprep.subr.mxu0 0.0
        %981 = vmatpush1.msra.mxu0 %v911
        %982 = vmatprep.subr.mxu0 0.0
        %983 = vmatpush2.msra.mxu0 0.0
        %984 = vmatprep.subr.mxu0 0.0
        %985 = vmatpush2.msra.mxu0 0.0
        %986 = vmatprep.subr.mxu0 0.0
        %987 = vmatpush2.msra.mxu0 0.0
        %988 = vmatprep.subr.mxu0 0.0
        %989 = vmatpush2.msra.mxu0 0.0
        %990 = vmatprep.subr.mxu0 0.0
        %991 = vmatpush2.msra.mxu0 0.0
        %992 = vmatprep.subr.mxu0 0.0
        %993 = vmatpush2.msra.mxu0 0.0
        %994 = vmatprep.subr.mxu0 0.0
        %995 = vmatpush2.msra.mxu0 0.0
        %996 = vmatprep.subr.mxu0 0.0
        %997 = vmatpush2.msra.mxu0 0.0
        %998 = vmatprep.subr.mxu0 0.0
        %999 = vmatpush2.msra.mxu0 0.0
        %1000 = vmatprep.subr.mxu0 0.0
        %1001 = vmatpush2.msra.mxu0 0.0
        %1002 = vmatprep.subr.mxu0 0.0
        %1003 = vmatpush2.msra.mxu0 %v932
        %1004 = vmatprep.subr.mxu0 0.0
        %1005 = vmatpush2.msra.mxu0 %v931
        %1006 = vmatprep.subr.mxu0 0.0
        %1007 = vmatpush2.msra.mxu0 %v930
        %1008 = vmatprep.subr.mxu0 0.0
        %1009 = vmatpush2.msra.mxu0 %v929
        %1010 = vmatprep.subr.mxu0 0.0
        %1011 = vmatpush2.msra.mxu0 %v928
        %1012 = vmatprep.subr.mxu0 0.0
        %1013 = vmatpush2.msra.mxu0 %v927
        %1014 = vmatprep.mubr.f32.mxu0 %v946
        %1015 = vmatmul.mubr.f32.gmra.mxu0 %v936
        %v1016 = vpop.f32.mrf.mxu0
        %v1017 = vadd.f32 0.0, %v1016
        %v1018 = vpop.f32.mrf.mxu0
        %1019 = vmatprep.mubr.f32.mxu0 %v948
        %1020 = vmatmul.mubr.f32.gmra.mxu0 %v941
        %v1021 = vpop.f32.mrf.mxu0
        %v1022 = vadd.f32 0.0, %v1021
        %v1023 = vpop.f32.mrf.mxu0
        %1024 = vdwg.mxu0
        %v1025 = vadd.f32 %v908, %v1017
        %v1026 = vadd.f32 %v909, %v1022
        %s1027 = scalar_lea.vmem %s1, 1056
        %v1028 = vld [vmem:[%s1027] sm:$0xff]
        %v1029 = vld [vmem:[%s1027 + $0x8] sm:$0xff]
        %v1030 = vld [vmem:[%s1027 + $0x10] sm:$0xff]
        %v1031 = vld [vmem:[%s1027 + $0x18] sm:$0xff]
        %v1032 = vld [vmem:[%s1027 + $0x20] sm:$0xff]
        %v1033 = vld [vmem:[%s1027 + $0x28] sm:$0xff]
        %v1034 = vld [vmem:[%s1027 + $0x30] sm:$0xff]
        %v1035 = vld [vmem:[%s1027 + $0x38] sm:$0xff]
        %v1036 = vld [vmem:[%s1027 + $0x40] sm:$0xff]
        %v1037 = vld [vmem:[%s1027 + $0x48] sm:$0xff]
        %v1038 = vld [vmem:[%s1027 + $0x50] sm:$0xff]
        %v1039 = vld [vmem:[%s1027 + $0x58] sm:$0xff]
        %v1040 = vld [vmem:[%s1027 + $0x60] sm:$0xff]
        %v1041 = vld [vmem:[%s1027 + $0x68] sm:$0xff]
        %v1042 = vld [vmem:[%s1027 + $0x70] sm:$0xff]
        %v1043 = vld [vmem:[%s1027 + $0x78] sm:$0xff]
        %v1044 = vld [vmem:[%s1027 + $0x80] sm:$0xff]
        %v1045 = vld [vmem:[%s1027 + $0x88] sm:$0xff]
        %v1046 = vld [vmem:[%s1027 + $0x90] sm:$0xff]
        %v1047 = vld [vmem:[%s1027 + $0x98] sm:$0xff]
        %v1048 = vld [vmem:[%s1027 + $0xa0] sm:$0xff]
        %v1049 = vld [vmem:[%s1027 + $0xa8] sm:$0xff]
        %vm1050 = vcmask 1041408
        %v1051 = vrot.slane %v321, 6
        %v1052 = vrot.slane %v323, 6
        %v1053 = vsel %vm1050, %v1051, %v1052
        %v1054 = vrot.slane %v322, 6
        %v1055 = vrot.slane %v324, 6
        %v1056 = vsel %vm1050, %v1054, %v1055
        %v1057 = vrot.slane %v325, 6
        %v1058 = vsel %vm1050, %v1052, %v1057
        %v1059 = vrot.slane %v326, 6
        %v1060 = vsel %vm1050, %v1055, %v1059
        %v1063 = vsel %vm356, %v1056, 0
        %v1065 = vsel %vm356, %v1060, 0
        %1067 = vmatprep.subr.mxu0 0.0
        %1068 = vmatpush1.msra.mxu0 %v1043
        %1069 = vmatprep.subr.mxu0 0.0
        %1070 = vmatpush1.msra.mxu0 %v1042
        %1071 = vmatprep.subr.mxu0 0.0
        %1072 = vmatpush1.msra.mxu0 %v1041
        %1073 = vmatprep.subr.mxu0 0.0
        %1074 = vmatpush1.msra.mxu0 %v1040
        %1075 = vmatprep.subr.mxu0 0.0
        %1076 = vmatpush1.msra.mxu0 %v1039
        %1077 = vmatprep.subr.mxu0 0.0
        %1078 = vmatpush1.msra.mxu0 %v1038
        %1079 = vmatprep.subr.mxu0 0.0
        %1080 = vmatpush1.msra.mxu0 %v1037
        %1081 = vmatprep.subr.mxu0 0.0
        %1082 = vmatpush1.msra.mxu0 %v1036
        %1083 = vmatprep.subr.mxu0 0.0
        %1084 = vmatpush1.msra.mxu0 %v1035
        %1085 = vmatprep.subr.mxu0 0.0
        %1086 = vmatpush1.msra.mxu0 %v1034
        %1087 = vmatprep.subr.mxu0 0.0
        %1088 = vmatpush1.msra.mxu0 %v1033
        %1089 = vmatprep.subr.mxu0 0.0
        %1090 = vmatpush1.msra.mxu0 %v1032
        %1091 = vmatprep.subr.mxu0 0.0
        %1092 = vmatpush1.msra.mxu0 %v1031
        %1093 = vmatprep.subr.mxu0 0.0
        %1094 = vmatpush1.msra.mxu0 %v1030
        %1095 = vmatprep.subr.mxu0 0.0
        %1096 = vmatpush1.msra.mxu0 %v1029
        %1097 = vmatprep.subr.mxu0 0.0
        %1098 = vmatpush1.msra.mxu0 %v1028
        %1099 = vmatprep.subr.mxu0 0.0
        %1100 = vmatpush2.msra.mxu0 0.0
        %1101 = vmatprep.subr.mxu0 0.0
        %1102 = vmatpush2.msra.mxu0 0.0
        %1103 = vmatprep.subr.mxu0 0.0
        %1104 = vmatpush2.msra.mxu0 0.0
        %1105 = vmatprep.subr.mxu0 0.0
        %1106 = vmatpush2.msra.mxu0 0.0
        %1107 = vmatprep.subr.mxu0 0.0
        %1108 = vmatpush2.msra.mxu0 0.0
        %1109 = vmatprep.subr.mxu0 0.0
        %1110 = vmatpush2.msra.mxu0 0.0
        %1111 = vmatprep.subr.mxu0 0.0
        %1112 = vmatpush2.msra.mxu0 0.0
        %1113 = vmatprep.subr.mxu0 0.0
        %1114 = vmatpush2.msra.mxu0 0.0
        %1115 = vmatprep.subr.mxu0 0.0
        %1116 = vmatpush2.msra.mxu0 0.0
        %1117 = vmatprep.subr.mxu0 0.0
        %1118 = vmatpush2.msra.mxu0 0.0
        %1119 = vmatprep.subr.mxu0 0.0
        %1120 = vmatpush2.msra.mxu0 %v1049
        %1121 = vmatprep.subr.mxu0 0.0
        %1122 = vmatpush2.msra.mxu0 %v1048
        %1123 = vmatprep.subr.mxu0 0.0
        %1124 = vmatpush2.msra.mxu0 %v1047
        %1125 = vmatprep.subr.mxu0 0.0
        %1126 = vmatpush2.msra.mxu0 %v1046
        %1127 = vmatprep.subr.mxu0 0.0
        %1128 = vmatpush2.msra.mxu0 %v1045
        %1129 = vmatprep.subr.mxu0 0.0
        %1130 = vmatpush2.msra.mxu0 %v1044
        %1131 = vmatprep.mubr.f32.mxu0 %v1063
        %1132 = vmatmul.mubr.f32.gmra.mxu0 %v1053
        %v1133 = vpop.f32.mrf.mxu0
        %v1134 = vadd.f32 0.0, %v1133
        %v1135 = vpop.f32.mrf.mxu0
        %1136 = vmatprep.mubr.f32.mxu0 %v1065
        %1137 = vmatmul.mubr.f32.gmra.mxu0 %v1058
        %v1138 = vpop.f32.mrf.mxu0
        %v1139 = vadd.f32 0.0, %v1138
        %v1140 = vpop.f32.mrf.mxu0
        %1141 = vdwg.mxu0
        %v1142 = vadd.f32 %v1025, %v1134
        %v1143 = vadd.f32 %v1026, %v1139
        %v1144 = vld [vmem:[%s3] sm:$0xff]
        %v1145 = vld [vmem:[%s3 + $0x8] sm:$0xff]
        %v1146 = vld [vmem:[%s3 + $0x10] sm:$0xff]
        %v1147 = vld [vmem:[%s3 + $0x18] sm:$0xff]
        %v1148 = vld [vmem:[%s3 + $0x20] sm:$0xff]
        %v1149 = vld [vmem:[%s3 + $0x28] sm:$0xff]
        %v1150 = vld [vmem:[%s3 + $0x30] sm:$0xff]
        %v1151 = vld [vmem:[%s3 + $0x38] sm:$0xff]
        %v1152 = vld [vmem:[%s3 + $0x40] sm:$0xff]
        %v1153 = vld [vmem:[%s3 + $0x48] sm:$0xff]
        %v1154 = vld [vmem:[%s3 + $0x50] sm:$0xff]
        %v1155 = vld [vmem:[%s3 + $0x58] sm:$0xff]
        %v1156 = vld [vmem:[%s3 + $0x60] sm:$0xff]
        %v1157 = vld [vmem:[%s3 + $0x68] sm:$0xff]
        %v1158 = vld [vmem:[%s3 + $0x70] sm:$0xff]
        %v1159 = vld [vmem:[%s3 + $0x78] sm:$0xff]
        %1160 = vmatprep.subr.mxu0 0.0
        %1161 = vmatpush1.msra.mxu0 %v1159
        %1162 = vmatprep.subr.mxu0 0.0
        %1163 = vmatpush1.msra.mxu0 %v1158
        %1164 = vmatprep.subr.mxu0 0.0
        %1165 = vmatpush1.msra.mxu0 %v1157
        %1166 = vmatprep.subr.mxu0 0.0
        %1167 = vmatpush1.msra.mxu0 %v1156
        %1168 = vmatprep.subr.mxu0 0.0
        %1169 = vmatpush1.msra.mxu0 %v1155
        %1170 = vmatprep.subr.mxu0 0.0
        %1171 = vmatpush1.msra.mxu0 %v1154
        %1172 = vmatprep.subr.mxu0 0.0
        %1173 = vmatpush1.msra.mxu0 %v1153
        %1174 = vmatprep.subr.mxu0 0.0
        %1175 = vmatpush1.msra.mxu0 %v1152
        %1176 = vmatprep.subr.mxu0 0.0
        %1177 = vmatpush1.msra.mxu0 %v1151
        %1178 = vmatprep.subr.mxu0 0.0
        %1179 = vmatpush1.msra.mxu0 %v1150
        %1180 = vmatprep.subr.mxu0 0.0
        %1181 = vmatpush1.msra.mxu0 %v1149
        %1182 = vmatprep.subr.mxu0 0.0
        %1183 = vmatpush1.msra.mxu0 %v1148
        %1184 = vmatprep.subr.mxu0 0.0
        %1185 = vmatpush1.msra.mxu0 %v1147
        %1186 = vmatprep.subr.mxu0 0.0
        %1187 = vmatpush1.msra.mxu0 %v1146
        %1188 = vmatprep.subr.mxu0 0.0
        %1189 = vmatpush1.msra.mxu0 %v1145
        %1190 = vmatprep.subr.mxu0 0.0
        %1191 = vmatpush1.msra.mxu0 %v1144
        %1192 = vmatprep.subr.mxu0 0.0
        %1193 = vmatpush2.msra.mxu0 0.0
        %1194 = vmatprep.subr.mxu0 0.0
        %1195 = vmatpush2.msra.mxu0 0.0
        %1196 = vmatprep.subr.mxu0 0.0
        %1197 = vmatpush2.msra.mxu0 0.0
        %1198 = vmatprep.subr.mxu0 0.0
        %1199 = vmatpush2.msra.mxu0 0.0
        %1200 = vmatprep.subr.mxu0 0.0
        %1201 = vmatpush2.msra.mxu0 0.0
        %1202 = vmatprep.subr.mxu0 0.0
        %1203 = vmatpush2.msra.mxu0 0.0
        %1204 = vmatprep.subr.mxu0 0.0
        %1205 = vmatpush2.msra.mxu0 0.0
        %1206 = vmatprep.subr.mxu0 0.0
        %1207 = vmatpush2.msra.mxu0 0.0
        %1208 = vmatprep.subr.mxu0 0.0
        %1209 = vmatpush2.msra.mxu0 0.0
        %1210 = vmatprep.subr.mxu0 0.0
        %1211 = vmatpush2.msra.mxu0 0.0
        %1212 = vmatprep.subr.mxu0 0.0
        %1213 = vmatpush2.msra.mxu0 0.0
        %1214 = vmatprep.subr.mxu0 0.0
        %1215 = vmatpush2.msra.mxu0 0.0
        %1216 = vmatprep.subr.mxu0 0.0
        %1217 = vmatpush2.msra.mxu0 0.0
        %1218 = vmatprep.subr.mxu0 0.0
        %1219 = vmatpush2.msra.mxu0 0.0
        %1220 = vmatprep.subr.mxu0 0.0
        %1221 = vmatpush2.msra.mxu0 0.0
        %1222 = vmatprep.subr.mxu0 0.0
        %1223 = vmatpush2.msra.mxu0 0.0
        %1224 = vmatprep.mubr.f32.mxu0 0.0
        %1225 = vmatmul.mubr.f32.gmra.mxu0 %v1142
        %v1226 = vpop.f32.mrf.mxu0
        %v1227 = vadd.f32 0.0, %v1226
        %v1228 = vpop.f32.mrf.mxu0
        %1229 = vmatprep.mubr.f32.mxu0 0.0
        %1230 = vmatmul.mubr.f32.gmra.mxu0 %v1143
        %v1231 = vpop.f32.mrf.mxu0
        %v1232 = vadd.f32 0.0, %v1231
        %v1233 = vpop.f32.mrf.mxu0
        %1234 = vdwg.mxu0
        %v1235 = vsub.f32 %v1142, %v1227
        %v1236 = vsub.f32 %v1143, %v1232
        %v1237 = vmul.f32 %v1235, %v1235
        %v1238 = vmul.f32 %v1236, %v1236
        %1239 = vmatprep.subr.mxu0 0.0
        %1240 = vmatpush1.msra.mxu0 %v1159
        %1241 = vmatprep.subr.mxu0 0.0
        %1242 = vmatpush1.msra.mxu0 %v1158
        %1243 = vmatprep.subr.mxu0 0.0
        %1244 = vmatpush1.msra.mxu0 %v1157
        %1245 = vmatprep.subr.mxu0 0.0
        %1246 = vmatpush1.msra.mxu0 %v1156
        %1247 = vmatprep.subr.mxu0 0.0
        %1248 = vmatpush1.msra.mxu0 %v1155
        %1249 = vmatprep.subr.mxu0 0.0
        %1250 = vmatpush1.msra.mxu0 %v1154
        %1251 = vmatprep.subr.mxu0 0.0
        %1252 = vmatpush1.msra.mxu0 %v1153
        %1253 = vmatprep.subr.mxu0 0.0
        %1254 = vmatpush1.msra.mxu0 %v1152
        %1255 = vmatprep.subr.mxu0 0.0
        %1256 = vmatpush1.msra.mxu0 %v1151
        %1257 = vmatprep.subr.mxu0 0.0
        %1258 = vmatpush1.msra.mxu0 %v1150
        %1259 = vmatprep.subr.mxu0 0.0
        %1260 = vmatpush1.msra.mxu0 %v1149
        %1261 = vmatprep.subr.mxu0 0.0
        %1262 = vmatpush1.msra.mxu0 %v1148
        %1263 = vmatprep.subr.mxu0 0.0
        %1264 = vmatpush1.msra.mxu0 %v1147
        %1265 = vmatprep.subr.mxu0 0.0
        %1266 = vmatpush1.msra.mxu0 %v1146
        %1267 = vmatprep.subr.mxu0 0.0
        %1268 = vmatpush1.msra.mxu0 %v1145
        %1269 = vmatprep.subr.mxu0 0.0
        %1270 = vmatpush1.msra.mxu0 %v1144
        %1271 = vmatprep.subr.mxu0 0.0
        %1272 = vmatpush2.msra.mxu0 0.0
        %1273 = vmatprep.subr.mxu0 0.0
        %1274 = vmatpush2.msra.mxu0 0.0
        %1275 = vmatprep.subr.mxu0 0.0
        %1276 = vmatpush2.msra.mxu0 0.0
        %1277 = vmatprep.subr.mxu0 0.0
        %1278 = vmatpush2.msra.mxu0 0.0
        %1279 = vmatprep.subr.mxu0 0.0
        %1280 = vmatpush2.msra.mxu0 0.0
        %1281 = vmatprep.subr.mxu0 0.0
        %1282 = vmatpush2.msra.mxu0 0.0
        %1283 = vmatprep.subr.mxu0 0.0
        %1284 = vmatpush2.msra.mxu0 0.0
        %1285 = vmatprep.subr.mxu0 0.0
        %1286 = vmatpush2.msra.mxu0 0.0
        %1287 = vmatprep.subr.mxu0 0.0
        %1288 = vmatpush2.msra.mxu0 0.0
        %1289 = vmatprep.subr.mxu0 0.0
        %1290 = vmatpush2.msra.mxu0 0.0
        %1291 = vmatprep.subr.mxu0 0.0
        %1292 = vmatpush2.msra.mxu0 0.0
        %1293 = vmatprep.subr.mxu0 0.0
        %1294 = vmatpush2.msra.mxu0 0.0
        %1295 = vmatprep.subr.mxu0 0.0
        %1296 = vmatpush2.msra.mxu0 0.0
        %1297 = vmatprep.subr.mxu0 0.0
        %1298 = vmatpush2.msra.mxu0 0.0
        %1299 = vmatprep.subr.mxu0 0.0
        %1300 = vmatpush2.msra.mxu0 0.0
        %1301 = vmatprep.subr.mxu0 0.0
        %1302 = vmatpush2.msra.mxu0 0.0
        %1303 = vmatprep.mubr.f32.mxu0 0.0
        %1304 = vmatmul.mubr.f32.gmra.mxu0 %v1237
        %v1305 = vpop.f32.mrf.mxu0
        %v1306 = vadd.f32 1e-06, %v1305
        %v1307 = vpop.f32.mrf.mxu0
        %1308 = vmatprep.mubr.f32.mxu0 0.0
        %1309 = vmatmul.mubr.f32.gmra.mxu0 %v1238
        %v1310 = vpop.f32.mrf.mxu0
        %v1311 = vadd.f32 1e-06, %v1310
        %v1312 = vpop.f32.mrf.mxu0
        %1313 = vdwg.mxu0
        %v1314 = vrsqrt.pop %v1306
        %v1315 = vrsqrt.pop %v1311
        %v1316 = vmul.f32 %v1235, %v1314
        %v1317 = vmul.f32 %v1236, %v1315
        %v1318 = vld [vmem:[%s4] sm:$0xff]
        %v1319 = vld [vmem:[%s4 + $0x8] sm:$0xff]
        %v1320 = vld [vmem:[%s4 + $0x10] sm:$0xff]
        %v1321 = vld [vmem:[%s4 + $0x18] sm:$0xff]
        %v1322 = vld [vmem:[%s4 + $0x20] sm:$0xff]
        %v1323 = vld [vmem:[%s4 + $0x28] sm:$0xff]
        %v1324 = vld [vmem:[%s4 + $0x30] sm:$0xff]
        %v1325 = vld [vmem:[%s4 + $0x38] sm:$0xff]
        %v1326 = vld [vmem:[%s4 + $0x40] sm:$0xff]
        %v1327 = vld [vmem:[%s4 + $0x48] sm:$0xff]
        %v1328 = vld [vmem:[%s4 + $0x50] sm:$0xff]
        %v1329 = vld [vmem:[%s4 + $0x58] sm:$0xff]
        %v1330 = vld [vmem:[%s4 + $0x60] sm:$0xff]
        %v1331 = vld [vmem:[%s4 + $0x68] sm:$0xff]
        %v1332 = vld [vmem:[%s4 + $0x70] sm:$0xff]
        %v1333 = vld [vmem:[%s4 + $0x78] sm:$0xff]
        %v1334 = vld [vmem:[%s4 + $0x80] sm:$0xff]
        %v1335 = vld [vmem:[%s4 + $0x88] sm:$0xff]
        %v1336 = vld [vmem:[%s4 + $0x90] sm:$0xff]
        %v1337 = vld [vmem:[%s4 + $0x98] sm:$0xff]
        %v1338 = vld [vmem:[%s4 + $0xa0] sm:$0xff]
        %v1339 = vld [vmem:[%s4 + $0xa8] sm:$0xff]
        %v1340 = vld [vmem:[%s4 + $0xb0] sm:$0xff]
        %v1341 = vld [vmem:[%s4 + $0xb8] sm:$0xff]
        %v1342 = vld [vmem:[%s4 + $0xc0] sm:$0xff]
        %v1343 = vld [vmem:[%s4 + $0xc8] sm:$0xff]
        %v1344 = vld [vmem:[%s4 + $0xd0] sm:$0xff]
        %v1345 = vld [vmem:[%s4 + $0xd8] sm:$0xff]
        %v1346 = vld [vmem:[%s4 + $0xe0] sm:$0xff]
        %v1347 = vld [vmem:[%s4 + $0xe8] sm:$0xff]
        %v1348 = vld [vmem:[%s4 + $0xf0] sm:$0xff]
        %v1349 = vld [vmem:[%s4 + $0xf8] sm:$0xff]
        %v1350 = vld [vmem:[%s4 + $0x100] sm:$0xff]
        %v1351 = vld [vmem:[%s4 + $0x108] sm:$0xff]
        %v1352 = vld [vmem:[%s4 + $0x110] sm:$0xff]
        %v1353 = vld [vmem:[%s4 + $0x118] sm:$0xff]
        %v1354 = vld [vmem:[%s4 + $0x120] sm:$0xff]
        %v1355 = vld [vmem:[%s4 + $0x128] sm:$0xff]
        %v1356 = vld [vmem:[%s4 + $0x130] sm:$0xff]
        %v1357 = vld [vmem:[%s4 + $0x138] sm:$0xff]
        %v1358 = vld [vmem:[%s4 + $0x140] sm:$0xff]
        %v1359 = vld [vmem:[%s4 + $0x148] sm:$0xff]
        %v1360 = vld [vmem:[%s4 + $0x150] sm:$0xff]
        %v1361 = vld [vmem:[%s4 + $0x158] sm:$0xff]
        %v1362 = vld [vmem:[%s4 + $0x160] sm:$0xff]
        %v1363 = vld [vmem:[%s4 + $0x168] sm:$0xff]
        %v1364 = vld [vmem:[%s4 + $0x170] sm:$0xff]
        %v1365 = vld [vmem:[%s4 + $0x178] sm:$0xff]
        %v1366 = vld [vmem:[%s4 + $0x180] sm:$0xff]
        %v1367 = vld [vmem:[%s4 + $0x188] sm:$0xff]
        %v1368 = vld [vmem:[%s4 + $0x190] sm:$0xff]
        %v1369 = vld [vmem:[%s4 + $0x198] sm:$0xff]
        %v1370 = vld [vmem:[%s4 + $0x1a0] sm:$0xff]
        %v1371 = vld [vmem:[%s4 + $0x1a8] sm:$0xff]
        %v1372 = vld [vmem:[%s4 + $0x1b0] sm:$0xff]
        %v1373 = vld [vmem:[%s4 + $0x1b8] sm:$0xff]
        %v1374 = vld [vmem:[%s4 + $0x1c0] sm:$0xff]
        %v1375 = vld [vmem:[%s4 + $0x1c8] sm:$0xff]
        %v1376 = vld [vmem:[%s4 + $0x1d0] sm:$0xff]
        %v1377 = vld [vmem:[%s4 + $0x1d8] sm:$0xff]
        %v1378 = vld [vmem:[%s4 + $0x1e0] sm:$0xff]
        %v1379 = vld [vmem:[%s4 + $0x1e8] sm:$0xff]
        %v1380 = vld [vmem:[%s4 + $0x1f0] sm:$0xff]
        %v1381 = vld [vmem:[%s4 + $0x1f8] sm:$0xff]
        %v1382 = vld [vmem:[%s5] sm:$0xf]
        %v1384 = vlaneseq
        %v1385 = vshrl.u32 %v1384, 7
        %v1386 = vsub.s32 0, %v1385
        %v1387 = vrot.slane %v1382, %v1386
        %v1388 = vlaneseq
        %v1389 = vshrl.u32 %v1388, 7
        %v1390 = vsub.s32 1, %v1389
        %v1391 = vrot.slane %v1382, %v1390
        %v1392 = vlaneseq
        %v1393 = vshrl.u32 %v1392, 7
        %v1394 = vsub.s32 2, %v1393
        %v1395 = vrot.slane %v1382, %v1394
        %v1396 = vlaneseq
        %v1397 = vshrl.u32 %v1396, 7
        %v1398 = vsub.s32 3, %v1397
        %v1399 = vrot.slane %v1382, %v1398
        %1404 = vmatprep.subr.mxu0 %v1379
        %1405 = vmatpush1.msra.mxu0 %v1378
        %1406 = vmatprep.subr.mxu0 %v1375
        %1407 = vmatpush1.msra.mxu0 %v1374
        %1408 = vmatprep.subr.mxu0 %v1371
        %1409 = vmatpush1.msra.mxu0 %v1370
        %1410 = vmatprep.subr.mxu0 %v1367
        %1411 = vmatpush1.msra.mxu0 %v1366
        %1412 = vmatprep.subr.mxu0 %v1363
        %1413 = vmatpush1.msra.mxu0 %v1362
        %1414 = vmatprep.subr.mxu0 %v1359
        %1415 = vmatpush1.msra.mxu0 %v1358
        %1416 = vmatprep.subr.mxu0 %v1355
        %1417 = vmatpush1.msra.mxu0 %v1354
        %1418 = vmatprep.subr.mxu0 %v1351
        %1419 = vmatpush1.msra.mxu0 %v1350
        %1420 = vmatprep.subr.mxu0 %v1347
        %1421 = vmatpush1.msra.mxu0 %v1346
        %1422 = vmatprep.subr.mxu0 %v1343
        %1423 = vmatpush1.msra.mxu0 %v1342
        %1424 = vmatprep.subr.mxu0 %v1339
        %1425 = vmatpush1.msra.mxu0 %v1338
        %1426 = vmatprep.subr.mxu0 %v1335
        %1427 = vmatpush1.msra.mxu0 %v1334
        %1428 = vmatprep.subr.mxu0 %v1331
        %1429 = vmatpush1.msra.mxu0 %v1330
        %1430 = vmatprep.subr.mxu0 %v1327
        %1431 = vmatpush1.msra.mxu0 %v1326
        %1432 = vmatprep.subr.mxu0 %v1323
        %1433 = vmatpush1.msra.mxu0 %v1322
        %1434 = vmatprep.subr.mxu0 %v1319
        %1435 = vmatpush1.msra.mxu0 %v1318
        %1436 = vmatprep.subr.mxu0 0.0
        %1437 = vmatpush2.msra.mxu0 0.0
        %1438 = vmatprep.subr.mxu0 0.0
        %1439 = vmatpush2.msra.mxu0 0.0
        %1440 = vmatprep.subr.mxu0 0.0
        %1441 = vmatpush2.msra.mxu0 0.0
        %1442 = vmatprep.subr.mxu0 0.0
        %1443 = vmatpush2.msra.mxu0 0.0
        %1444 = vmatprep.subr.mxu0 0.0
        %1445 = vmatpush2.msra.mxu0 0.0
        %1446 = vmatprep.subr.mxu0 0.0
        %1447 = vmatpush2.msra.mxu0 0.0
        %1448 = vmatprep.subr.mxu0 0.0
        %1449 = vmatpush2.msra.mxu0 0.0
        %1450 = vmatprep.subr.mxu0 0.0
        %1451 = vmatpush2.msra.mxu0 0.0
        %1452 = vmatprep.subr.mxu0 0.0
        %1453 = vmatpush2.msra.mxu0 0.0
        %1454 = vmatprep.subr.mxu0 0.0
        %1455 = vmatpush2.msra.mxu0 0.0
        %1456 = vmatprep.subr.mxu0 0.0
        %1457 = vmatpush2.msra.mxu0 0.0
        %1458 = vmatprep.subr.mxu0 0.0
        %1459 = vmatpush2.msra.mxu0 0.0
        %1460 = vmatprep.subr.mxu0 0.0
        %1461 = vmatpush2.msra.mxu0 0.0
        %1462 = vmatprep.subr.mxu0 0.0
        %1463 = vmatpush2.msra.mxu0 0.0
        %1464 = vmatprep.subr.mxu0 0.0
        %1465 = vmatpush2.msra.mxu0 0.0
        %1466 = vmatprep.subr.mxu0 0.0
        %1467 = vmatpush2.msra.mxu0 0.0
        %1468 = vmatprep.mubr.f32.mxu0 0.0
        %1469 = vmatmul.mubr.f32.gmra.mxu0 %v1316
        %v1470 = vpop.f32.mrf.mxu0
        %v1471 = vadd.f32 %v1387, %v1470
        %v1472 = vpop.f32.mrf.mxu0
        %v1473 = vadd.f32 %v1391, %v1472
        %1474 = vmatprep.mubr.f32.mxu0 0.0
        %1475 = vmatmul.mubr.f32.gmra.mxu0 %v1317
        %v1476 = vpop.f32.mrf.mxu0
        %v1477 = vadd.f32 %v1387, %v1476
        %v1478 = vpop.f32.mrf.mxu0
        %v1479 = vadd.f32 %v1391, %v1478
        %1480 = vdwg.mxu0
        %1481 = vmatprep.subr.mxu0 %v1381
        %1482 = vmatpush1.msra.mxu0 %v1380
        %1483 = vmatprep.subr.mxu0 %v1377
        %1484 = vmatpush1.msra.mxu0 %v1376
        %1485 = vmatprep.subr.mxu0 %v1373
        %1486 = vmatpush1.msra.mxu0 %v1372
        %1487 = vmatprep.subr.mxu0 %v1369
        %1488 = vmatpush1.msra.mxu0 %v1368
        %1489 = vmatprep.subr.mxu0 %v1365
        %1490 = vmatpush1.msra.mxu0 %v1364
        %1491 = vmatprep.subr.mxu0 %v1361
        %1492 = vmatpush1.msra.mxu0 %v1360
        %1493 = vmatprep.subr.mxu0 %v1357
        %1494 = vmatpush1.msra.mxu0 %v1356
        %1495 = vmatprep.subr.mxu0 %v1353
        %1496 = vmatpush1.msra.mxu0 %v1352
        %1497 = vmatprep.subr.mxu0 %v1349
        %1498 = vmatpush1.msra.mxu0 %v1348
        %1499 = vmatprep.subr.mxu0 %v1345
        %1500 = vmatpush1.msra.mxu0 %v1344
        %1501 = vmatprep.subr.mxu0 %v1341
        %1502 = vmatpush1.msra.mxu0 %v1340
        %1503 = vmatprep.subr.mxu0 %v1337
        %1504 = vmatpush1.msra.mxu0 %v1336
        %1505 = vmatprep.subr.mxu0 %v1333
        %1506 = vmatpush1.msra.mxu0 %v1332
        %1507 = vmatprep.subr.mxu0 %v1329
        %1508 = vmatpush1.msra.mxu0 %v1328
        %1509 = vmatprep.subr.mxu0 %v1325
        %1510 = vmatpush1.msra.mxu0 %v1324
        %1511 = vmatprep.subr.mxu0 %v1321
        %1512 = vmatpush1.msra.mxu0 %v1320
        %1513 = vmatprep.subr.mxu0 0.0
        %1514 = vmatpush2.msra.mxu0 0.0
        %1515 = vmatprep.subr.mxu0 0.0
        %1516 = vmatpush2.msra.mxu0 0.0
        %1517 = vmatprep.subr.mxu0 0.0
        %1518 = vmatpush2.msra.mxu0 0.0
        %1519 = vmatprep.subr.mxu0 0.0
        %1520 = vmatpush2.msra.mxu0 0.0
        %1521 = vmatprep.subr.mxu0 0.0
        %1522 = vmatpush2.msra.mxu0 0.0
        %1523 = vmatprep.subr.mxu0 0.0
        %1524 = vmatpush2.msra.mxu0 0.0
        %1525 = vmatprep.subr.mxu0 0.0
        %1526 = vmatpush2.msra.mxu0 0.0
        %1527 = vmatprep.subr.mxu0 0.0
        %1528 = vmatpush2.msra.mxu0 0.0
        %1529 = vmatprep.subr.mxu0 0.0
        %1530 = vmatpush2.msra.mxu0 0.0
        %1531 = vmatprep.subr.mxu0 0.0
        %1532 = vmatpush2.msra.mxu0 0.0
        %1533 = vmatprep.subr.mxu0 0.0
        %1534 = vmatpush2.msra.mxu0 0.0
        %1535 = vmatprep.subr.mxu0 0.0
        %1536 = vmatpush2.msra.mxu0 0.0
        %1537 = vmatprep.subr.mxu0 0.0
        %1538 = vmatpush2.msra.mxu0 0.0
        %1539 = vmatprep.subr.mxu0 0.0
        %1540 = vmatpush2.msra.mxu0 0.0
        %1541 = vmatprep.subr.mxu0 0.0
        %1542 = vmatpush2.msra.mxu0 0.0
        %1543 = vmatprep.subr.mxu0 0.0
        %1544 = vmatpush2.msra.mxu0 0.0
        %1545 = vmatprep.mubr.f32.mxu0 0.0
        %1546 = vmatmul.mubr.f32.gmra.mxu0 %v1316
        %v1547 = vpop.f32.mrf.mxu0
        %v1548 = vadd.f32 %v1395, %v1547
        %v1549 = vpop.f32.mrf.mxu0
        %v1550 = vadd.f32 %v1399, %v1549
        %1551 = vmatprep.mubr.f32.mxu0 0.0
        %1552 = vmatmul.mubr.f32.gmra.mxu0 %v1317
        %v1553 = vpop.f32.mrf.mxu0
        %v1554 = vadd.f32 %v1395, %v1553
        %v1555 = vpop.f32.mrf.mxu0
        %v1556 = vadd.f32 %v1399, %v1555
        %1557 = vdwg.mxu0
        %v1558 = vmul.f32 %v1471, 0.5
        %v1559 = vmul.f32 %v1473, 0.5
        %v1560 = vmul.f32 %v1548, 0.5
        %v1561 = vmul.f32 %v1550, 0.5
        %v1562 = vmul.f32 %v1477, 0.5
        %v1563 = vmul.f32 %v1479, 0.5
        %v1564 = vmul.f32 %v1554, 0.5
        %v1565 = vmul.f32 %v1556, 0.5
        %v1566 = vmul.f32 %v1471, 0.70710677
        %v1567 = vmul.f32 %v1473, 0.70710677
        %v1568 = vmul.f32 %v1548, 0.70710677
        %v1569 = vmul.f32 %v1550, 0.70710677
        %v1570 = vmul.f32 %v1477, 0.70710677
        %v1571 = vmul.f32 %v1479, 0.70710677
        %v1572 = vmul.f32 %v1554, 0.70710677
        %v1573 = vmul.f32 %v1556, 0.70710677
        %v1574 = verf.f32.pop %v1566
        %v1575 = verf.f32.pop %v1567
        %v1576 = verf.f32.pop %v1568
        %v1577 = verf.f32.pop %v1569
        %v1578 = verf.f32.pop %v1570
        %v1579 = verf.f32.pop %v1571
        %v1580 = verf.f32.pop %v1572
        %v1581 = verf.f32.pop %v1573
        %v1582 = vadd.f32 %v1574, 1.0
        %v1583 = vadd.f32 %v1575, 1.0
        %v1584 = vadd.f32 %v1576, 1.0
        %v1585 = vadd.f32 %v1577, 1.0
        %v1586 = vadd.f32 %v1578, 1.0
        %v1587 = vadd.f32 %v1579, 1.0
        %v1588 = vadd.f32 %v1580, 1.0
        %v1589 = vadd.f32 %v1581, 1.0
        %v1590 = vmul.f32 %v1558, %v1582
        %v1591 = vmul.f32 %v1559, %v1583
        %v1592 = vmul.f32 %v1560, %v1584
        %v1593 = vmul.f32 %v1561, %v1585
        %v1594 = vmul.f32 %v1562, %v1586
        %v1595 = vmul.f32 %v1563, %v1587
        %v1596 = vmul.f32 %v1564, %v1588
        %v1597 = vmul.f32 %v1565, %v1589
        %v1598 = vld [vmem:[#allocation2] sm:$0xff]
        %v1599 = vld [vmem:[#allocation2 + $0x8] sm:$0xff]
        %v1600 = vld [vmem:[#allocation2 + $0x10] sm:$0xff]
        %v1601 = vld [vmem:[#allocation2 + $0x18] sm:$0xff]
        %v1602 = vld [vmem:[#allocation2 + $0x20] sm:$0xff]
        %v1603 = vld [vmem:[#allocation2 + $0x28] sm:$0xff]
        %v1604 = vld [vmem:[#allocation2 + $0x30] sm:$0xff]
        %v1605 = vld [vmem:[#allocation2 + $0x38] sm:$0xff]
        %v1606 = vld [vmem:[#allocation2 + $0x40] sm:$0xff]
        %v1607 = vld [vmem:[#allocation2 + $0x48] sm:$0xff]
        %v1608 = vld [vmem:[#allocation2 + $0x50] sm:$0xff]
        %v1609 = vld [vmem:[#allocation2 + $0x58] sm:$0xff]
        %v1610 = vld [vmem:[#allocation2 + $0x60] sm:$0xff]
        %v1611 = vld [vmem:[#allocation2 + $0x68] sm:$0xff]
        %v1612 = vld [vmem:[#allocation2 + $0x70] sm:$0xff]
        %v1613 = vld [vmem:[#allocation2 + $0x78] sm:$0xff]
        %v1614 = vld [vmem:[#allocation2 + $0x80] sm:$0xff]
        %v1615 = vld [vmem:[#allocation2 + $0x88] sm:$0xff]
        %v1616 = vld [vmem:[#allocation2 + $0x90] sm:$0xff]
        %v1617 = vld [vmem:[#allocation2 + $0x98] sm:$0xff]
        %v1618 = vld [vmem:[#allocation2 + $0xa0] sm:$0xff]
        %v1619 = vld [vmem:[#allocation2 + $0xa8] sm:$0xff]
        %v1620 = vld [vmem:[#allocation2 + $0xb0] sm:$0xff]
        %v1621 = vld [vmem:[#allocation2 + $0xb8] sm:$0xff]
        %v1622 = vld [vmem:[#allocation2 + $0xc0] sm:$0xff]
        %v1623 = vld [vmem:[#allocation2 + $0xc8] sm:$0xff]
        %v1624 = vld [vmem:[#allocation2 + $0xd0] sm:$0xff]
        %v1625 = vld [vmem:[#allocation2 + $0xd8] sm:$0xff]
        %v1626 = vld [vmem:[#allocation2 + $0xe0] sm:$0xff]
        %v1627 = vld [vmem:[#allocation2 + $0xe8] sm:$0xff]
        %v1628 = vld [vmem:[#allocation2 + $0xf0] sm:$0xff]
        %v1629 = vld [vmem:[#allocation2 + $0xf8] sm:$0xff]
        %v1630 = vld [vmem:[#allocation2 + $0x100] sm:$0xff]
        %v1631 = vld [vmem:[#allocation2 + $0x108] sm:$0xff]
        %v1632 = vld [vmem:[#allocation2 + $0x110] sm:$0xff]
        %v1633 = vld [vmem:[#allocation2 + $0x118] sm:$0xff]
        %v1634 = vld [vmem:[#allocation2 + $0x120] sm:$0xff]
        %v1635 = vld [vmem:[#allocation2 + $0x128] sm:$0xff]
        %v1636 = vld [vmem:[#allocation2 + $0x130] sm:$0xff]
        %v1637 = vld [vmem:[#allocation2 + $0x138] sm:$0xff]
        %v1638 = vld [vmem:[#allocation2 + $0x140] sm:$0xff]
        %v1639 = vld [vmem:[#allocation2 + $0x148] sm:$0xff]
        %v1640 = vld [vmem:[#allocation2 + $0x150] sm:$0xff]
        %v1641 = vld [vmem:[#allocation2 + $0x158] sm:$0xff]
        %v1642 = vld [vmem:[#allocation2 + $0x160] sm:$0xff]
        %v1643 = vld [vmem:[#allocation2 + $0x168] sm:$0xff]
        %v1644 = vld [vmem:[#allocation2 + $0x170] sm:$0xff]
        %v1645 = vld [vmem:[#allocation2 + $0x178] sm:$0xff]
        %v1646 = vld [vmem:[#allocation2 + $0x180] sm:$0xff]
        %v1647 = vld [vmem:[#allocation2 + $0x188] sm:$0xff]
        %v1648 = vld [vmem:[#allocation2 + $0x190] sm:$0xff]
        %v1649 = vld [vmem:[#allocation2 + $0x198] sm:$0xff]
        %v1650 = vld [vmem:[#allocation2 + $0x1a0] sm:$0xff]
        %v1651 = vld [vmem:[#allocation2 + $0x1a8] sm:$0xff]
        %v1652 = vld [vmem:[#allocation2 + $0x1b0] sm:$0xff]
        %v1653 = vld [vmem:[#allocation2 + $0x1b8] sm:$0xff]
        %v1654 = vld [vmem:[#allocation2 + $0x1c0] sm:$0xff]
        %v1655 = vld [vmem:[#allocation2 + $0x1c8] sm:$0xff]
        %v1656 = vld [vmem:[#allocation2 + $0x1d0] sm:$0xff]
        %v1657 = vld [vmem:[#allocation2 + $0x1d8] sm:$0xff]
        %v1658 = vld [vmem:[#allocation2 + $0x1e0] sm:$0xff]
        %v1659 = vld [vmem:[#allocation2 + $0x1e8] sm:$0xff]
        %v1660 = vld [vmem:[#allocation2 + $0x1f0] sm:$0xff]
        %v1661 = vld [vmem:[#allocation2 + $0x1f8] sm:$0xff]
        %v1662 = vld [vmem:[%s7] sm:$0x1]
        %v1664 = vlaneseq
        %v1665 = vshrl.u32 %v1664, 7
        %v1666 = vsub.s32 0, %v1665
        %v1667 = vrot.slane %v1662, %v1666
        %1669 = vmatprep.subr.mxu0 0.0
        %1670 = vmatpush1.msra.mxu0 %v1613
        %1671 = vmatprep.subr.mxu0 0.0
        %1672 = vmatpush1.msra.mxu0 %v1612
        %1673 = vmatprep.subr.mxu0 0.0
        %1674 = vmatpush1.msra.mxu0 %v1611
        %1675 = vmatprep.subr.mxu0 0.0
        %1676 = vmatpush1.msra.mxu0 %v1610
        %1677 = vmatprep.subr.mxu0 0.0
        %1678 = vmatpush1.msra.mxu0 %v1609
        %1679 = vmatprep.subr.mxu0 0.0
        %1680 = vmatpush1.msra.mxu0 %v1608
        %1681 = vmatprep.subr.mxu0 0.0
        %1682 = vmatpush1.msra.mxu0 %v1607
        %1683 = vmatprep.subr.mxu0 0.0
        %1684 = vmatpush1.msra.mxu0 %v1606
        %1685 = vmatprep.subr.mxu0 0.0
        %1686 = vmatpush1.msra.mxu0 %v1605
        %1687 = vmatprep.subr.mxu0 0.0
        %1688 = vmatpush1.msra.mxu0 %v1604
        %1689 = vmatprep.subr.mxu0 0.0
        %1690 = vmatpush1.msra.mxu0 %v1603
        %1691 = vmatprep.subr.mxu0 0.0
        %1692 = vmatpush1.msra.mxu0 %v1602
        %1693 = vmatprep.subr.mxu0 0.0
        %1694 = vmatpush1.msra.mxu0 %v1601
        %1695 = vmatprep.subr.mxu0 0.0
        %1696 = vmatpush1.msra.mxu0 %v1600
        %1697 = vmatprep.subr.mxu0 0.0
        %1698 = vmatpush1.msra.mxu0 %v1599
        %1699 = vmatprep.subr.mxu0 0.0
        %1700 = vmatpush1.msra.mxu0 %v1598
        %1701 = vmatprep.subr.mxu0 0.0
        %1702 = vmatpush2.msra.mxu0 %v1629
        %1703 = vmatprep.subr.mxu0 0.0
        %1704 = vmatpush2.msra.mxu0 %v1628
        %1705 = vmatprep.subr.mxu0 0.0
        %1706 = vmatpush2.msra.mxu0 %v1627
        %1707 = vmatprep.subr.mxu0 0.0
        %1708 = vmatpush2.msra.mxu0 %v1626
        %1709 = vmatprep.subr.mxu0 0.0
        %1710 = vmatpush2.msra.mxu0 %v1625
        %1711 = vmatprep.subr.mxu0 0.0
        %1712 = vmatpush2.msra.mxu0 %v1624
        %1713 = vmatprep.subr.mxu0 0.0
        %1714 = vmatpush2.msra.mxu0 %v1623
        %1715 = vmatprep.subr.mxu0 0.0
        %1716 = vmatpush2.msra.mxu0 %v1622
        %1717 = vmatprep.subr.mxu0 0.0
        %1718 = vmatpush2.msra.mxu0 %v1621
        %1719 = vmatprep.subr.mxu0 0.0
        %1720 = vmatpush2.msra.mxu0 %v1620
        %1721 = vmatprep.subr.mxu0 0.0
        %1722 = vmatpush2.msra.mxu0 %v1619
        %1723 = vmatprep.subr.mxu0 0.0
        %1724 = vmatpush2.msra.mxu0 %v1618
        %1725 = vmatprep.subr.mxu0 0.0
        %1726 = vmatpush2.msra.mxu0 %v1617
        %1727 = vmatprep.subr.mxu0 0.0
        %1728 = vmatpush2.msra.mxu0 %v1616
        %1729 = vmatprep.subr.mxu0 0.0
        %1730 = vmatpush2.msra.mxu0 %v1615
        %1731 = vmatprep.subr.mxu0 0.0
        %1732 = vmatpush2.msra.mxu0 %v1614
        %1733 = vmatprep.mubr.f32.mxu0 %v1591
        %1734 = vmatmul.mubr.f32.gmra.mxu0 %v1590
        %v1735 = vpop.f32.mrf.mxu0
        %v1736 = vadd.f32 %v1667, %v1735
        %v1737 = vpop.f32.mrf.mxu0
        %1738 = vmatprep.mubr.f32.mxu0 %v1595
        %1739 = vmatmul.mubr.f32.gmra.mxu0 %v1594
        %v1740 = vpop.f32.mrf.mxu0
        %v1741 = vadd.f32 %v1667, %v1740
        %v1742 = vpop.f32.mrf.mxu0
        %1743 = vdwg.mxu0
        %1744 = vmatprep.subr.mxu0 0.0
        %1745 = vmatpush1.msra.mxu0 %v1645
        %1746 = vmatprep.subr.mxu0 0.0
        %1747 = vmatpush1.msra.mxu0 %v1644
        %1748 = vmatprep.subr.mxu0 0.0
        %1749 = vmatpush1.msra.mxu0 %v1643
        %1750 = vmatprep.subr.mxu0 0.0
        %1751 = vmatpush1.msra.mxu0 %v1642
        %1752 = vmatprep.subr.mxu0 0.0
        %1753 = vmatpush1.msra.mxu0 %v1641
        %1754 = vmatprep.subr.mxu0 0.0
        %1755 = vmatpush1.msra.mxu0 %v1640
        %1756 = vmatprep.subr.mxu0 0.0
        %1757 = vmatpush1.msra.mxu0 %v1639
        %1758 = vmatprep.subr.mxu0 0.0
        %1759 = vmatpush1.msra.mxu0 %v1638
        %1760 = vmatprep.subr.mxu0 0.0
        %1761 = vmatpush1.msra.mxu0 %v1637
        %1762 = vmatprep.subr.mxu0 0.0
        %1763 = vmatpush1.msra.mxu0 %v1636
        %1764 = vmatprep.subr.mxu0 0.0
        %1765 = vmatpush1.msra.mxu0 %v1635
        %1766 = vmatprep.subr.mxu0 0.0
        %1767 = vmatpush1.msra.mxu0 %v1634
        %1768 = vmatprep.subr.mxu0 0.0
        %1769 = vmatpush1.msra.mxu0 %v1633
        %1770 = vmatprep.subr.mxu0 0.0
        %1771 = vmatpush1.msra.mxu0 %v1632
        %1772 = vmatprep.subr.mxu0 0.0
        %1773 = vmatpush1.msra.mxu0 %v1631
        %1774 = vmatprep.subr.mxu0 0.0
        %1775 = vmatpush1.msra.mxu0 %v1630
        %1776 = vmatprep.subr.mxu0 0.0
        %1777 = vmatpush2.msra.mxu0 %v1661
        %1778 = vmatprep.subr.mxu0 0.0
        %1779 = vmatpush2.msra.mxu0 %v1660
        %1780 = vmatprep.subr.mxu0 0.0
        %1781 = vmatpush2.msra.mxu0 %v1659
        %1782 = vmatprep.subr.mxu0 0.0
        %1783 = vmatpush2.msra.mxu0 %v1658
        %1784 = vmatprep.subr.mxu0 0.0
        %1785 = vmatpush2.msra.mxu0 %v1657
        %1786 = vmatprep.subr.mxu0 0.0
        %1787 = vmatpush2.msra.mxu0 %v1656
        %1788 = vmatprep.subr.mxu0 0.0
        %1789 = vmatpush2.msra.mxu0 %v1655
        %1790 = vmatprep.subr.mxu0 0.0
        %1791 = vmatpush2.msra.mxu0 %v1654
        %1792 = vmatprep.subr.mxu0 0.0
        %1793 = vmatpush2.msra.mxu0 %v1653
        %1794 = vmatprep.subr.mxu0 0.0
        %1795 = vmatpush2.msra.mxu0 %v1652
        %1796 = vmatprep.subr.mxu0 0.0
        %1797 = vmatpush2.msra.mxu0 %v1651
        %1798 = vmatprep.subr.mxu0 0.0
        %1799 = vmatpush2.msra.mxu0 %v1650
        %1800 = vmatprep.subr.mxu0 0.0
        %1801 = vmatpush2.msra.mxu0 %v1649
        %1802 = vmatprep.subr.mxu0 0.0
        %1803 = vmatpush2.msra.mxu0 %v1648
        %1804 = vmatprep.subr.mxu0 0.0
        %1805 = vmatpush2.msra.mxu0 %v1647
        %1806 = vmatprep.subr.mxu0 0.0
        %1807 = vmatpush2.msra.mxu0 %v1646
        %1808 = vmatprep.mubr.f32.mxu0 %v1593
        %1809 = vmatmul.mubr.f32.gmra.mxu0 %v1592
        %v1810 = vpop.f32.mrf.mxu0
        %v1811 = vadd.f32 %v1736, %v1810
        %v1812 = vpop.f32.mrf.mxu0
        %1813 = vmatprep.mubr.f32.mxu0 %v1597
        %1814 = vmatmul.mubr.f32.gmra.mxu0 %v1596
        %v1815 = vpop.f32.mrf.mxu0
        %v1816 = vadd.f32 %v1741, %v1815
        %v1817 = vpop.f32.mrf.mxu0
        %1818 = vdwg.mxu0
        %1819 = vst [vmem:[%s320] sm:$0xff] %v1811
        %1820 = vst [vmem:[%s320 + $0x8] sm:$0xff] %v1816
        %p1821 = scmp.lt.s32.totalorder %s20, 1
        %s1822 = scalar_select %p1821, %s20, 1
        %s1823 = smul.addr %s1822, 2
        %s1824 = smul.addr %s1823, 8
        %s1825 = scalar_lea.vmem %s8, %s1824
        // Predicated region
        $region57: #{convnext_block_with_concat.1} parent=51 // pred_check
          %p1826 = pneg %p211
        $region58: #{convnext_block_with_concat.1} parent=51 // pred_check_branch
          %1828 = sbr.rel (%p1826) target = $region60
        $region59: #{convnext_block_with_concat.1} parent=51 // pred_region
          _
        $region60: #{convnext_block_with_concat.1} parent=51 // pred_fallthru
          _
      $region52: #{convnext_block_with_concat.1} parent=5 // pred_fallthru
        _
      %p1829 = scmp.le.s32.totalorder 2, %s15
      // Predicated region
      $region61: #{convnext_block_with_concat.1} parent=5 // pred_check
        %p1830 = pneg %p1829
      $region62: #{convnext_block_with_concat.1} parent=5 // pred_check_branch
        %1832 = sbr.rel (%p1830) target = $region64
      $region63: #{convnext_block_with_concat.1} parent=5 // pred_region
        %s1833 = ssub.s32 %s15, 2
        // Predicated region
        $region65: #{convnext_block_with_concat.1} parent=63 // pred_check
          %p1834 = pneg %p217
        $region66: #{convnext_block_with_concat.1} parent=63 // pred_check_branch
          %1836 = sbr.rel (%p1834) target = $region68
        $region67: #{convnext_block_with_concat.1} parent=63 // pred_region
          %p1837 = scmp.lt.s32.totalorder %s21, 1
          %s1838 = scalar_select %p1837, %s21, 1
          %s1839 = smul.addr %s1838, 2
          %s1840 = smul.addr %s1839, 8
          %s1841 = scalar_lea.vmem %s8, %s1840
        $region68: #{convnext_block_with_concat.1} parent=63 // pred_fallthru
          _
      $region64: #{convnext_block_with_concat.1} parent=5 // pred_fallthru
        _
    $region6: #{convnext_block_with_concat.1} parent=1 // loop_footer
      %s19 = sadd.s32 1, %s15
    $region7: #{convnext_block_with_concat.1} parent=1 // loop_footer_branch
      %14 = sbr.rel target = $region3
    $region8: #{convnext_block_with_concat.1} parent=1 // loop_exit
      _
    %1842 = vsyncpa [#allocation3], 1
    %s1843 = scalar_lea.sflag [#allocation3], 1
    %1844 = vsyncpa %s1843, 1

</llo_original>
